<compile_context>
chip_gen: v5e
topology: v5e:2x2
jax: 0.10.0
libtpu: 0.0.40
codegen_flags: <defaults>
</compile_context>

<pallas_src>
import functools
import numpy as np
import jax
import jax.numpy as jnp
from jax.experimental import pallas as pl
from jax.experimental.pallas import tpu as pltpu

LANE = 128


# ----------------------------- config --------------------------------------
class Cfg:
    pass


cfg = Cfg()
cfg.enc_in = 7            # mmmLinear is nn.Linear(7, 1) -> enc_in must be 7
cfg.dec_in = 7
cfg.c_out = 7             # broadcast-add with mmm requires last dim == 7
cfg.d_model = 32
cfg.n_heads = 4
cfg.d_ff = 64
cfg.e_layers = 1
cfg.d_layers = 1
cfg.seq_len = 16
cfg.label_len = 8
cfg.pred_len = 8
cfg.mark_dim = 4          # embed='timeF', freq='h' -> 4 time features
cfg.activation = "relu"
cfg.output_attention = False


# ----------------------------- shared math ---------------------------------
def _layernorm(x, g, b):
    mean = jnp.mean(x, axis=-1, keepdims=True)
    var = jnp.mean(jnp.square(x - mean), axis=-1, keepdims=True)
    return (x - mean) * jax.lax.rsqrt(var + 1e-5) * g + b


def _softmax_last(s):
    m = jnp.max(s, axis=-1, keepdims=True)
    p = jnp.exp(s - m)
    return p / jnp.sum(p, axis=-1, keepdims=True)


def _forward_single(x_enc, x_mark_enc, x_dec, x_mark_dec, get, c):
    """Forward pass for ONE batch element on 2-D [L, feature] arrays.

    `get(name)` returns the named parameter: inside the Pallas kernel it is a
    static slice of the VMEM weight slab; in the pure-JAX reference it reads
    the (unpacked) param dict.
    """
    f32 = jnp.float32
    D, H = c.d_model, c.n_heads
    E = D // H
    scale = 1.0 / float(np.sqrt(E))

    def act(y):
        if c.activation == "relu":
            return jnp.maximum(y, 0.0)
        # TODO(synk): torch F.gelu is exact erf-gelu; tanh approximation used here.
        return jax.nn.gelu(y, approximate=True)

    def mha(q, k, v, wo, bo, mask=None):
        # Per-head attention with the output projection folded into the
        # accumulation (avoids head concat / transposes).  `mask` is an
        # additive (L, S) f32 mask (0 / -1e30), precomputed on the host.
        L = q.shape[0]
        acc = jnp.zeros((L, D), f32)
        for h in range(H):
            sl = slice(h * E, (h + 1) * E)
            s = jax.lax.dot_general(q[:, sl], k[:, sl], (((1,), (1,)), ((), ())),
                                    preferred_element_type=f32) * scale
            if mask is not None:
                s = s + mask
            p = _softmax_last(s)
            oh = jnp.dot(p, v[:, sl], preferred_element_type=f32)           # (L, E)
            acc = acc + jnp.dot(oh, wo[sl, :], preferred_element_type=f32)  # (L, D)
        return acc + bo

    def embed(x, x_mark, prefix):
        # TokenEmbedding: Conv1d(C, D, k=3, circular pad, no bias) + timeF
        # Linear + positional encoding.  Circular shifts via precomputed
        # (L, L) shift matrices on the MXU (no concat/roll needed).
        L = x.shape[0]
        x_prev = jnp.dot(get(prefix + "_sp"), x, preferred_element_type=f32)
        x_next = jnp.dot(get(prefix + "_sn"), x, preferred_element_type=f32)
        out = (jnp.dot(x_prev, get(prefix + "_wp"), preferred_element_type=f32)
               + jnp.dot(x, get(prefix + "_wc"), preferred_element_type=f32)
               + jnp.dot(x_next, get(prefix + "_wn"), preferred_element_type=f32)
               + jnp.dot(x_mark, get(prefix + "_wm"), preferred_element_type=f32))
        return out + get("pe")[:L, :]

    # ---- mmm preprocessing: softmax over the sequence axis -----------------
    mmm = x_enc[-1:, :]                                                  # (1, C)
    s = jnp.dot(x_enc, get("mmm_w"), preferred_element_type=f32) + get("mmm_b")
    s = s - jnp.max(s, axis=0, keepdims=True)
    p = jnp.exp(s)
    p = p / jnp.sum(p, axis=0, keepdims=True)                            # (L, 1)
    x_pre = (x_enc - mmm) * p

    # ---- encoder ------------------------------------------------------------
    h_enc = embed(x_pre, x_mark_enc, "emb_enc")
    for i in range(c.e_layers):
        g = lambda n: get(f"enc{i}_{n}")
        qkv = jnp.dot(h_enc, g("wqkv"), preferred_element_type=f32) + g("bqkv")
        a = mha(qkv[:, :D], qkv[:, D:2 * D], qkv[:, 2 * D:], g("wo"), g("bo"))
        x = _layernorm(h_enc + a, g("n1g"), g("n1b"))
        y = act(jnp.dot(x, g("w1"), preferred_element_type=f32) + g("b1"))
        y = jnp.dot(y, g("w2"), preferred_element_type=f32) + g("b2")
        h_enc = _layernorm(x + y, g("n2g"), g("n2b"))
    h_enc = _layernorm(h_enc, get("enc_ng"), get("enc_nb"))

    # ---- decoder ------------------------------------------------------------
    h_dec = embed(x_dec, x_mark_dec, "emb_dec")
    causal = get("causal_mask")
    for i in range(c.d_layers):
        g = lambda n: get(f"dec{i}_{n}")
        qkv = jnp.dot(h_dec, g("swqkv"), preferred_element_type=f32) + g("sbqkv")
        a = mha(qkv[:, :D], qkv[:, D:2 * D], qkv[:, 2 * D:],
                g("swo"), g("sbo"), mask=causal)
        x = _layernorm(h_dec + a, g("n1g"), g("n1b"))
        qc = jnp.dot(x, g("cwq"), preferred_element_type=f32) + g("cbq")
        kv = jnp.dot(h_enc, g("cwkv"), preferred_element_type=f32) + g("cbkv")
        a = mha(qc, kv[:, :D], kv[:, D:], g("cwo"), g("cbo"))
        x = _layernorm(x + a, g("n2g"), g("n2b"))
        y = act(jnp.dot(x, g("w1"), preferred_element_type=f32) + g("b1"))
        y = jnp.dot(y, g("w2"), preferred_element_type=f32) + g("b2")
        h_dec = _layernorm(x + y, g("n3g"), g("n3b"))
    h_dec = _layernorm(h_dec, get("dec_ng"), get("dec_nb"))

    proj = jnp.dot(h_dec, get("proj_w"), preferred_element_type=f32) + get("proj_b")
    return proj[-c.pred_len:, :] + mmm


# ----------------------------- fused Pallas kernel --------------------------
def _fused_forward_kernel(x_enc_ref, x_me_ref, x_dec_ref, x_md_ref, w_ref,
                          out_ref, *, c, layout):
    def get(name):
        r0, nr, nc = layout[name]
        return w_ref[r0:r0 + nr, 0:nc]          # static slice of the VMEM slab

    out = _forward_single(x_enc_ref[...], x_me_ref[...],
                          x_dec_ref[...], x_md_ref[...], get, c)
    out_ref[...] = out.astype(out_ref.dtype)


def model_forward(slab, x_enc, x_mark_enc, x_dec, x_mark_dec, *, c, layout):
    B, L_enc, C_enc = x_enc.shape
    _, L_dec, C_dec = x_dec.shape
    M_enc = x_mark_enc.shape[-1]
    M_dec = x_mark_dec.shape[-1]

    def batch_spec(L, C):
        return pl.BlockSpec((None, L, C), lambda b: (b, 0, 0))

    in_specs = [batch_spec(L_enc, C_enc),
                batch_spec(L_enc, M_enc),
                batch_spec(L_dec, C_dec),
                batch_spec(L_dec, M_dec),
                # weight slab: one full-array block, resident in VMEM.
                pl.BlockSpec(slab.shape, lambda b: (0, 0))]

    kernel = functools.partial(_fused_forward_kernel, c=c, layout=layout)
    return pl.pallas_call(
        kernel,
        out_shape=jax.ShapeDtypeStruct((B, c.pred_len, c.c_out), jnp.float32),
        grid=(B,),
        in_specs=in_specs,
        out_specs=pl.BlockSpec((None, c.pred_len, c.c_out), lambda b: (b, 0, 0)),
        compiler_params=pltpu.CompilerParams(
            dimension_semantics=("parallel",)),   # v7x: one batch element per TC
    )(x_enc, x_mark_enc, x_dec, x_mark_dec, slab)


# ----------------------------- parameters -----------------------------------
def make_weight_names(c):
    names = ["pe", "causal_mask",
             "emb_enc_sp", "emb_enc_sn", "emb_dec_sp", "emb_dec_sn",
             "mmm_w", "mmm_b",
             "emb_enc_wp", "emb_enc_wc", "emb_enc_wn", "emb_enc_wm",
             "emb_dec_wp", "emb_dec_wc", "emb_dec_wn", "emb_dec_wm"]
    for i in range(c.e_layers):
        names += [f"enc{i}_{n}" for n in
                  ("wqkv", "bqkv", "wo", "bo", "n1g", "n1b",
                   "w1", "b1", "w2", "b2", "n2g", "n2b")]
    names += ["enc_ng", "enc_nb"]
    for i in range(c.d_layers):
        names += [f"dec{i}_{n}" for n in
                  ("swqkv", "sbqkv", "swo", "sbo", "n1g", "n1b",
                   "cwq", "cbq", "cwkv", "cbkv", "cwo", "cbo", "n2g", "n2b",
                   "w1", "b1", "w2", "b2", "n3g", "n3b")]
    names += ["dec_ng", "dec_nb", "proj_w", "proj_b"]
    return tuple(names)


def make_pe(max_len, d_model):
    position = np.arange(max_len, dtype=np.float32)[:, None]
    div_term = np.exp(np.arange(0, d_model, 2, dtype=np.float32) *
                      -(np.log(10000.0) / d_model))
    pe = np.zeros((max_len, d_model), np.float32)
    pe[:, 0::2] = np.sin(position * div_term)
    pe[:, 1::2] = np.cos(position * div_term)
    return jnp.asarray(pe)


def make_constants(c, max_len):
    """Host-precomputed constants stored in the same weight slab."""
    def shift(L, off):
        # S with S[i, j] = 1 iff j == (i + off) % L, so (S @ x)[i] = x[(i+off)%L].
        m = np.zeros((L, L), np.float32)
        m[np.arange(L), (np.arange(L) + off) % L] = 1.0
        return jnp.asarray(m)

    dec_len = c.label_len + c.pred_len
    rows = np.arange(dec_len)[:, None]
    cols = np.arange(dec_len)[None, :]
    causal = np.where(cols > rows, -1e30, 0.0).astype(np.float32)
    return {
        "pe": make_pe(max_len, c.d_model),
        "causal_mask": jnp.asarray(causal),
        "emb_enc_sp": shift(c.seq_len, c.seq_len - 1),
        "emb_enc_sn": shift(c.seq_len, 1),
        "emb_dec_sp": shift(dec_len, dec_len - 1),
        "emb_dec_sn": shift(dec_len, 1),
    }


def init_params(key, c):
    keys = iter(jax.random.split(key, 256))

    def nrm(shape, scale=0.02):
        return scale * jax.random.normal(next(keys), shape, jnp.float32)

    def ones(shape):
        return jnp.ones(shape, jnp.float32)

    def zeros(shape):
        return jnp.zeros(shape, jnp.float32)

    D, F = c.d_model, c.d_ff
    p = {
        "mmm_w": nrm((c.enc_in, 1)), "mmm_b": nrm((1, 1)),
        "emb_enc_wp": nrm((c.enc_in, D)), "emb_enc_wc": nrm((c.enc_in, D)),
        "emb_enc_wn": nrm((c.enc_in, D)), "emb_enc_wm": nrm((c.mark_dim, D)),
        "emb_dec_wp": nrm((c.dec_in, D)), "emb_dec_wc": nrm((c.dec_in, D)),
        "emb_dec_wn": nrm((c.dec_in, D)), "emb_dec_wm": nrm((c.mark_dim, D)),
        "enc_ng": ones((1, D)), "enc_nb": zeros((1, D)),
        "dec_ng": ones((1, D)), "dec_nb": zeros((1, D)),
        "proj_w": nrm((D, c.c_out)), "proj_b": nrm((1, c.c_out)),
    }
    for i in range(c.e_layers):
        p.update({
            f"enc{i}_wqkv": nrm((D, 3 * D)), f"enc{i}_bqkv": nrm((1, 3 * D)),
            f"enc{i}_wo": nrm((D, D)), f"enc{i}_bo": nrm((1, D)),
            f"enc{i}_n1g": ones((1, D)), f"enc{i}_n1b": zeros((1, D)),
            f"enc{i}_w1": nrm((D, F)), f"enc{i}_b1": nrm((1, F)),
            f"enc{i}_w2": nrm((F, D)), f"enc{i}_b2": nrm((1, D)),
            f"enc{i}_n2g": ones((1, D)), f"enc{i}_n2b": zeros((1, D)),
        })
    for i in range(c.d_layers):
        p.update({
            f"dec{i}_swqkv": nrm((D, 3 * D)), f"dec{i}_sbqkv": nrm((1, 3 * D)),
            f"dec{i}_swo": nrm((D, D)), f"dec{i}_sbo": nrm((1, D)),
            f"dec{i}_n1g": ones((1, D)), f"dec{i}_n1b": zeros((1, D)),
            f"dec{i}_cwq": nrm((D, D)), f"dec{i}_cbq": nrm((1, D)),
            f"dec{i}_cwkv": nrm((D, 2 * D)), f"dec{i}_cbkv": nrm((1, 2 * D)),
            f"dec{i}_cwo": nrm((D, D)), f"dec{i}_cbo": nrm((1, D)),
            f"dec{i}_n2g": ones((1, D)), f"dec{i}_n2b": zeros((1, D)),
            f"dec{i}_w1": nrm((D, F)), f"dec{i}_b1": nrm((1, F)),
            f"dec{i}_w2": nrm((F, D)), f"dec{i}_b2": nrm((1, D)),
            f"dec{i}_n3g": ones((1, D)), f"dec{i}_n3b": zeros((1, D)),
        })
    return p


# ----------------------------- weight slab packing ---------------------------
def build_layout(params, names, lane=LANE):
    """Assign each 2-D param a sublane-aligned row offset in a (R, 128) slab."""
    layout = {}
    row = 0
    for n in names:
        shp = tuple(params[n].shape)
        assert len(shp) == 2 and shp[1] <= lane, (n, shp)
        layout[n] = (row, shp[0], shp[1])
        row += (shp[0] + 7) // 8 * 8            # next weight starts 8-row aligned
    total_rows = max((row + 7) // 8 * 8, 8)
    return layout, total_rows


def pack_params(params, names, layout, total_rows, lane=LANE):
    slab = np.zeros((total_rows, lane), np.float32)
    for n in names:
        r0, nr, nc = layout[n]
        slab[r0:r0 + nr, :nc] = np.asarray(params[n], np.float32)
    return jnp.asarray(slab)


# ----------------------------- main ------------------------------------------
if __name__ == "__main__":
    key = jax.random.PRNGKey(0)
    kp, k1, k2, k3, k4 = jax.random.split(key, 5)

    B = 2
    dec_len = cfg.label_len + cfg.pred_len
    max_len = max(cfg.seq_len, dec_len)

    params = init_params(kp, cfg)
    consts = make_constants(cfg, max_len)
    params_all = {**params, **consts}
    names = make_weight_names(cfg)

    layout, total_rows = build_layout(params_all, names)
    slab = pack_params(params_all, names, layout, total_rows)

    x_enc = jax.random.normal(k1, (B, cfg.seq_len, cfg.enc_in), jnp.float32)
    x_mark_enc = jax.random.normal(k2, (B, cfg.seq_len, cfg.mark_dim), jnp.float32)
    x_dec = jax.random.normal(k3, (B, dec_len, cfg.dec_in), jnp.float32)
    x_mark_dec = jax.random.normal(k4, (B, dec_len, cfg.mark_dim), jnp.float32)

    fwd = jax.jit(functools.partial(model_forward, c=cfg, layout=layout))
    out = fwd(slab, x_enc, x_mark_enc, x_dec, x_mark_dec)
    jax.block_until_ready(out)

    # Pure-JAX reference (same math, no Pallas, unpacked params).
    ref_single = lambda xe, me, xd, md: _forward_single(
        xe, me, xd, md, lambda n: params_all[n], cfg)
    ref = jax.jit(jax.vmap(ref_single))(x_enc, x_mark_enc, x_dec, x_mark_dec)
    jax.block_until_ready(ref)

    assert out.shape == (B, cfg.pred_len, cfg.c_out), out.shape
    assert bool(jnp.all(jnp.isfinite(out)))
    max_err = float(jnp.max(jnp.abs(out - ref)))
    assert max_err < 2e-3, f"mismatch vs pure-JAX reference: {max_err}"
    print("KERNEL_OK")
</pallas_src>

<mosaic_0001>
module attributes {stable_mosaic.version = 11 : i64} {
  func.func @_fused_forward_kernel(%arg0: i32, %arg1: memref<1x16x7xf32, #tpu.memory_space<vmem>>, %arg2: memref<1x16x4xf32, #tpu.memory_space<vmem>>, %arg3: memref<1x16x7xf32, #tpu.memory_space<vmem>>, %arg4: memref<1x16x4xf32, #tpu.memory_space<vmem>>, %arg5: memref<832x128xf32, #tpu.memory_space<vmem>>, %arg6: memref<1x8x7xf32, #tpu.memory_space<vmem>>) attributes {dimension_semantics = [#tpu.dimension_semantics<parallel>], iteration_bounds = array<i64: 2>, scalar_prefetch = 0 : i64, scratch_operands = 0 : i64, tpu.core_type = #tpu.core_type<tc>, window_params = [{transform_indices = @transform_0, window_bounds = array<i64: 1, 16, 7>}, {transform_indices = @transform_1, window_bounds = array<i64: 1, 16, 4>}, {transform_indices = @transform_2, window_bounds = array<i64: 1, 16, 7>}, {transform_indices = @transform_3, window_bounds = array<i64: 1, 16, 4>}, {pipeline_mode = #tpu.pipeline_mode<synchronous>, transform_indices = @transform_4, window_bounds = array<i64: 832, 128>}, {transform_indices = @transform_5, window_bounds = array<i64: 1, 8, 7>}]} {
    %c0 = arith.constant 0 : index
    %c0_0 = arith.constant 0 : index
    %c0_1 = arith.constant 0 : index
    %0 = vector.load %arg1[%c0, %c0_0, %c0_1] : memref<1x16x7xf32, #tpu.memory_space<vmem>>, vector<1x16x7xf32>
    %1 = vector.shape_cast %0 : vector<1x16x7xf32> to vector<16x7xf32>
    %c0_2 = arith.constant 0 : index
    %c0_3 = arith.constant 0 : index
    %c0_4 = arith.constant 0 : index
    %2 = vector.load %arg2[%c0_2, %c0_3, %c0_4] : memref<1x16x4xf32, #tpu.memory_space<vmem>>, vector<1x16x4xf32>
    %3 = vector.shape_cast %2 : vector<1x16x4xf32> to vector<16x4xf32>
    %c0_5 = arith.constant 0 : index
    %c0_6 = arith.constant 0 : index
    %c0_7 = arith.constant 0 : index
    %4 = vector.load %arg3[%c0_5, %c0_6, %c0_7] : memref<1x16x7xf32, #tpu.memory_space<vmem>>, vector<1x16x7xf32>
    %5 = vector.shape_cast %4 : vector<1x16x7xf32> to vector<16x7xf32>
    %c0_8 = arith.constant 0 : index
    %c0_9 = arith.constant 0 : index
    %c0_10 = arith.constant 0 : index
    %6 = vector.load %arg4[%c0_8, %c0_9, %c0_10] : memref<1x16x4xf32, #tpu.memory_space<vmem>>, vector<1x16x4xf32>
    %7 = vector.shape_cast %6 : vector<1x16x4xf32> to vector<16x4xf32>
    %8 = vector.extract_strided_slice %1 {offsets = [15, 0], sizes = [1, 7], strides = [1, 1]} : vector<16x7xf32> to vector<1x7xf32>
    %c96 = arith.constant 96 : index
    %c0_11 = arith.constant 0 : index
    %9 = vector.load %arg5[%c96, %c0_11] : memref<832x128xf32, #tpu.memory_space<vmem>>, vector<7x1xf32>
    %cst = arith.constant dense<0.000000e+00> : vector<16x1xf32>
    %10 = tpu.matmul %1, %9, %cst {dimension_numbers = #tpu.dot_dimension_numbers<[1], [0], [0], [1], [0, 0, 1, 1], [], []>} : vector<16x7xf32>, vector<7x1xf32>, vector<16x1xf32> -> vector<16x1xf32>
    %c104 = arith.constant 104 : index
    %c0_12 = arith.constant 0 : index
    %11 = vector.load %arg5[%c104, %c0_12] : memref<832x128xf32, #tpu.memory_space<vmem>>, vector<1x1xf32>
    %12 = vector.broadcast %11 : vector<1x1xf32> to vector<16x1xf32>
    %13 = arith.addf %10, %12 : vector<16x1xf32>
    %cst_13 = arith.constant dense<0xFF800000> : vector<1xf32>
    %14 = vector.multi_reduction <maximumf>, %13, %cst_13 [0] : vector<16x1xf32> to vector<1xf32>
    %15 = vector.shape_cast %14 : vector<1xf32> to vector<1x1xf32>
    %16 = vector.broadcast %15 : vector<1x1xf32> to vector<16x1xf32>
    %17 = arith.subf %13, %16 : vector<16x1xf32>
    %18 = math.exp %17 : vector<16x1xf32>
    %cst_14 = arith.constant dense<0.000000e+00> : vector<1xf32>
    %19 = vector.multi_reduction <add>, %18, %cst_14 [0] : vector<16x1xf32> to vector<1xf32>
    %20 = vector.shape_cast %19 : vector<1xf32> to vector<1x1xf32>
    %21 = vector.broadcast %20 : vector<1x1xf32> to vector<16x1xf32>
    %22 = arith.divf %18, %21 : vector<16x1xf32>
    %23 = vector.broadcast %8 : vector<1x7xf32> to vector<16x7xf32>
    %24 = arith.subf %1, %23 : vector<16x7xf32>
    %25 = vector.broadcast %22 : vector<16x1xf32> to vector<16x7xf32>
    %26 = arith.mulf %24, %25 : vector<16x7xf32>
    %c32 = arith.constant 32 : index
    %c0_15 = arith.constant 0 : index
    %27 = vector.load %arg5[%c32, %c0_15] : memref<832x128xf32, #tpu.memory_space<vmem>>, vector<16x16xf32>
    %cst_16 = arith.constant dense<0.000000e+00> : vector<16x7xf32>
    %28 = tpu.matmul %27, %26, %cst_16 {dimension_numbers = #tpu.dot_dimension_numbers<[1], [0], [0], [1], [0, 0, 1, 1], [], []>} : vector<16x16xf32>, vector<16x7xf32>, vector<16x7xf32> -> vector<16x7xf32>
    %c48 = arith.constant 48 : index
    %c0_17 = arith.constant 0 : index
    %29 = vector.load %arg5[%c48, %c0_17] : memref<832x128xf32, #tpu.memory_space<vmem>>, vector<16x16xf32>
    %cst_18 = arith.constant dense<0.000000e+00> : vector<16x7xf32>
    %30 = tpu.matmul %29, %26, %cst_18 {dimension_numbers = #tpu.dot_dimension_numbers<[1], [0], [0], [1], [0, 0, 1, 1], [], []>} : vector<16x16xf32>, vector<16x7xf32>, vector<16x7xf32> -> vector<16x7xf32>
    %c112 = arith.constant 112 : index
    %c0_19 = arith.constant 0 : index
    %31 = vector.load %arg5[%c112, %c0_19] : memref<832x128xf32, #tpu.memory_space<vmem>>, vector<7x32xf32>
    %cst_20 = arith.constant dense<0.000000e+00> : vector<16x32xf32>
    %32 = tpu.matmul %28, %31, %cst_20 {dimension_numbers = #tpu.dot_dimension_numbers<[1], [0], [0], [1], [0, 0, 1, 1], [], []>} : vector<16x7xf32>, vector<7x32xf32>, vector<16x32xf32> -> vector<16x32xf32>
    %c120 = arith.constant 120 : index
    %c0_21 = arith.constant 0 : index
    %33 = vector.load %arg5[%c120, %c0_21] : memref<832x128xf32, #tpu.memory_space<vmem>>, vector<7x32xf32>
    %cst_22 = arith.constant dense<0.000000e+00> : vector<16x32xf32>
    %34 = tpu.matmul %26, %33, %cst_22 {dimension_numbers = #tpu.dot_dimension_numbers<[1], [0], [0], [1], [0, 0, 1, 1], [], []>} : vector<16x7xf32>, vector<7x32xf32>, vector<16x32xf32> -> vector<16x32xf32>
    %35 = arith.addf %32, %34 : vector<16x32xf32>
    %c128 = arith.constant 128 : index
    %c0_23 = arith.constant 0 : index
    %36 = vector.load %arg5[%c128, %c0_23] : memref<832x128xf32, #tpu.memory_space<vmem>>, vector<7x32xf32>
    %cst_24 = arith.constant dense<0.000000e+00> : vector<16x32xf32>
    %37 = tpu.matmul %30, %36, %cst_24 {dimension_numbers = #tpu.dot_dimension_numbers<[1], [0], [0], [1], [0, 0, 1, 1], [], []>} : vector<16x7xf32>, vector<7x32xf32>, vector<16x32xf32> -> vector<16x32xf32>
    %38 = arith.addf %35, %37 : vector<16x32xf32>
    %c136 = arith.constant 136 : index
    %c0_25 = arith.constant 0 : index
    %39 = vector.load %arg5[%c136, %c0_25] : memref<832x128xf32, #tpu.memory_space<vmem>>, vector<4x32xf32>
    %cst_26 = arith.constant dense<0.000000e+00> : vector<16x32xf32>
    %40 = tpu.matmul %3, %39, %cst_26 {dimension_numbers = #tpu.dot_dimension_numbers<[1], [0], [0], [1], [0, 0, 1, 1], [], []>} : vector<16x4xf32>, vector<4x32xf32>, vector<16x32xf32> -> vector<16x32xf32>
    %41 = arith.addf %38, %40 : vector<16x32xf32>
    %c0_27 = arith.constant 0 : index
    %c0_28 = arith.constant 0 : index
    %42 = vector.load %arg5[%c0_27, %c0_28] : memref<832x128xf32, #tpu.memory_space<vmem>>, vector<16x32xf32>
    %43 = arith.addf %41, %42 : vector<16x32xf32>
    %c176 = arith.constant 176 : index
    %c0_29 = arith.constant 0 : index
    %44 = vector.load %arg5[%c176, %c0_29] : memref<832x128xf32, #tpu.memory_space<vmem>>, vector<32x96xf32>
    %cst_30 = arith.constant dense<0.000000e+00> : vector<16x96xf32>
    %45 = tpu.matmul %43, %44, %cst_30 {dimension_numbers = #tpu.dot_dimension_numbers<[1], [0], [0], [1], [0, 0, 1, 1], [], []>} : vector<16x32xf32>, vector<32x96xf32>, vector<16x96xf32> -> vector<16x96xf32>
    %c208 = arith.constant 208 : index
    %c0_31 = arith.constant 0 : index
    %46 = vector.load %arg5[%c208, %c0_31] : memref<832x128xf32, #tpu.memory_space<vmem>>, vector<1x96xf32>
    %47 = vector.broadcast %46 : vector<1x96xf32> to vector<16x96xf32>
    %48 = arith.addf %45, %47 : vector<16x96xf32>
    %49 = vector.extract_strided_slice %48 {offsets = [0, 0], sizes = [16, 32], strides = [1, 1]} : vector<16x96xf32> to vector<16x32xf32>
    %50 = vector.extract_strided_slice %48 {offsets = [0, 32], sizes = [16, 32], strides = [1, 1]} : vector<16x96xf32> to vector<16x32xf32>
    %51 = vector.extract_strided_slice %48 {offsets = [0, 64], sizes = [16, 32], strides = [1, 1]} : vector<16x96xf32> to vector<16x32xf32>
    %c216 = arith.constant 216 : index
    %c0_32 = arith.constant 0 : index
    %52 = vector.load %arg5[%c216, %c0_32] : memref<832x128xf32, #tpu.memory_space<vmem>>, vector<32x32xf32>
    %c248 = arith.constant 248 : index
    %c0_33 = arith.constant 0 : index
    %53 = vector.load %arg5[%c248, %c0_33] : memref<832x128xf32, #tpu.memory_space<vmem>>, vector<1x32xf32>
    %cst_34 = arith.constant 0.000000e+00 : f32
    %54 = vector.broadcast %cst_34 : f32 to vector<16x32xf32>
    %55 = vector.extract_strided_slice %49 {offsets = [0, 0], sizes = [16, 8], strides = [1, 1]} : vector<16x32xf32> to vector<16x8xf32>
    %56 = vector.extract_strided_slice %50 {offsets = [0, 0], sizes = [16, 8], strides = [1, 1]} : vector<16x32xf32> to vector<16x8xf32>
    %cst_35 = arith.constant dense<0.000000e+00> : vector<16x16xf32>
    %57 = tpu.matmul %55, %56, %cst_35 {dimension_numbers = #tpu.dot_dimension_numbers<[1], [1], [0], [0], [0, 0, 1, 0], [], []>} : vector<16x8xf32>, vector<16x8xf32>, vector<16x16xf32> -> vector<16x16xf32>
    %cst_36 = arith.constant 0.353553385 : f32
    %58 = vector.broadcast %cst_36 : f32 to vector<16x16xf32>
    %59 = arith.mulf %57, %58 : vector<16x16xf32>
    %cst_37 = arith.constant dense<0xFF800000> : vector<16xf32>
    %60 = vector.multi_reduction <maximumf>, %59, %cst_37 [1] : vector<16x16xf32> to vector<16xf32>
    %61 = vector.shape_cast %60 : vector<16xf32> to vector<16x1xf32>
    %62 = vector.broadcast %61 : vector<16x1xf32> to vector<16x16xf32>
    %63 = arith.subf %59, %62 : vector<16x16xf32>
    %64 = math.exp %63 : vector<16x16xf32>
    %cst_38 = arith.constant dense<0.000000e+00> : vector<16xf32>
    %65 = vector.multi_reduction <add>, %64, %cst_38 [1] : vector<16x16xf32> to vector<16xf32>
    %66 = vector.shape_cast %65 : vector<16xf32> to vector<16x1xf32>
    %67 = vector.broadcast %66 : vector<16x1xf32> to vector<16x16xf32>
    %68 = arith.divf %64, %67 : vector<16x16xf32>
    %69 = vector.extract_strided_slice %51 {offsets = [0, 0], sizes = [16, 8], strides = [1, 1]} : vector<16x32xf32> to vector<16x8xf32>
    %cst_39 = arith.constant dense<0.000000e+00> : vector<16x8xf32>
    %70 = tpu.matmul %68, %69, %cst_39 {dimension_numbers = #tpu.dot_dimension_numbers<[1], [0], [0], [1], [0, 0, 1, 1], [], []>} : vector<16x16xf32>, vector<16x8xf32>, vector<16x8xf32> -> vector<16x8xf32>
    %71 = vector.extract_strided_slice %52 {offsets = [0, 0], sizes = [8, 32], strides = [1, 1]} : vector<32x32xf32> to vector<8x32xf32>
    %cst_40 = arith.constant dense<0.000000e+00> : vector<16x32xf32>
    %72 = tpu.matmul %70, %71, %cst_40 {dimension_numbers = #tpu.dot_dimension_numbers<[1], [0], [0], [1], [0, 0, 1, 1], [], []>} : vector<16x8xf32>, vector<8x32xf32>, vector<16x32xf32> -> vector<16x32xf32>
    %73 = arith.addf %54, %72 : vector<16x32xf32>
    %74 = vector.extract_strided_slice %49 {offsets = [0, 8], sizes = [16, 8], strides = [1, 1]} : vector<16x32xf32> to vector<16x8xf32>
    %75 = vector.extract_strided_slice %50 {offsets = [0, 8], sizes = [16, 8], strides = [1, 1]} : vector<16x32xf32> to vector<16x8xf32>
    %cst_41 = arith.constant dense<0.000000e+00> : vector<16x16xf32>
    %76 = tpu.matmul %74, %75, %cst_41 {dimension_numbers = #tpu.dot_dimension_numbers<[1], [1], [0], [0], [0, 0, 1, 0], [], []>} : vector<16x8xf32>, vector<16x8xf32>, vector<16x16xf32> -> vector<16x16xf32>
    %cst_42 = arith.constant 0.353553385 : f32
    %77 = vector.broadcast %cst_42 : f32 to vector<16x16xf32>
    %78 = arith.mulf %76, %77 : vector<16x16xf32>
    %cst_43 = arith.constant dense<0xFF800000> : vector<16xf32>
    %79 = vector.multi_reduction <maximumf>, %78, %cst_43 [1] : vector<16x16xf32> to vector<16xf32>
    %80 = vector.shape_cast %79 : vector<16xf32> to vector<16x1xf32>
    %81 = vector.broadcast %80 : vector<16x1xf32> to vector<16x16xf32>
    %82 = arith.subf %78, %81 : vector<16x16xf32>
    %83 = math.exp %82 : vector<16x16xf32>
    %cst_44 = arith.constant dense<0.000000e+00> : vector<16xf32>
    %84 = vector.multi_reduction <add>, %83, %cst_44 [1] : vector<16x16xf32> to vector<16xf32>
    %85 = vector.shape_cast %84 : vector<16xf32> to vector<16x1xf32>
    %86 = vector.broadcast %85 : vector<16x1xf32> to vector<16x16xf32>
    %87 = arith.divf %83, %86 : vector<16x16xf32>
    %88 = vector.extract_strided_slice %51 {offsets = [0, 8], sizes = [16, 8], strides = [1, 1]} : vector<16x32xf32> to vector<16x8xf32>
    %cst_45 = arith.constant dense<0.000000e+00> : vector<16x8xf32>
    %89 = tpu.matmul %87, %88, %cst_45 {dimension_numbers = #tpu.dot_dimension_numbers<[1], [0], [0], [1], [0, 0, 1, 1], [], []>} : vector<16x16xf32>, vector<16x8xf32>, vector<16x8xf32> -> vector<16x8xf32>
    %90 = vector.extract_strided_slice %52 {offsets = [8, 0], sizes = [8, 32], strides = [1, 1]} : vector<32x32xf32> to vector<8x32xf32>
    %cst_46 = arith.constant dense<0.000000e+00> : vector<16x32xf32>
    %91 = tpu.matmul %89, %90, %cst_46 {dimension_numbers = #tpu.dot_dimension_numbers<[1], [0], [0], [1], [0, 0, 1, 1], [], []>} : vector<16x8xf32>, vector<8x32xf32>, vector<16x32xf32> -> vector<16x32xf32>
    %92 = arith.addf %73, %91 : vector<16x32xf32>
    %93 = vector.extract_strided_slice %49 {offsets = [0, 16], sizes = [16, 8], strides = [1, 1]} : vector<16x32xf32> to vector<16x8xf32>
    %94 = vector.extract_strided_slice %50 {offsets = [0, 16], sizes = [16, 8], strides = [1, 1]} : vector<16x32xf32> to vector<16x8xf32>
    %cst_47 = arith.constant dense<0.000000e+00> : vector<16x16xf32>
    %95 = tpu.matmul %93, %94, %cst_47 {dimension_numbers = #tpu.dot_dimension_numbers<[1], [1], [0], [0], [0, 0, 1, 0], [], []>} : vector<16x8xf32>, vector<16x8xf32>, vector<16x16xf32> -> vector<16x16xf32>
    %cst_48 = arith.constant 0.353553385 : f32
    %96 = vector.broadcast %cst_48 : f32 to vector<16x16xf32>
    %97 = arith.mulf %95, %96 : vector<16x16xf32>
    %cst_49 = arith.constant dense<0xFF800000> : vector<16xf32>
    %98 = vector.multi_reduction <maximumf>, %97, %cst_49 [1] : vector<16x16xf32> to vector<16xf32>
    %99 = vector.shape_cast %98 : vector<16xf32> to vector<16x1xf32>
    %100 = vector.broadcast %99 : vector<16x1xf32> to vector<16x16xf32>
    %101 = arith.subf %97, %100 : vector<16x16xf32>
    %102 = math.exp %101 : vector<16x16xf32>
    %cst_50 = arith.constant dense<0.000000e+00> : vector<16xf32>
    %103 = vector.multi_reduction <add>, %102, %cst_50 [1] : vector<16x16xf32> to vector<16xf32>
    %104 = vector.shape_cast %103 : vector<16xf32> to vector<16x1xf32>
    %105 = vector.broadcast %104 : vector<16x1xf32> to vector<16x16xf32>
    %106 = arith.divf %102, %105 : vector<16x16xf32>
    %107 = vector.extract_strided_slice %51 {offsets = [0, 16], sizes = [16, 8], strides = [1, 1]} : vector<16x32xf32> to vector<16x8xf32>
    %cst_51 = arith.constant dense<0.000000e+00> : vector<16x8xf32>
    %108 = tpu.matmul %106, %107, %cst_51 {dimension_numbers = #tpu.dot_dimension_numbers<[1], [0], [0], [1], [0, 0, 1, 1], [], []>} : vector<16x16xf32>, vector<16x8xf32>, vector<16x8xf32> -> vector<16x8xf32>
    %109 = vector.extract_strided_slice %52 {offsets = [16, 0], sizes = [8, 32], strides = [1, 1]} : vector<32x32xf32> to vector<8x32xf32>
    %cst_52 = arith.constant dense<0.000000e+00> : vector<16x32xf32>
    %110 = tpu.matmul %108, %109, %cst_52 {dimension_numbers = #tpu.dot_dimension_numbers<[1], [0], [0], [1], [0, 0, 1, 1], [], []>} : vector<16x8xf32>, vector<8x32xf32>, vector<16x32xf32> -> vector<16x32xf32>
    %111 = arith.addf %92, %110 : vector<16x32xf32>
    %112 = vector.extract_strided_slice %49 {offsets = [0, 24], sizes = [16, 8], strides = [1, 1]} : vector<16x32xf32> to vector<16x8xf32>
    %113 = vector.extract_strided_slice %50 {offsets = [0, 24], sizes = [16, 8], strides = [1, 1]} : vector<16x32xf32> to vector<16x8xf32>
    %cst_53 = arith.constant dense<0.000000e+00> : vector<16x16xf32>
    %114 = tpu.matmul %112, %113, %cst_53 {dimension_numbers = #tpu.dot_dimension_numbers<[1], [1], [0], [0], [0, 0, 1, 0], [], []>} : vector<16x8xf32>, vector<16x8xf32>, vector<16x16xf32> -> vector<16x16xf32>
    %cst_54 = arith.constant 0.353553385 : f32
    %115 = vector.broadcast %cst_54 : f32 to vector<16x16xf32>
    %116 = arith.mulf %114, %115 : vector<16x16xf32>
    %cst_55 = arith.constant dense<0xFF800000> : vector<16xf32>
    %117 = vector.multi_reduction <maximumf>, %116, %cst_55 [1] : vector<16x16xf32> to vector<16xf32>
    %118 = vector.shape_cast %117 : vector<16xf32> to vector<16x1xf32>
    %119 = vector.broadcast %118 : vector<16x1xf32> to vector<16x16xf32>
    %120 = arith.subf %116, %119 : vector<16x16xf32>
    %121 = math.exp %120 : vector<16x16xf32>
    %cst_56 = arith.constant dense<0.000000e+00> : vector<16xf32>
    %122 = vector.multi_reduction <add>, %121, %cst_56 [1] : vector<16x16xf32> to vector<16xf32>
    %123 = vector.shape_cast %122 : vector<16xf32> to vector<16x1xf32>
    %124 = vector.broadcast %123 : vector<16x1xf32> to vector<16x16xf32>
    %125 = arith.divf %121, %124 : vector<16x16xf32>
    %126 = vector.extract_strided_slice %51 {offsets = [0, 24], sizes = [16, 8], strides = [1, 1]} : vector<16x32xf32> to vector<16x8xf32>
    %cst_57 = arith.constant dense<0.000000e+00> : vector<16x8xf32>
    %127 = tpu.matmul %125, %126, %cst_57 {dimension_numbers = #tpu.dot_dimension_numbers<[1], [0], [0], [1], [0, 0, 1, 1], [], []>} : vector<16x16xf32>, vector<16x8xf32>, vector<16x8xf32> -> vector<16x8xf32>
    %128 = vector.extract_strided_slice %52 {offsets = [24, 0], sizes = [8, 32], strides = [1, 1]} : vector<32x32xf32> to vector<8x32xf32>
    %cst_58 = arith.constant dense<0.000000e+00> : vector<16x32xf32>
    %129 = tpu.matmul %127, %128, %cst_58 {dimension_numbers = #tpu.dot_dimension_numbers<[1], [0], [0], [1], [0, 0, 1, 1], [], []>} : vector<16x8xf32>, vector<8x32xf32>, vector<16x32xf32> -> vector<16x32xf32>
    %130 = arith.addf %111, %129 : vector<16x32xf32>
    %131 = vector.broadcast %53 : vector<1x32xf32> to vector<16x32xf32>
    %132 = arith.addf %130, %131 : vector<16x32xf32>
    %133 = arith.addf %43, %132 : vector<16x32xf32>
    %c256 = arith.constant 256 : index
    %c0_59 = arith.constant 0 : index
    %134 = vector.load %arg5[%c256, %c0_59] : memref<832x128xf32, #tpu.memory_space<vmem>>, vector<1x32xf32>
    %c264 = arith.constant 264 : index
    %c0_60 = arith.constant 0 : index
    %135 = vector.load %arg5[%c264, %c0_60] : memref<832x128xf32, #tpu.memory_space<vmem>>, vector<1x32xf32>
    %cst_61 = arith.constant dense<0.000000e+00> : vector<16xf32>
    %136 = vector.multi_reduction <add>, %133, %cst_61 [1] : vector<16x32xf32> to vector<16xf32>
    %137 = vector.shape_cast %136 : vector<16xf32> to vector<16x1xf32>
    %cst_62 = arith.constant 3.200000e+01 : f32
    %138 = vector.broadcast %cst_62 : f32 to vector<16x1xf32>
    %139 = arith.divf %137, %138 : vector<16x1xf32>
    %140 = vector.broadcast %139 : vector<16x1xf32> to vector<16x32xf32>
    %141 = arith.subf %133, %140 : vector<16x32xf32>
    %142 = arith.mulf %141, %141 : vector<16x32xf32>
    %cst_63 = arith.constant dense<0.000000e+00> : vector<16xf32>
    %143 = vector.multi_reduction <add>, %142, %cst_63 [1] : vector<16x32xf32> to vector<16xf32>
    %144 = vector.shape_cast %143 : vector<16xf32> to vector<16x1xf32>
    %cst_64 = arith.constant 3.200000e+01 : f32
    %145 = vector.broadcast %cst_64 : f32 to vector<16x1xf32>
    %146 = arith.divf %144, %145 : vector<16x1xf32>
    %147 = vector.broadcast %139 : vector<16x1xf32> to vector<16x32xf32>
    %148 = arith.subf %133, %147 : vector<16x32xf32>
    %cst_65 = arith.constant 9.99999974E-6 : f32
    %149 = vector.broadcast %cst_65 : f32 to vector<16x1xf32>
    %150 = arith.addf %146, %149 : vector<16x1xf32>
    %151 = math.rsqrt %150 : vector<16x1xf32>
    %152 = vector.broadcast %151 : vector<16x1xf32> to vector<16x32xf32>
    %153 = arith.mulf %148, %152 : vector<16x32xf32>
    %154 = vector.broadcast %134 : vector<1x32xf32> to vector<16x32xf32>
    %155 = arith.mulf %153, %154 : vector<16x32xf32>
    %156 = vector.broadcast %135 : vector<1x32xf32> to vector<16x32xf32>
    %157 = arith.addf %155, %156 : vector<16x32xf32>
    %c272 = arith.constant 272 : index
    %c0_66 = arith.constant 0 : index
    %158 = vector.load %arg5[%c272, %c0_66] : memref<832x128xf32, #tpu.memory_space<vmem>>, vector<32x64xf32>
    %cst_67 = arith.constant dense<0.000000e+00> : vector<16x64xf32>
    %159 = tpu.matmul %157, %158, %cst_67 {dimension_numbers = #tpu.dot_dimension_numbers<[1], [0], [0], [1], [0, 0, 1, 1], [], []>} : vector<16x32xf32>, vector<32x64xf32>, vector<16x64xf32> -> vector<16x64xf32>
    %c304 = arith.constant 304 : index
    %c0_68 = arith.constant 0 : index
    %160 = vector.load %arg5[%c304, %c0_68] : memref<832x128xf32, #tpu.memory_space<vmem>>, vector<1x64xf32>
    %161 = vector.broadcast %160 : vector<1x64xf32> to vector<16x64xf32>
    %162 = arith.addf %159, %161 : vector<16x64xf32>
    %cst_69 = arith.constant 0.000000e+00 : f32
    %163 = vector.broadcast %cst_69 : f32 to vector<16x64xf32>
    %164 = arith.maximumf %162, %163 : vector<16x64xf32>
    %c312 = arith.constant 312 : index
    %c0_70 = arith.constant 0 : index
    %165 = vector.load %arg5[%c312, %c0_70] : memref<832x128xf32, #tpu.memory_space<vmem>>, vector<64x32xf32>
    %cst_71 = arith.constant dense<0.000000e+00> : vector<16x32xf32>
    %166 = tpu.matmul %164, %165, %cst_71 {dimension_numbers = #tpu.dot_dimension_numbers<[1], [0], [0], [1], [0, 0, 1, 1], [], []>} : vector<16x64xf32>, vector<64x32xf32>, vector<16x32xf32> -> vector<16x32xf32>
    %c376 = arith.constant 376 : index
    %c0_72 = arith.constant 0 : index
    %167 = vector.load %arg5[%c376, %c0_72] : memref<832x128xf32, #tpu.memory_space<vmem>>, vector<1x32xf32>
    %168 = vector.broadcast %167 : vector<1x32xf32> to vector<16x32xf32>
    %169 = arith.addf %166, %168 : vector<16x32xf32>
    %170 = arith.addf %157, %169 : vector<16x32xf32>
    %c384 = arith.constant 384 : index
    %c0_73 = arith.constant 0 : index
    %171 = vector.load %arg5[%c384, %c0_73] : memref<832x128xf32, #tpu.memory_space<vmem>>, vector<1x32xf32>
    %c392 = arith.constant 392 : index
    %c0_74 = arith.constant 0 : index
    %172 = vector.load %arg5[%c392, %c0_74] : memref<832x128xf32, #tpu.memory_space<vmem>>, vector<1x32xf32>
    %cst_75 = arith.constant dense<0.000000e+00> : vector<16xf32>
    %173 = vector.multi_reduction <add>, %170, %cst_75 [1] : vector<16x32xf32> to vector<16xf32>
    %174 = vector.shape_cast %173 : vector<16xf32> to vector<16x1xf32>
    %cst_76 = arith.constant 3.200000e+01 : f32
    %175 = vector.broadcast %cst_76 : f32 to vector<16x1xf32>
    %176 = arith.divf %174, %175 : vector<16x1xf32>
    %177 = vector.broadcast %176 : vector<16x1xf32> to vector<16x32xf32>
    %178 = arith.subf %170, %177 : vector<16x32xf32>
    %179 = arith.mulf %178, %178 : vector<16x32xf32>
    %cst_77 = arith.constant dense<0.000000e+00> : vector<16xf32>
    %180 = vector.multi_reduction <add>, %179, %cst_77 [1] : vector<16x32xf32> to vector<16xf32>
    %181 = vector.shape_cast %180 : vector<16xf32> to vector<16x1xf32>
    %cst_78 = arith.constant 3.200000e+01 : f32
    %182 = vector.broadcast %cst_78 : f32 to vector<16x1xf32>
    %183 = arith.divf %181, %182 : vector<16x1xf32>
    %184 = vector.broadcast %176 : vector<16x1xf32> to vector<16x32xf32>
    %185 = arith.subf %170, %184 : vector<16x32xf32>
    %cst_79 = arith.constant 9.99999974E-6 : f32
    %186 = vector.broadcast %cst_79 : f32 to vector<16x1xf32>
    %187 = arith.addf %183, %186 : vector<16x1xf32>
    %188 = math.rsqrt %187 : vector<16x1xf32>
    %189 = vector.broadcast %188 : vector<16x1xf32> to vector<16x32xf32>
    %190 = arith.mulf %185, %189 : vector<16x32xf32>
    %191 = vector.broadcast %171 : vector<1x32xf32> to vector<16x32xf32>
    %192 = arith.mulf %190, %191 : vector<16x32xf32>
    %193 = vector.broadcast %172 : vector<1x32xf32> to vector<16x32xf32>
    %194 = arith.addf %192, %193 : vector<16x32xf32>
    %c400 = arith.constant 400 : index
    %c0_80 = arith.constant 0 : index
    %195 = vector.load %arg5[%c400, %c0_80] : memref<832x128xf32, #tpu.memory_space<vmem>>, vector<1x32xf32>
    %c408 = arith.constant 408 : index
    %c0_81 = arith.constant 0 : index
    %196 = vector.load %arg5[%c408, %c0_81] : memref<832x128xf32, #tpu.memory_space<vmem>>, vector<1x32xf32>
    %cst_82 = arith.constant dense<0.000000e+00> : vector<16xf32>
    %197 = vector.multi_reduction <add>, %194, %cst_82 [1] : vector<16x32xf32> to vector<16xf32>
    %198 = vector.shape_cast %197 : vector<16xf32> to vector<16x1xf32>
    %cst_83 = arith.constant 3.200000e+01 : f32
    %199 = vector.broadcast %cst_83 : f32 to vector<16x1xf32>
    %200 = arith.divf %198, %199 : vector<16x1xf32>
    %201 = vector.broadcast %200 : vector<16x1xf32> to vector<16x32xf32>
    %202 = arith.subf %194, %201 : vector<16x32xf32>
    %203 = arith.mulf %202, %202 : vector<16x32xf32>
    %cst_84 = arith.constant dense<0.000000e+00> : vector<16xf32>
    %204 = vector.multi_reduction <add>, %203, %cst_84 [1] : vector<16x32xf32> to vector<16xf32>
    %205 = vector.shape_cast %204 : vector<16xf32> to vector<16x1xf32>
    %cst_85 = arith.constant 3.200000e+01 : f32
    %206 = vector.broadcast %cst_85 : f32 to vector<16x1xf32>
    %207 = arith.divf %205, %206 : vector<16x1xf32>
    %208 = vector.broadcast %200 : vector<16x1xf32> to vector<16x32xf32>
    %209 = arith.subf %194, %208 : vector<16x32xf32>
    %cst_86 = arith.constant 9.99999974E-6 : f32
    %210 = vector.broadcast %cst_86 : f32 to vector<16x1xf32>
    %211 = arith.addf %207, %210 : vector<16x1xf32>
    %212 = math.rsqrt %211 : vector<16x1xf32>
    %213 = vector.broadcast %212 : vector<16x1xf32> to vector<16x32xf32>
    %214 = arith.mulf %209, %213 : vector<16x32xf32>
    %215 = vector.broadcast %195 : vector<1x32xf32> to vector<16x32xf32>
    %216 = arith.mulf %214, %215 : vector<16x32xf32>
    %217 = vector.broadcast %196 : vector<1x32xf32> to vector<16x32xf32>
    %218 = arith.addf %216, %217 : vector<16x32xf32>
    %c64 = arith.constant 64 : index
    %c0_87 = arith.constant 0 : index
    %219 = vector.load %arg5[%c64, %c0_87] : memref<832x128xf32, #tpu.memory_space<vmem>>, vector<16x16xf32>
    %cst_88 = arith.constant dense<0.000000e+00> : vector<16x7xf32>
    %220 = tpu.matmul %219, %5, %cst_88 {dimension_numbers = #tpu.dot_dimension_numbers<[1], [0], [0], [1], [0, 0, 1, 1], [], []>} : vector<16x16xf32>, vector<16x7xf32>, vector<16x7xf32> -> vector<16x7xf32>
    %c80 = arith.constant 80 : index
    %c0_89 = arith.constant 0 : index
    %221 = vector.load %arg5[%c80, %c0_89] : memref<832x128xf32, #tpu.memory_space<vmem>>, vector<16x16xf32>
    %cst_90 = arith.constant dense<0.000000e+00> : vector<16x7xf32>
    %222 = tpu.matmul %221, %5, %cst_90 {dimension_numbers = #tpu.dot_dimension_numbers<[1], [0], [0], [1], [0, 0, 1, 1], [], []>} : vector<16x16xf32>, vector<16x7xf32>, vector<16x7xf32> -> vector<16x7xf32>
    %c144 = arith.constant 144 : index
    %c0_91 = arith.constant 0 : index
    %223 = vector.load %arg5[%c144, %c0_91] : memref<832x128xf32, #tpu.memory_space<vmem>>, vector<7x32xf32>
    %cst_92 = arith.constant dense<0.000000e+00> : vector<16x32xf32>
    %224 = tpu.matmul %220, %223, %cst_92 {dimension_numbers = #tpu.dot_dimension_numbers<[1], [0], [0], [1], [0, 0, 1, 1], [], []>} : vector<16x7xf32>, vector<7x32xf32>, vector<16x32xf32> -> vector<16x32xf32>
    %c152 = arith.constant 152 : index
    %c0_93 = arith.constant 0 : index
    %225 = vector.load %arg5[%c152, %c0_93] : memref<832x128xf32, #tpu.memory_space<vmem>>, vector<7x32xf32>
    %cst_94 = arith.constant dense<0.000000e+00> : vector<16x32xf32>
    %226 = tpu.matmul %5, %225, %cst_94 {dimension_numbers = #tpu.dot_dimension_numbers<[1], [0], [0], [1], [0, 0, 1, 1], [], []>} : vector<16x7xf32>, vector<7x32xf32>, vector<16x32xf32> -> vector<16x32xf32>
    %227 = arith.addf %224, %226 : vector<16x32xf32>
    %c160 = arith.constant 160 : index
    %c0_95 = arith.constant 0 : index
    %228 = vector.load %arg5[%c160, %c0_95] : memref<832x128xf32, #tpu.memory_space<vmem>>, vector<7x32xf32>
    %cst_96 = arith.constant dense<0.000000e+00> : vector<16x32xf32>
    %229 = tpu.matmul %222, %228, %cst_96 {dimension_numbers = #tpu.dot_dimension_numbers<[1], [0], [0], [1], [0, 0, 1, 1], [], []>} : vector<16x7xf32>, vector<7x32xf32>, vector<16x32xf32> -> vector<16x32xf32>
    %230 = arith.addf %227, %229 : vector<16x32xf32>
    %c168 = arith.constant 168 : index
    %c0_97 = arith.constant 0 : index
    %231 = vector.load %arg5[%c168, %c0_97] : memref<832x128xf32, #tpu.memory_space<vmem>>, vector<4x32xf32>
    %cst_98 = arith.constant dense<0.000000e+00> : vector<16x32xf32>
    %232 = tpu.matmul %7, %231, %cst_98 {dimension_numbers = #tpu.dot_dimension_numbers<[1], [0], [0], [1], [0, 0, 1, 1], [], []>} : vector<16x4xf32>, vector<4x32xf32>, vector<16x32xf32> -> vector<16x32xf32>
    %233 = arith.addf %230, %232 : vector<16x32xf32>
    %c0_99 = arith.constant 0 : index
    %c0_100 = arith.constant 0 : index
    %234 = vector.load %arg5[%c0_99, %c0_100] : memref<832x128xf32, #tpu.memory_space<vmem>>, vector<16x32xf32>
    %235 = arith.addf %233, %234 : vector<16x32xf32>
    %c16 = arith.constant 16 : index
    %c0_101 = arith.constant 0 : index
    %236 = vector.load %arg5[%c16, %c0_101] : memref<832x128xf32, #tpu.memory_space<vmem>>, vector<16x16xf32>
    %c416 = arith.constant 416 : index
    %c0_102 = arith.constant 0 : index
    %237 = vector.load %arg5[%c416, %c0_102] : memref<832x128xf32, #tpu.memory_space<vmem>>, vector<32x96xf32>
    %cst_103 = arith.constant dense<0.000000e+00> : vector<16x96xf32>
    %238 = tpu.matmul %235, %237, %cst_103 {dimension_numbers = #tpu.dot_dimension_numbers<[1], [0], [0], [1], [0, 0, 1, 1], [], []>} : vector<16x32xf32>, vector<32x96xf32>, vector<16x96xf32> -> vector<16x96xf32>
    %c448 = arith.constant 448 : index
    %c0_104 = arith.constant 0 : index
    %239 = vector.load %arg5[%c448, %c0_104] : memref<832x128xf32, #tpu.memory_space<vmem>>, vector<1x96xf32>
    %240 = vector.broadcast %239 : vector<1x96xf32> to vector<16x96xf32>
    %241 = arith.addf %238, %240 : vector<16x96xf32>
    %242 = vector.extract_strided_slice %241 {offsets = [0, 0], sizes = [16, 32], strides = [1, 1]} : vector<16x96xf32> to vector<16x32xf32>
    %243 = vector.extract_strided_slice %241 {offsets = [0, 32], sizes = [16, 32], strides = [1, 1]} : vector<16x96xf32> to vector<16x32xf32>
    %244 = vector.extract_strided_slice %241 {offsets = [0, 64], sizes = [16, 32], strides = [1, 1]} : vector<16x96xf32> to vector<16x32xf32>
    %c456 = arith.constant 456 : index
    %c0_105 = arith.constant 0 : index
    %245 = vector.load %arg5[%c456, %c0_105] : memref<832x128xf32, #tpu.memory_space<vmem>>, vector<32x32xf32>
    %c488 = arith.constant 488 : index
    %c0_106 = arith.constant 0 : index
    %246 = vector.load %arg5[%c488, %c0_106] : memref<832x128xf32, #tpu.memory_space<vmem>>, vector<1x32xf32>
    %cst_107 = arith.constant 0.000000e+00 : f32
    %247 = vector.broadcast %cst_107 : f32 to vector<16x32xf32>
    %248 = vector.extract_strided_slice %242 {offsets = [0, 0], sizes = [16, 8], strides = [1, 1]} : vector<16x32xf32> to vector<16x8xf32>
    %249 = vector.extract_strided_slice %243 {offsets = [0, 0], sizes = [16, 8], strides = [1, 1]} : vector<16x32xf32> to vector<16x8xf32>
    %cst_108 = arith.constant dense<0.000000e+00> : vector<16x16xf32>
    %250 = tpu.matmul %248, %249, %cst_108 {dimension_numbers = #tpu.dot_dimension_numbers<[1], [1], [0], [0], [0, 0, 1, 0], [], []>} : vector<16x8xf32>, vector<16x8xf32>, vector<16x16xf32> -> vector<16x16xf32>
    %cst_109 = arith.constant 0.353553385 : f32
    %251 = vector.broadcast %cst_109 : f32 to vector<16x16xf32>
    %252 = arith.mulf %250, %251 : vector<16x16xf32>
    %253 = arith.addf %252, %236 : vector<16x16xf32>
    %cst_110 = arith.constant dense<0xFF800000> : vector<16xf32>
    %254 = vector.multi_reduction <maximumf>, %253, %cst_110 [1] : vector<16x16xf32> to vector<16xf32>
    %255 = vector.shape_cast %254 : vector<16xf32> to vector<16x1xf32>
    %256 = vector.broadcast %255 : vector<16x1xf32> to vector<16x16xf32>
    %257 = arith.subf %253, %256 : vector<16x16xf32>
    %258 = math.exp %257 : vector<16x16xf32>
    %cst_111 = arith.constant dense<0.000000e+00> : vector<16xf32>
    %259 = vector.multi_reduction <add>, %258, %cst_111 [1] : vector<16x16xf32> to vector<16xf32>
    %260 = vector.shape_cast %259 : vector<16xf32> to vector<16x1xf32>
    %261 = vector.broadcast %260 : vector<16x1xf32> to vector<16x16xf32>
    %262 = arith.divf %258, %261 : vector<16x16xf32>
    %263 = vector.extract_strided_slice %244 {offsets = [0, 0], sizes = [16, 8], strides = [1, 1]} : vector<16x32xf32> to vector<16x8xf32>
    %cst_112 = arith.constant dense<0.000000e+00> : vector<16x8xf32>
    %264 = tpu.matmul %262, %263, %cst_112 {dimension_numbers = #tpu.dot_dimension_numbers<[1], [0], [0], [1], [0, 0, 1, 1], [], []>} : vector<16x16xf32>, vector<16x8xf32>, vector<16x8xf32> -> vector<16x8xf32>
    %265 = vector.extract_strided_slice %245 {offsets = [0, 0], sizes = [8, 32], strides = [1, 1]} : vector<32x32xf32> to vector<8x32xf32>
    %cst_113 = arith.constant dense<0.000000e+00> : vector<16x32xf32>
    %266 = tpu.matmul %264, %265, %cst_113 {dimension_numbers = #tpu.dot_dimension_numbers<[1], [0], [0], [1], [0, 0, 1, 1], [], []>} : vector<16x8xf32>, vector<8x32xf32>, vector<16x32xf32> -> vector<16x32xf32>
    %267 = arith.addf %247, %266 : vector<16x32xf32>
    %268 = vector.extract_strided_slice %242 {offsets = [0, 8], sizes = [16, 8], strides = [1, 1]} : vector<16x32xf32> to vector<16x8xf32>
    %269 = vector.extract_strided_slice %243 {offsets = [0, 8], sizes = [16, 8], strides = [1, 1]} : vector<16x32xf32> to vector<16x8xf32>
    %cst_114 = arith.constant dense<0.000000e+00> : vector<16x16xf32>
    %270 = tpu.matmul %268, %269, %cst_114 {dimension_numbers = #tpu.dot_dimension_numbers<[1], [1], [0], [0], [0, 0, 1, 0], [], []>} : vector<16x8xf32>, vector<16x8xf32>, vector<16x16xf32> -> vector<16x16xf32>
    %cst_115 = arith.constant 0.353553385 : f32
    %271 = vector.broadcast %cst_115 : f32 to vector<16x16xf32>
    %272 = arith.mulf %270, %271 : vector<16x16xf32>
    %273 = arith.addf %272, %236 : vector<16x16xf32>
    %cst_116 = arith.constant dense<0xFF800000> : vector<16xf32>
    %274 = vector.multi_reduction <maximumf>, %273, %cst_116 [1] : vector<16x16xf32> to vector<16xf32>
    %275 = vector.shape_cast %274 : vector<16xf32> to vector<16x1xf32>
    %276 = vector.broadcast %275 : vector<16x1xf32> to vector<16x16xf32>
    %277 = arith.subf %273, %276 : vector<16x16xf32>
    %278 = math.exp %277 : vector<16x16xf32>
    %cst_117 = arith.constant dense<0.000000e+00> : vector<16xf32>
    %279 = vector.multi_reduction <add>, %278, %cst_117 [1] : vector<16x16xf32> to vector<16xf32>
    %280 = vector.shape_cast %279 : vector<16xf32> to vector<16x1xf32>
    %281 = vector.broadcast %280 : vector<16x1xf32> to vector<16x16xf32>
    %282 = arith.divf %278, %281 : vector<16x16xf32>
    %283 = vector.extract_strided_slice %244 {offsets = [0, 8], sizes = [16, 8], strides = [1, 1]} : vector<16x32xf32> to vector<16x8xf32>
    %cst_118 = arith.constant dense<0.000000e+00> : vector<16x8xf32>
    %284 = tpu.matmul %282, %283, %cst_118 {dimension_numbers = #tpu.dot_dimension_numbers<[1], [0], [0], [1], [0, 0, 1, 1], [], []>} : vector<16x16xf32>, vector<16x8xf32>, vector<16x8xf32> -> vector<16x8xf32>
    %285 = vector.extract_strided_slice %245 {offsets = [8, 0], sizes = [8, 32], strides = [1, 1]} : vector<32x32xf32> to vector<8x32xf32>
    %cst_119 = arith.constant dense<0.000000e+00> : vector<16x32xf32>
    %286 = tpu.matmul %284, %285, %cst_119 {dimension_numbers = #tpu.dot_dimension_numbers<[1], [0], [0], [1], [0, 0, 1, 1], [], []>} : vector<16x8xf32>, vector<8x32xf32>, vector<16x32xf32> -> vector<16x32xf32>
    %287 = arith.addf %267, %286 : vector<16x32xf32>
    %288 = vector.extract_strided_slice %242 {offsets = [0, 16], sizes = [16, 8], strides = [1, 1]} : vector<16x32xf32> to vector<16x8xf32>
    %289 = vector.extract_strided_slice %243 {offsets = [0, 16], sizes = [16, 8], strides = [1, 1]} : vector<16x32xf32> to vector<16x8xf32>
    %cst_120 = arith.constant dense<0.000000e+00> : vector<16x16xf32>
    %290 = tpu.matmul %288, %289, %cst_120 {dimension_numbers = #tpu.dot_dimension_numbers<[1], [1], [0], [0], [0, 0, 1, 0], [], []>} : vector<16x8xf32>, vector<16x8xf32>, vector<16x16xf32> -> vector<16x16xf32>
    %cst_121 = arith.constant 0.353553385 : f32
    %291 = vector.broadcast %cst_121 : f32 to vector<16x16xf32>
    %292 = arith.mulf %290, %291 : vector<16x16xf32>
    %293 = arith.addf %292, %236 : vector<16x16xf32>
    %cst_122 = arith.constant dense<0xFF800000> : vector<16xf32>
    %294 = vector.multi_reduction <maximumf>, %293, %cst_122 [1] : vector<16x16xf32> to vector<16xf32>
    %295 = vector.shape_cast %294 : vector<16xf32> to vector<16x1xf32>
    %296 = vector.broadcast %295 : vector<16x1xf32> to vector<16x16xf32>
    %297 = arith.subf %293, %296 : vector<16x16xf32>
    %298 = math.exp %297 : vector<16x16xf32>
    %cst_123 = arith.constant dense<0.000000e+00> : vector<16xf32>
    %299 = vector.multi_reduction <add>, %298, %cst_123 [1] : vector<16x16xf32> to vector<16xf32>
    %300 = vector.shape_cast %299 : vector<16xf32> to vector<16x1xf32>
    %301 = vector.broadcast %300 : vector<16x1xf32> to vector<16x16xf32>
    %302 = arith.divf %298, %301 : vector<16x16xf32>
    %303 = vector.extract_strided_slice %244 {offsets = [0, 16], sizes = [16, 8], strides = [1, 1]} : vector<16x32xf32> to vector<16x8xf32>
    %cst_124 = arith.constant dense<0.000000e+00> : vector<16x8xf32>
    %304 = tpu.matmul %302, %303, %cst_124 {dimension_numbers = #tpu.dot_dimension_numbers<[1], [0], [0], [1], [0, 0, 1, 1], [], []>} : vector<16x16xf32>, vector<16x8xf32>, vector<16x8xf32> -> vector<16x8xf32>
    %305 = vector.extract_strided_slice %245 {offsets = [16, 0], sizes = [8, 32], strides = [1, 1]} : vector<32x32xf32> to vector<8x32xf32>
    %cst_125 = arith.constant dense<0.000000e+00> : vector<16x32xf32>
    %306 = tpu.matmul %304, %305, %cst_125 {dimension_numbers = #tpu.dot_dimension_numbers<[1], [0], [0], [1], [0, 0, 1, 1], [], []>} : vector<16x8xf32>, vector<8x32xf32>, vector<16x32xf32> -> vector<16x32xf32>
    %307 = arith.addf %287, %306 : vector<16x32xf32>
    %308 = vector.extract_strided_slice %242 {offsets = [0, 24], sizes = [16, 8], strides = [1, 1]} : vector<16x32xf32> to vector<16x8xf32>
    %309 = vector.extract_strided_slice %243 {offsets = [0, 24], sizes = [16, 8], strides = [1, 1]} : vector<16x32xf32> to vector<16x8xf32>
    %cst_126 = arith.constant dense<0.000000e+00> : vector<16x16xf32>
    %310 = tpu.matmul %308, %309, %cst_126 {dimension_numbers = #tpu.dot_dimension_numbers<[1], [1], [0], [0], [0, 0, 1, 0], [], []>} : vector<16x8xf32>, vector<16x8xf32>, vector<16x16xf32> -> vector<16x16xf32>
    %cst_127 = arith.constant 0.353553385 : f32
    %311 = vector.broadcast %cst_127 : f32 to vector<16x16xf32>
    %312 = arith.mulf %310, %311 : vector<16x16xf32>
    %313 = arith.addf %312, %236 : vector<16x16xf32>
    %cst_128 = arith.constant dense<0xFF800000> : vector<16xf32>
    %314 = vector.multi_reduction <maximumf>, %313, %cst_128 [1] : vector<16x16xf32> to vector<16xf32>
    %315 = vector.shape_cast %314 : vector<16xf32> to vector<16x1xf32>
    %316 = vector.broadcast %315 : vector<16x1xf32> to vector<16x16xf32>
    %317 = arith.subf %313, %316 : vector<16x16xf32>
    %318 = math.exp %317 : vector<16x16xf32>
    %cst_129 = arith.constant dense<0.000000e+00> : vector<16xf32>
    %319 = vector.multi_reduction <add>, %318, %cst_129 [1] : vector<16x16xf32> to vector<16xf32>
    %320 = vector.shape_cast %319 : vector<16xf32> to vector<16x1xf32>
    %321 = vector.broadcast %320 : vector<16x1xf32> to vector<16x16xf32>
    %322 = arith.divf %318, %321 : vector<16x16xf32>
    %323 = vector.extract_strided_slice %244 {offsets = [0, 24], sizes = [16, 8], strides = [1, 1]} : vector<16x32xf32> to vector<16x8xf32>
    %cst_130 = arith.constant dense<0.000000e+00> : vector<16x8xf32>
    %324 = tpu.matmul %322, %323, %cst_130 {dimension_numbers = #tpu.dot_dimension_numbers<[1], [0], [0], [1], [0, 0, 1, 1], [], []>} : vector<16x16xf32>, vector<16x8xf32>, vector<16x8xf32> -> vector<16x8xf32>
    %325 = vector.extract_strided_slice %245 {offsets = [24, 0], sizes = [8, 32], strides = [1, 1]} : vector<32x32xf32> to vector<8x32xf32>
    %cst_131 = arith.constant dense<0.000000e+00> : vector<16x32xf32>
    %326 = tpu.matmul %324, %325, %cst_131 {dimension_numbers = #tpu.dot_dimension_numbers<[1], [0], [0], [1], [0, 0, 1, 1], [], []>} : vector<16x8xf32>, vector<8x32xf32>, vector<16x32xf32> -> vector<16x32xf32>
    %327 = arith.addf %307, %326 : vector<16x32xf32>
    %328 = vector.broadcast %246 : vector<1x32xf32> to vector<16x32xf32>
    %329 = arith.addf %327, %328 : vector<16x32xf32>
    %330 = arith.addf %235, %329 : vector<16x32xf32>
    %c496 = arith.constant 496 : index
    %c0_132 = arith.constant 0 : index
    %331 = vector.load %arg5[%c496, %c0_132] : memref<832x128xf32, #tpu.memory_space<vmem>>, vector<1x32xf32>
    %c504 = arith.constant 504 : index
    %c0_133 = arith.constant 0 : index
    %332 = vector.load %arg5[%c504, %c0_133] : memref<832x128xf32, #tpu.memory_space<vmem>>, vector<1x32xf32>
    %cst_134 = arith.constant dense<0.000000e+00> : vector<16xf32>
    %333 = vector.multi_reduction <add>, %330, %cst_134 [1] : vector<16x32xf32> to vector<16xf32>
    %334 = vector.shape_cast %333 : vector<16xf32> to vector<16x1xf32>
    %cst_135 = arith.constant 3.200000e+01 : f32
    %335 = vector.broadcast %cst_135 : f32 to vector<16x1xf32>
    %336 = arith.divf %334, %335 : vector<16x1xf32>
    %337 = vector.broadcast %336 : vector<16x1xf32> to vector<16x32xf32>
    %338 = arith.subf %330, %337 : vector<16x32xf32>
    %339 = arith.mulf %338, %338 : vector<16x32xf32>
    %cst_136 = arith.constant dense<0.000000e+00> : vector<16xf32>
    %340 = vector.multi_reduction <add>, %339, %cst_136 [1] : vector<16x32xf32> to vector<16xf32>
    %341 = vector.shape_cast %340 : vector<16xf32> to vector<16x1xf32>
    %cst_137 = arith.constant 3.200000e+01 : f32
    %342 = vector.broadcast %cst_137 : f32 to vector<16x1xf32>
    %343 = arith.divf %341, %342 : vector<16x1xf32>
    %344 = vector.broadcast %336 : vector<16x1xf32> to vector<16x32xf32>
    %345 = arith.subf %330, %344 : vector<16x32xf32>
    %cst_138 = arith.constant 9.99999974E-6 : f32
    %346 = vector.broadcast %cst_138 : f32 to vector<16x1xf32>
    %347 = arith.addf %343, %346 : vector<16x1xf32>
    %348 = math.rsqrt %347 : vector<16x1xf32>
    %349 = vector.broadcast %348 : vector<16x1xf32> to vector<16x32xf32>
    %350 = arith.mulf %345, %349 : vector<16x32xf32>
    %351 = vector.broadcast %331 : vector<1x32xf32> to vector<16x32xf32>
    %352 = arith.mulf %350, %351 : vector<16x32xf32>
    %353 = vector.broadcast %332 : vector<1x32xf32> to vector<16x32xf32>
    %354 = arith.addf %352, %353 : vector<16x32xf32>
    %c512 = arith.constant 512 : index
    %c0_139 = arith.constant 0 : index
    %355 = vector.load %arg5[%c512, %c0_139] : memref<832x128xf32, #tpu.memory_space<vmem>>, vector<32x32xf32>
    %cst_140 = arith.constant dense<0.000000e+00> : vector<16x32xf32>
    %356 = tpu.matmul %354, %355, %cst_140 {dimension_numbers = #tpu.dot_dimension_numbers<[1], [0], [0], [1], [0, 0, 1, 1], [], []>} : vector<16x32xf32>, vector<32x32xf32>, vector<16x32xf32> -> vector<16x32xf32>
    %c544 = arith.constant 544 : index
    %c0_141 = arith.constant 0 : index
    %357 = vector.load %arg5[%c544, %c0_141] : memref<832x128xf32, #tpu.memory_space<vmem>>, vector<1x32xf32>
    %358 = vector.broadcast %357 : vector<1x32xf32> to vector<16x32xf32>
    %359 = arith.addf %356, %358 : vector<16x32xf32>
    %c552 = arith.constant 552 : index
    %c0_142 = arith.constant 0 : index
    %360 = vector.load %arg5[%c552, %c0_142] : memref<832x128xf32, #tpu.memory_space<vmem>>, vector<32x64xf32>
    %cst_143 = arith.constant dense<0.000000e+00> : vector<16x64xf32>
    %361 = tpu.matmul %218, %360, %cst_143 {dimension_numbers = #tpu.dot_dimension_numbers<[1], [0], [0], [1], [0, 0, 1, 1], [], []>} : vector<16x32xf32>, vector<32x64xf32>, vector<16x64xf32> -> vector<16x64xf32>
    %c584 = arith.constant 584 : index
    %c0_144 = arith.constant 0 : index
    %362 = vector.load %arg5[%c584, %c0_144] : memref<832x128xf32, #tpu.memory_space<vmem>>, vector<1x64xf32>
    %363 = vector.broadcast %362 : vector<1x64xf32> to vector<16x64xf32>
    %364 = arith.addf %361, %363 : vector<16x64xf32>
    %365 = vector.extract_strided_slice %364 {offsets = [0, 0], sizes = [16, 32], strides = [1, 1]} : vector<16x64xf32> to vector<16x32xf32>
    %366 = vector.extract_strided_slice %364 {offsets = [0, 32], sizes = [16, 32], strides = [1, 1]} : vector<16x64xf32> to vector<16x32xf32>
    %c592 = arith.constant 592 : index
    %c0_145 = arith.constant 0 : index
    %367 = vector.load %arg5[%c592, %c0_145] : memref<832x128xf32, #tpu.memory_space<vmem>>, vector<32x32xf32>
    %c624 = arith.constant 624 : index
    %c0_146 = arith.constant 0 : index
    %368 = vector.load %arg5[%c624, %c0_146] : memref<832x128xf32, #tpu.memory_space<vmem>>, vector<1x32xf32>
    %cst_147 = arith.constant 0.000000e+00 : f32
    %369 = vector.broadcast %cst_147 : f32 to vector<16x32xf32>
    %370 = vector.extract_strided_slice %359 {offsets = [0, 0], sizes = [16, 8], strides = [1, 1]} : vector<16x32xf32> to vector<16x8xf32>
    %371 = vector.extract_strided_slice %365 {offsets = [0, 0], sizes = [16, 8], strides = [1, 1]} : vector<16x32xf32> to vector<16x8xf32>
    %cst_148 = arith.constant dense<0.000000e+00> : vector<16x16xf32>
    %372 = tpu.matmul %370, %371, %cst_148 {dimension_numbers = #tpu.dot_dimension_numbers<[1], [1], [0], [0], [0, 0, 1, 0], [], []>} : vector<16x8xf32>, vector<16x8xf32>, vector<16x16xf32> -> vector<16x16xf32>
    %cst_149 = arith.constant 0.353553385 : f32
    %373 = vector.broadcast %cst_149 : f32 to vector<16x16xf32>
    %374 = arith.mulf %372, %373 : vector<16x16xf32>
    %cst_150 = arith.constant dense<0xFF800000> : vector<16xf32>
    %375 = vector.multi_reduction <maximumf>, %374, %cst_150 [1] : vector<16x16xf32> to vector<16xf32>
    %376 = vector.shape_cast %375 : vector<16xf32> to vector<16x1xf32>
    %377 = vector.broadcast %376 : vector<16x1xf32> to vector<16x16xf32>
    %378 = arith.subf %374, %377 : vector<16x16xf32>
    %379 = math.exp %378 : vector<16x16xf32>
    %cst_151 = arith.constant dense<0.000000e+00> : vector<16xf32>
    %380 = vector.multi_reduction <add>, %379, %cst_151 [1] : vector<16x16xf32> to vector<16xf32>
    %381 = vector.shape_cast %380 : vector<16xf32> to vector<16x1xf32>
    %382 = vector.broadcast %381 : vector<16x1xf32> to vector<16x16xf32>
    %383 = arith.divf %379, %382 : vector<16x16xf32>
    %384 = vector.extract_strided_slice %366 {offsets = [0, 0], sizes = [16, 8], strides = [1, 1]} : vector<16x32xf32> to vector<16x8xf32>
    %cst_152 = arith.constant dense<0.000000e+00> : vector<16x8xf32>
    %385 = tpu.matmul %383, %384, %cst_152 {dimension_numbers = #tpu.dot_dimension_numbers<[1], [0], [0], [1], [0, 0, 1, 1], [], []>} : vector<16x16xf32>, vector<16x8xf32>, vector<16x8xf32> -> vector<16x8xf32>
    %386 = vector.extract_strided_slice %367 {offsets = [0, 0], sizes = [8, 32], strides = [1, 1]} : vector<32x32xf32> to vector<8x32xf32>
    %cst_153 = arith.constant dense<0.000000e+00> : vector<16x32xf32>
    %387 = tpu.matmul %385, %386, %cst_153 {dimension_numbers = #tpu.dot_dimension_numbers<[1], [0], [0], [1], [0, 0, 1, 1], [], []>} : vector<16x8xf32>, vector<8x32xf32>, vector<16x32xf32> -> vector<16x32xf32>
    %388 = arith.addf %369, %387 : vector<16x32xf32>
    %389 = vector.extract_strided_slice %359 {offsets = [0, 8], sizes = [16, 8], strides = [1, 1]} : vector<16x32xf32> to vector<16x8xf32>
    %390 = vector.extract_strided_slice %365 {offsets = [0, 8], sizes = [16, 8], strides = [1, 1]} : vector<16x32xf32> to vector<16x8xf32>
    %cst_154 = arith.constant dense<0.000000e+00> : vector<16x16xf32>
    %391 = tpu.matmul %389, %390, %cst_154 {dimension_numbers = #tpu.dot_dimension_numbers<[1], [1], [0], [0], [0, 0, 1, 0], [], []>} : vector<16x8xf32>, vector<16x8xf32>, vector<16x16xf32> -> vector<16x16xf32>
    %cst_155 = arith.constant 0.353553385 : f32
    %392 = vector.broadcast %cst_155 : f32 to vector<16x16xf32>
    %393 = arith.mulf %391, %392 : vector<16x16xf32>
    %cst_156 = arith.constant dense<0xFF800000> : vector<16xf32>
    %394 = vector.multi_reduction <maximumf>, %393, %cst_156 [1] : vector<16x16xf32> to vector<16xf32>
    %395 = vector.shape_cast %394 : vector<16xf32> to vector<16x1xf32>
    %396 = vector.broadcast %395 : vector<16x1xf32> to vector<16x16xf32>
    %397 = arith.subf %393, %396 : vector<16x16xf32>
    %398 = math.exp %397 : vector<16x16xf32>
    %cst_157 = arith.constant dense<0.000000e+00> : vector<16xf32>
    %399 = vector.multi_reduction <add>, %398, %cst_157 [1] : vector<16x16xf32> to vector<16xf32>
    %400 = vector.shape_cast %399 : vector<16xf32> to vector<16x1xf32>
    %401 = vector.broadcast %400 : vector<16x1xf32> to vector<16x16xf32>
    %402 = arith.divf %398, %401 : vector<16x16xf32>
    %403 = vector.extract_strided_slice %366 {offsets = [0, 8], sizes = [16, 8], strides = [1, 1]} : vector<16x32xf32> to vector<16x8xf32>
    %cst_158 = arith.constant dense<0.000000e+00> : vector<16x8xf32>
    %404 = tpu.matmul %402, %403, %cst_158 {dimension_numbers = #tpu.dot_dimension_numbers<[1], [0], [0], [1], [0, 0, 1, 1], [], []>} : vector<16x16xf32>, vector<16x8xf32>, vector<16x8xf32> -> vector<16x8xf32>
    %405 = vector.extract_strided_slice %367 {offsets = [8, 0], sizes = [8, 32], strides = [1, 1]} : vector<32x32xf32> to vector<8x32xf32>
    %cst_159 = arith.constant dense<0.000000e+00> : vector<16x32xf32>
    %406 = tpu.matmul %404, %405, %cst_159 {dimension_numbers = #tpu.dot_dimension_numbers<[1], [0], [0], [1], [0, 0, 1, 1], [], []>} : vector<16x8xf32>, vector<8x32xf32>, vector<16x32xf32> -> vector<16x32xf32>
    %407 = arith.addf %388, %406 : vector<16x32xf32>
    %408 = vector.extract_strided_slice %359 {offsets = [0, 16], sizes = [16, 8], strides = [1, 1]} : vector<16x32xf32> to vector<16x8xf32>
    %409 = vector.extract_strided_slice %365 {offsets = [0, 16], sizes = [16, 8], strides = [1, 1]} : vector<16x32xf32> to vector<16x8xf32>
    %cst_160 = arith.constant dense<0.000000e+00> : vector<16x16xf32>
    %410 = tpu.matmul %408, %409, %cst_160 {dimension_numbers = #tpu.dot_dimension_numbers<[1], [1], [0], [0], [0, 0, 1, 0], [], []>} : vector<16x8xf32>, vector<16x8xf32>, vector<16x16xf32> -> vector<16x16xf32>
    %cst_161 = arith.constant 0.353553385 : f32
    %411 = vector.broadcast %cst_161 : f32 to vector<16x16xf32>
    %412 = arith.mulf %410, %411 : vector<16x16xf32>
    %cst_162 = arith.constant dense<0xFF800000> : vector<16xf32>
    %413 = vector.multi_reduction <maximumf>, %412, %cst_162 [1] : vector<16x16xf32> to vector<16xf32>
    %414 = vector.shape_cast %413 : vector<16xf32> to vector<16x1xf32>
    %415 = vector.broadcast %414 : vector<16x1xf32> to vector<16x16xf32>
    %416 = arith.subf %412, %415 : vector<16x16xf32>
    %417 = math.exp %416 : vector<16x16xf32>
    %cst_163 = arith.constant dense<0.000000e+00> : vector<16xf32>
    %418 = vector.multi_reduction <add>, %417, %cst_163 [1] : vector<16x16xf32> to vector<16xf32>
    %419 = vector.shape_cast %418 : vector<16xf32> to vector<16x1xf32>
    %420 = vector.broadcast %419 : vector<16x1xf32> to vector<16x16xf32>
    %421 = arith.divf %417, %420 : vector<16x16xf32>
    %422 = vector.extract_strided_slice %366 {offsets = [0, 16], sizes = [16, 8], strides = [1, 1]} : vector<16x32xf32> to vector<16x8xf32>
    %cst_164 = arith.constant dense<0.000000e+00> : vector<16x8xf32>
    %423 = tpu.matmul %421, %422, %cst_164 {dimension_numbers = #tpu.dot_dimension_numbers<[1], [0], [0], [1], [0, 0, 1, 1], [], []>} : vector<16x16xf32>, vector<16x8xf32>, vector<16x8xf32> -> vector<16x8xf32>
    %424 = vector.extract_strided_slice %367 {offsets = [16, 0], sizes = [8, 32], strides = [1, 1]} : vector<32x32xf32> to vector<8x32xf32>
    %cst_165 = arith.constant dense<0.000000e+00> : vector<16x32xf32>
    %425 = tpu.matmul %423, %424, %cst_165 {dimension_numbers = #tpu.dot_dimension_numbers<[1], [0], [0], [1], [0, 0, 1, 1], [], []>} : vector<16x8xf32>, vector<8x32xf32>, vector<16x32xf32> -> vector<16x32xf32>
    %426 = arith.addf %407, %425 : vector<16x32xf32>
    %427 = vector.extract_strided_slice %359 {offsets = [0, 24], sizes = [16, 8], strides = [1, 1]} : vector<16x32xf32> to vector<16x8xf32>
    %428 = vector.extract_strided_slice %365 {offsets = [0, 24], sizes = [16, 8], strides = [1, 1]} : vector<16x32xf32> to vector<16x8xf32>
    %cst_166 = arith.constant dense<0.000000e+00> : vector<16x16xf32>
    %429 = tpu.matmul %427, %428, %cst_166 {dimension_numbers = #tpu.dot_dimension_numbers<[1], [1], [0], [0], [0, 0, 1, 0], [], []>} : vector<16x8xf32>, vector<16x8xf32>, vector<16x16xf32> -> vector<16x16xf32>
    %cst_167 = arith.constant 0.353553385 : f32
    %430 = vector.broadcast %cst_167 : f32 to vector<16x16xf32>
    %431 = arith.mulf %429, %430 : vector<16x16xf32>
    %cst_168 = arith.constant dense<0xFF800000> : vector<16xf32>
    %432 = vector.multi_reduction <maximumf>, %431, %cst_168 [1] : vector<16x16xf32> to vector<16xf32>
    %433 = vector.shape_cast %432 : vector<16xf32> to vector<16x1xf32>
    %434 = vector.broadcast %433 : vector<16x1xf32> to vector<16x16xf32>
    %435 = arith.subf %431, %434 : vector<16x16xf32>
    %436 = math.exp %435 : vector<16x16xf32>
    %cst_169 = arith.constant dense<0.000000e+00> : vector<16xf32>
    %437 = vector.multi_reduction <add>, %436, %cst_169 [1] : vector<16x16xf32> to vector<16xf32>
    %438 = vector.shape_cast %437 : vector<16xf32> to vector<16x1xf32>
    %439 = vector.broadcast %438 : vector<16x1xf32> to vector<16x16xf32>
    %440 = arith.divf %436, %439 : vector<16x16xf32>
    %441 = vector.extract_strided_slice %366 {offsets = [0, 24], sizes = [16, 8], strides = [1, 1]} : vector<16x32xf32> to vector<16x8xf32>
    %cst_170 = arith.constant dense<0.000000e+00> : vector<16x8xf32>
    %442 = tpu.matmul %440, %441, %cst_170 {dimension_numbers = #tpu.dot_dimension_numbers<[1], [0], [0], [1], [0, 0, 1, 1], [], []>} : vector<16x16xf32>, vector<16x8xf32>, vector<16x8xf32> -> vector<16x8xf32>
    %443 = vector.extract_strided_slice %367 {offsets = [24, 0], sizes = [8, 32], strides = [1, 1]} : vector<32x32xf32> to vector<8x32xf32>
    %cst_171 = arith.constant dense<0.000000e+00> : vector<16x32xf32>
    %444 = tpu.matmul %442, %443, %cst_171 {dimension_numbers = #tpu.dot_dimension_numbers<[1], [0], [0], [1], [0, 0, 1, 1], [], []>} : vector<16x8xf32>, vector<8x32xf32>, vector<16x32xf32> -> vector<16x32xf32>
    %445 = arith.addf %426, %444 : vector<16x32xf32>
    %446 = vector.broadcast %368 : vector<1x32xf32> to vector<16x32xf32>
    %447 = arith.addf %445, %446 : vector<16x32xf32>
    %448 = arith.addf %354, %447 : vector<16x32xf32>
    %c632 = arith.constant 632 : index
    %c0_172 = arith.constant 0 : index
    %449 = vector.load %arg5[%c632, %c0_172] : memref<832x128xf32, #tpu.memory_space<vmem>>, vector<1x32xf32>
    %c640 = arith.constant 640 : index
    %c0_173 = arith.constant 0 : index
    %450 = vector.load %arg5[%c640, %c0_173] : memref<832x128xf32, #tpu.memory_space<vmem>>, vector<1x32xf32>
    %cst_174 = arith.constant dense<0.000000e+00> : vector<16xf32>
    %451 = vector.multi_reduction <add>, %448, %cst_174 [1] : vector<16x32xf32> to vector<16xf32>
    %452 = vector.shape_cast %451 : vector<16xf32> to vector<16x1xf32>
    %cst_175 = arith.constant 3.200000e+01 : f32
    %453 = vector.broadcast %cst_175 : f32 to vector<16x1xf32>
    %454 = arith.divf %452, %453 : vector<16x1xf32>
    %455 = vector.broadcast %454 : vector<16x1xf32> to vector<16x32xf32>
    %456 = arith.subf %448, %455 : vector<16x32xf32>
    %457 = arith.mulf %456, %456 : vector<16x32xf32>
    %cst_176 = arith.constant dense<0.000000e+00> : vector<16xf32>
    %458 = vector.multi_reduction <add>, %457, %cst_176 [1] : vector<16x32xf32> to vector<16xf32>
    %459 = vector.shape_cast %458 : vector<16xf32> to vector<16x1xf32>
    %cst_177 = arith.constant 3.200000e+01 : f32
    %460 = vector.broadcast %cst_177 : f32 to vector<16x1xf32>
    %461 = arith.divf %459, %460 : vector<16x1xf32>
    %462 = vector.broadcast %454 : vector<16x1xf32> to vector<16x32xf32>
    %463 = arith.subf %448, %462 : vector<16x32xf32>
    %cst_178 = arith.constant 9.99999974E-6 : f32
    %464 = vector.broadcast %cst_178 : f32 to vector<16x1xf32>
    %465 = arith.addf %461, %464 : vector<16x1xf32>
    %466 = math.rsqrt %465 : vector<16x1xf32>
    %467 = vector.broadcast %466 : vector<16x1xf32> to vector<16x32xf32>
    %468 = arith.mulf %463, %467 : vector<16x32xf32>
    %469 = vector.broadcast %449 : vector<1x32xf32> to vector<16x32xf32>
    %470 = arith.mulf %468, %469 : vector<16x32xf32>
    %471 = vector.broadcast %450 : vector<1x32xf32> to vector<16x32xf32>
    %472 = arith.addf %470, %471 : vector<16x32xf32>
    %c648 = arith.constant 648 : index
    %c0_179 = arith.constant 0 : index
    %473 = vector.load %arg5[%c648, %c0_179] : memref<832x128xf32, #tpu.memory_space<vmem>>, vector<32x64xf32>
    %cst_180 = arith.constant dense<0.000000e+00> : vector<16x64xf32>
    %474 = tpu.matmul %472, %473, %cst_180 {dimension_numbers = #tpu.dot_dimension_numbers<[1], [0], [0], [1], [0, 0, 1, 1], [], []>} : vector<16x32xf32>, vector<32x64xf32>, vector<16x64xf32> -> vector<16x64xf32>
    %c680 = arith.constant 680 : index
    %c0_181 = arith.constant 0 : index
    %475 = vector.load %arg5[%c680, %c0_181] : memref<832x128xf32, #tpu.memory_space<vmem>>, vector<1x64xf32>
    %476 = vector.broadcast %475 : vector<1x64xf32> to vector<16x64xf32>
    %477 = arith.addf %474, %476 : vector<16x64xf32>
    %cst_182 = arith.constant 0.000000e+00 : f32
    %478 = vector.broadcast %cst_182 : f32 to vector<16x64xf32>
    %479 = arith.maximumf %477, %478 : vector<16x64xf32>
    %c688 = arith.constant 688 : index
    %c0_183 = arith.constant 0 : index
    %480 = vector.load %arg5[%c688, %c0_183] : memref<832x128xf32, #tpu.memory_space<vmem>>, vector<64x32xf32>
    %cst_184 = arith.constant dense<0.000000e+00> : vector<16x32xf32>
    %481 = tpu.matmul %479, %480, %cst_184 {dimension_numbers = #tpu.dot_dimension_numbers<[1], [0], [0], [1], [0, 0, 1, 1], [], []>} : vector<16x64xf32>, vector<64x32xf32>, vector<16x32xf32> -> vector<16x32xf32>
    %c752 = arith.constant 752 : index
    %c0_185 = arith.constant 0 : index
    %482 = vector.load %arg5[%c752, %c0_185] : memref<832x128xf32, #tpu.memory_space<vmem>>, vector<1x32xf32>
    %483 = vector.broadcast %482 : vector<1x32xf32> to vector<16x32xf32>
    %484 = arith.addf %481, %483 : vector<16x32xf32>
    %485 = arith.addf %472, %484 : vector<16x32xf32>
    %c760 = arith.constant 760 : index
    %c0_186 = arith.constant 0 : index
    %486 = vector.load %arg5[%c760, %c0_186] : memref<832x128xf32, #tpu.memory_space<vmem>>, vector<1x32xf32>
    %c768 = arith.constant 768 : index
    %c0_187 = arith.constant 0 : index
    %487 = vector.load %arg5[%c768, %c0_187] : memref<832x128xf32, #tpu.memory_space<vmem>>, vector<1x32xf32>
    %cst_188 = arith.constant dense<0.000000e+00> : vector<16xf32>
    %488 = vector.multi_reduction <add>, %485, %cst_188 [1] : vector<16x32xf32> to vector<16xf32>
    %489 = vector.shape_cast %488 : vector<16xf32> to vector<16x1xf32>
    %cst_189 = arith.constant 3.200000e+01 : f32
    %490 = vector.broadcast %cst_189 : f32 to vector<16x1xf32>
    %491 = arith.divf %489, %490 : vector<16x1xf32>
    %492 = vector.broadcast %491 : vector<16x1xf32> to vector<16x32xf32>
    %493 = arith.subf %485, %492 : vector<16x32xf32>
    %494 = arith.mulf %493, %493 : vector<16x32xf32>
    %cst_190 = arith.constant dense<0.000000e+00> : vector<16xf32>
    %495 = vector.multi_reduction <add>, %494, %cst_190 [1] : vector<16x32xf32> to vector<16xf32>
    %496 = vector.shape_cast %495 : vector<16xf32> to vector<16x1xf32>
    %cst_191 = arith.constant 3.200000e+01 : f32
    %497 = vector.broadcast %cst_191 : f32 to vector<16x1xf32>
    %498 = arith.divf %496, %497 : vector<16x1xf32>
    %499 = vector.broadcast %491 : vector<16x1xf32> to vector<16x32xf32>
    %500 = arith.subf %485, %499 : vector<16x32xf32>
    %cst_192 = arith.constant 9.99999974E-6 : f32
    %501 = vector.broadcast %cst_192 : f32 to vector<16x1xf32>
    %502 = arith.addf %498, %501 : vector<16x1xf32>
    %503 = math.rsqrt %502 : vector<16x1xf32>
    %504 = vector.broadcast %503 : vector<16x1xf32> to vector<16x32xf32>
    %505 = arith.mulf %500, %504 : vector<16x32xf32>
    %506 = vector.broadcast %486 : vector<1x32xf32> to vector<16x32xf32>
    %507 = arith.mulf %505, %506 : vector<16x32xf32>
    %508 = vector.broadcast %487 : vector<1x32xf32> to vector<16x32xf32>
    %509 = arith.addf %507, %508 : vector<16x32xf32>
    %c776 = arith.constant 776 : index
    %c0_193 = arith.constant 0 : index
    %510 = vector.load %arg5[%c776, %c0_193] : memref<832x128xf32, #tpu.memory_space<vmem>>, vector<1x32xf32>
    %c784 = arith.constant 784 : index
    %c0_194 = arith.constant 0 : index
    %511 = vector.load %arg5[%c784, %c0_194] : memref<832x128xf32, #tpu.memory_space<vmem>>, vector<1x32xf32>
    %cst_195 = arith.constant dense<0.000000e+00> : vector<16xf32>
    %512 = vector.multi_reduction <add>, %509, %cst_195 [1] : vector<16x32xf32> to vector<16xf32>
    %513 = vector.shape_cast %512 : vector<16xf32> to vector<16x1xf32>
    %cst_196 = arith.constant 3.200000e+01 : f32
    %514 = vector.broadcast %cst_196 : f32 to vector<16x1xf32>
    %515 = arith.divf %513, %514 : vector<16x1xf32>
    %516 = vector.broadcast %515 : vector<16x1xf32> to vector<16x32xf32>
    %517 = arith.subf %509, %516 : vector<16x32xf32>
    %518 = arith.mulf %517, %517 : vector<16x32xf32>
    %cst_197 = arith.constant dense<0.000000e+00> : vector<16xf32>
    %519 = vector.multi_reduction <add>, %518, %cst_197 [1] : vector<16x32xf32> to vector<16xf32>
    %520 = vector.shape_cast %519 : vector<16xf32> to vector<16x1xf32>
    %cst_198 = arith.constant 3.200000e+01 : f32
    %521 = vector.broadcast %cst_198 : f32 to vector<16x1xf32>
    %522 = arith.divf %520, %521 : vector<16x1xf32>
    %523 = vector.broadcast %515 : vector<16x1xf32> to vector<16x32xf32>
    %524 = arith.subf %509, %523 : vector<16x32xf32>
    %cst_199 = arith.constant 9.99999974E-6 : f32
    %525 = vector.broadcast %cst_199 : f32 to vector<16x1xf32>
    %526 = arith.addf %522, %525 : vector<16x1xf32>
    %527 = math.rsqrt %526 : vector<16x1xf32>
    %528 = vector.broadcast %527 : vector<16x1xf32> to vector<16x32xf32>
    %529 = arith.mulf %524, %528 : vector<16x32xf32>
    %530 = vector.broadcast %510 : vector<1x32xf32> to vector<16x32xf32>
    %531 = arith.mulf %529, %530 : vector<16x32xf32>
    %532 = vector.broadcast %511 : vector<1x32xf32> to vector<16x32xf32>
    %533 = arith.addf %531, %532 : vector<16x32xf32>
    %c792 = arith.constant 792 : index
    %c0_200 = arith.constant 0 : index
    %534 = vector.load %arg5[%c792, %c0_200] : memref<832x128xf32, #tpu.memory_space<vmem>>, vector<32x7xf32>
    %cst_201 = arith.constant dense<0.000000e+00> : vector<16x7xf32>
    %535 = tpu.matmul %533, %534, %cst_201 {dimension_numbers = #tpu.dot_dimension_numbers<[1], [0], [0], [1], [0, 0, 1, 1], [], []>} : vector<16x32xf32>, vector<32x7xf32>, vector<16x7xf32> -> vector<16x7xf32>
    %c824 = arith.constant 824 : index
    %c0_202 = arith.constant 0 : index
    %536 = vector.load %arg5[%c824, %c0_202] : memref<832x128xf32, #tpu.memory_space<vmem>>, vector<1x7xf32>
    %537 = vector.broadcast %536 : vector<1x7xf32> to vector<16x7xf32>
    %538 = arith.addf %535, %537 : vector<16x7xf32>
    %539 = vector.extract_strided_slice %538 {offsets = [8, 0], sizes = [8, 7], strides = [1, 1]} : vector<16x7xf32> to vector<8x7xf32>
    %540 = vector.broadcast %8 : vector<1x7xf32> to vector<8x7xf32>
    %541 = arith.addf %539, %540 : vector<8x7xf32>
    %c0_203 = arith.constant 0 : index
    %c0_204 = arith.constant 0 : index
    %c0_205 = arith.constant 0 : index
    %542 = vector.load %arg6[%c0_203, %c0_204, %c0_205] : memref<1x8x7xf32, #tpu.memory_space<vmem>>, vector<1x8x7xf32>
    %543 = vector.shape_cast %542 : vector<1x8x7xf32> to vector<8x7xf32>
    %544 = vector.shape_cast %541 : vector<8x7xf32> to vector<1x8x7xf32>
    tpu.vector_store %arg6[%c0_203, %c0_204, %c0_205], %544 {strides = array<i32>} : memref<1x8x7xf32, #tpu.memory_space<vmem>>, vector<1x8x7xf32>,
    return
  }
  func.func @transform_0(%arg0: i32) -> (i32, i32, i32) {
    %c0_i32 = arith.constant 0 : i32
    %c0_i32_0 = arith.constant 0 : i32
    %c0_i32_1 = arith.constant 0 : i32
    return %arg0, %c0_i32, %c0_i32_0 : i32, i32, i32
  }
  func.func @transform_1(%arg0: i32) -> (i32, i32, i32) {
    %c0_i32 = arith.constant 0 : i32
    %c0_i32_0 = arith.constant 0 : i32
    %c0_i32_1 = arith.constant 0 : i32
    return %arg0, %c0_i32, %c0_i32_0 : i32, i32, i32
  }
  func.func @transform_2(%arg0: i32) -> (i32, i32, i32) {
    %c0_i32 = arith.constant 0 : i32
    %c0_i32_0 = arith.constant 0 : i32
    %c0_i32_1 = arith.constant 0 : i32
    return %arg0, %c0_i32, %c0_i32_0 : i32, i32, i32
  }
  func.func @transform_3(%arg0: i32) -> (i32, i32, i32) {
    %c0_i32 = arith.constant 0 : i32
    %c0_i32_0 = arith.constant 0 : i32
    %c0_i32_1 = arith.constant 0 : i32
    return %arg0, %c0_i32, %c0_i32_0 : i32, i32, i32
  }
  func.func @transform_4(%arg0: i32) -> (i32, i32) {
    %c0_i32 = arith.constant 0 : i32
    %c0_i32_0 = arith.constant 0 : i32
    %c0_i32_1 = arith.constant 0 : i32
    return %c0_i32, %c0_i32_0 : i32, i32
  }
  func.func @transform_5(%arg0: i32) -> (i32, i32, i32) {
    %c0_i32 = arith.constant 0 : i32
    %c0_i32_0 = arith.constant 0 : i32
    %c0_i32_1 = arith.constant 0 : i32
    return %arg0, %c0_i32, %c0_i32_0 : i32, i32, i32
  }
}

</mosaic_0001>

<llo_original>
// kernel: model_forward.1
$region0: #{model_forward.1}
  #allocation0 [shape = 'u32[]', space=smem, size = 0x4, offset = 0x4, fixed_abs, tag = 'smem constant byte address 0x4 - core index']
  #allocation1 [shape = 'u32[72,128]{1,0:T(1,128)}', space=vmem, size = 0x9000, scoped, tag = 'internal scratch']
  %s0 = inlined_call_operand.vmem [shape: f32[2,16,7], index: 0, kind: input, shape index: {}]
  %s1 = inlined_call_operand.vmem [shape: f32[2,16,4], index: 1, kind: input, shape index: {}]
  %s2 = inlined_call_operand.vmem [shape: f32[2,16,7], index: 2, kind: input, shape index: {}]
  %s3 = inlined_call_operand.vmem [shape: f32[2,16,4], index: 3, kind: input, shape index: {}]
  %s4 = inlined_call_operand.hbm [shape: f32[832,128], index: 4, kind: input, shape index: {}]
  %s5 = inlined_call_operand.vmem [shape: f32[2,8,7], index: 5, kind: output, shape index: {}]
  %s6 = sld [smem:[#allocation0]]
  $region57: #{model_forward.1} parent=0
    _
  %s8 = ssub.s32 1, %s6
  %s9 = scalar_select 0, %s8, %s6
  $region1: #{model_forward.1} parent=0
    #allocation2 [shape = 'u8[425984]{0}', space=vmem, size = 0x68000, scoped, tag = 'input window, operand 4, single buffered']
    #allocation3 [shape = 's32[2]{0}', space=sflag, size = 0x8, scoped, tag = 'scoped memory for model_forward.1']
    %10 = vsyncpa [#allocation3], 0
    loop: start=0, step=1, limit=4
    $region2: #{model_forward.1} parent=1 // loop_pre_header
      _
    $region3: #{model_forward.1} parent=1 // loop_header
      %s12 = sphi 0, %s16
      %p13 = scmp.ge.s32.totalorder %s12, 4
      %s22 = sphi 0, %s24
      %s25 = sphi 0, %s22
      %s26 = sphi 0, %s25
      %s42 = sphi 0, %s26
      %s48 = sphi 0, %s50
      %s51 = sphi 0, %s48
      %s52 = sphi 0, %s51
      %s68 = sphi 0, %s52
      %s74 = sphi 0, %s76
      %s77 = sphi 0, %s74
      %s78 = sphi 0, %s77
      %s94 = sphi 0, %s78
      %s100 = sphi 0, %s102
      %s103 = sphi 0, %s100
      %s104 = sphi 0, %s103
      %s120 = sphi 0, %s104
      %s124 = sphi 0, %s124
      %s126 = sphi 0, %s124
      %s127 = sphi 0, %s126
      %s141 = sphi 0, %s127
      %s147 = sphi 0, %s149
      %s150 = sphi 0, %s147
      %s151 = sphi 0, %s150
      %s167 = sphi 0, %s151
    $region4: #{model_forward.1} parent=1 // loop_header_branch
      %15 = sbr.rel (%p13) target = $region8
    $region5: #{model_forward.1} parent=1 // loop_body
      %s17 = ssub.s32 %s12, 1
      %s18 = ssub.s32 %s12, 2
      %s19 = sadd.s32 %s12, 1
      %s20 = ssub.s32 %s12, %s19
      %p21 = scmp.eq.s32.totalorder %s20, 0
      %s23 = sadd.s32 %s22, 1
      %s24 = scalar_select %p21, %s22, %s23
      %p27 = pneg %p21
      %p28 = scmp.eq.s32.totalorder %s12, 1
      %p29 = por %p27, %p28
      %p30 = scmp.ne.s32.totalorder %s22, %s25
      %p31 = scmp.eq.s32.totalorder %s12, 0
      %p32 = por %p30, %p31
      %p33 = scmp.ne.s32.totalorder %s22, %s25
      %p34 = scmp.eq.s32.totalorder %s17, 1
      %p35 = por %p33, %p34
      %p36 = scmp.ne.s32.totalorder %s25, %s26
      %p37 = scmp.eq.s32.totalorder %s17, 0
      %p38 = por %p36, %p37
      %p39 = scmp.ne.s32.totalorder %s25, %s26
      %p40 = scmp.eq.s32.totalorder %s18, 1
      %p41 = por %p39, %p40
      %p43 = scmp.ne.s32.totalorder %s26, %s42
      %p44 = scmp.eq.s32.totalorder %s18, 0
      %p45 = por %p43, %p44
      %s46 = ssub.s32 %s12, %s19
      %p47 = scmp.eq.s32.totalorder %s46, 0
      %s49 = sadd.s32 %s48, 1
      %s50 = scalar_select %p47, %s48, %s49
      %p53 = pneg %p47
      %p54 = scmp.eq.s32.totalorder %s12, 1
      %p55 = por %p53, %p54
      %p56 = scmp.ne.s32.totalorder %s48, %s51
      %p57 = scmp.eq.s32.totalorder %s12, 0
      %p58 = por %p56, %p57
      %p59 = scmp.ne.s32.totalorder %s48, %s51
      %p60 = scmp.eq.s32.totalorder %s17, 1
      %p61 = por %p59, %p60
      %p62 = scmp.ne.s32.totalorder %s51, %s52
      %p63 = scmp.eq.s32.totalorder %s17, 0
      %p64 = por %p62, %p63
      %p65 = scmp.ne.s32.totalorder %s51, %s52
      %p66 = scmp.eq.s32.totalorder %s18, 1
      %p67 = por %p65, %p66
      %p69 = scmp.ne.s32.totalorder %s52, %s68
      %p70 = scmp.eq.s32.totalorder %s18, 0
      %p71 = por %p69, %p70
      %s72 = ssub.s32 %s12, %s19
      %p73 = scmp.eq.s32.totalorder %s72, 0
      %s75 = sadd.s32 %s74, 1
      %s76 = scalar_select %p73, %s74, %s75
      %p79 = pneg %p73
      %p80 = scmp.eq.s32.totalorder %s12, 1
      %p81 = por %p79, %p80
      %p82 = scmp.ne.s32.totalorder %s74, %s77
      %p83 = scmp.eq.s32.totalorder %s12, 0
      %p84 = por %p82, %p83
      %p85 = scmp.ne.s32.totalorder %s74, %s77
      %p86 = scmp.eq.s32.totalorder %s17, 1
      %p87 = por %p85, %p86
      %p88 = scmp.ne.s32.totalorder %s77, %s78
      %p89 = scmp.eq.s32.totalorder %s17, 0
      %p90 = por %p88, %p89
      %p91 = scmp.ne.s32.totalorder %s77, %s78
      %p92 = scmp.eq.s32.totalorder %s18, 1
      %p93 = por %p91, %p92
      %p95 = scmp.ne.s32.totalorder %s78, %s94
      %p96 = scmp.eq.s32.totalorder %s18, 0
      %p97 = por %p95, %p96
      %s98 = ssub.s32 %s12, %s19
      %p99 = scmp.eq.s32.totalorder %s98, 0
      %s101 = sadd.s32 %s100, 1
      %s102 = scalar_select %p99, %s100, %s101
      %p105 = pneg %p99
      %p106 = scmp.eq.s32.totalorder %s12, 1
      %p107 = por %p105, %p106
      %p108 = scmp.ne.s32.totalorder %s100, %s103
      %p109 = scmp.eq.s32.totalorder %s12, 0
      %p110 = por %p108, %p109
      %p111 = scmp.ne.s32.totalorder %s100, %s103
      %p112 = scmp.eq.s32.totalorder %s17, 1
      %p113 = por %p111, %p112
      %p114 = scmp.ne.s32.totalorder %s103, %s104
      %p115 = scmp.eq.s32.totalorder %s17, 0
      %p116 = por %p114, %p115
      %p117 = scmp.ne.s32.totalorder %s103, %s104
      %p118 = scmp.eq.s32.totalorder %s18, 1
      %p119 = por %p117, %p118
      %p121 = scmp.ne.s32.totalorder %s104, %s120
      %p122 = scmp.eq.s32.totalorder %s18, 0
      %p123 = por %p121, %p122
      %s125 = sadd.s32 %s124, 1
      %p128 = scmp.eq.s32.totalorder %s12, 1
      %p129 = scmp.ne.s32.totalorder %s124, %s126
      %p130 = scmp.eq.s32.totalorder %s12, 0
      %p131 = por %p129, %p130
      %p132 = scmp.ne.s32.totalorder %s124, %s126
      %p133 = scmp.eq.s32.totalorder %s17, 1
      %p134 = por %p132, %p133
      %p135 = scmp.ne.s32.totalorder %s126, %s127
      %p136 = scmp.eq.s32.totalorder %s17, 0
      %p137 = por %p135, %p136
      %p138 = scmp.ne.s32.totalorder %s126, %s127
      %p139 = scmp.eq.s32.totalorder %s18, 1
      %p140 = por %p138, %p139
      %p142 = scmp.ne.s32.totalorder %s127, %s141
      %p143 = scmp.eq.s32.totalorder %s18, 0
      %p144 = por %p142, %p143
      %s145 = ssub.s32 %s12, %s19
      %p146 = scmp.eq.s32.totalorder %s145, 0
      %s148 = sadd.s32 %s147, 1
      %s149 = scalar_select %p146, %s147, %s148
      %p152 = pneg %p146
      %p153 = scmp.eq.s32.totalorder %s12, 1
      %p154 = por %p152, %p153
      %p155 = scmp.ne.s32.totalorder %s147, %s150
      %p156 = scmp.eq.s32.totalorder %s12, 0
      %p157 = por %p155, %p156
      %p158 = scmp.ne.s32.totalorder %s147, %s150
      %p159 = scmp.eq.s32.totalorder %s17, 1
      %p160 = por %p158, %p159
      %p161 = scmp.ne.s32.totalorder %s150, %s151
      %p162 = scmp.eq.s32.totalorder %s17, 0
      %p163 = por %p161, %p162
      %p164 = scmp.ne.s32.totalorder %s150, %s151
      %p165 = scmp.eq.s32.totalorder %s18, 1
      %p166 = por %p164, %p165
      %p168 = scmp.ne.s32.totalorder %s151, %s167
      %p169 = scmp.eq.s32.totalorder %s18, 0
      %p170 = por %p168, %p169
      %p171 = scmp.le.s32.totalorder 1, %s12
      %p172 = scmp.lt.s32.totalorder %s12, 3
      %p173 = pnand %p171, %p172
      %p174 = pneg %p173
      // Predicated region
      $region9: #{model_forward.1} parent=5 // pred_check
        _
      $region10: #{model_forward.1} parent=5 // pred_check_branch
        %176 = sbr.rel (%p173) target = $region12
      $region11: #{model_forward.1} parent=5 // pred_region
        %s177 = ssub.s32 %s12, 1
        // Predicated region
        $region13: #{model_forward.1} parent=11 // pred_check
          %p178 = pneg %p137
        $region14: #{model_forward.1} parent=11 // pred_check_branch
          %180 = sbr.rel (%p178) target = $region16
        $region15: #{model_forward.1} parent=11 // pred_region
          %182 = vsyncadd [#allocation3], 0
          %s183 = sshll.u32 %s4, 4
          %s184 = int_to_ptr.hbm [resolvable:$true] %s183
          %s185 = sshll.u32 [#allocation2], 4
          %s186 = int_to_ptr.vmem [resolvable:$true] %s185
          %191 = dma.hbm_to_vmem [thread:$0]  %s184, 13312, %s186, [#allocation3], 128, 128, 8
        $region16: #{model_forward.1} parent=11 // pred_fallthru
          _
      $region12: #{model_forward.1} parent=5 // pred_fallthru
        _
      %p192 = scmp.lt.s32.totalorder %s12, 2
      // Predicated region
      $region17: #{model_forward.1} parent=5 // pred_check
        %p193 = pneg %p192
      $region18: #{model_forward.1} parent=5 // pred_check_branch
        %195 = sbr.rel (%p193) target = $region20
      $region19: #{model_forward.1} parent=5 // pred_region
        // Predicated region
        $region21: #{model_forward.1} parent=19 // pred_check
          %p196 = pneg %p32
        $region22: #{model_forward.1} parent=19 // pred_check_branch
          %198 = sbr.rel (%p196) target = $region24
        $region23: #{model_forward.1} parent=19 // pred_region
          %p199 = scmp.lt.s32.totalorder %s12, 1
          %s200 = scalar_select %p199, %s12, 1
          %s201 = smul.addr %s200, 2
          %s202 = smul.addr %s201, 8
          %s203 = scalar_lea.vmem %s0, %s202
        $region24: #{model_forward.1} parent=19 // pred_fallthru
          _
        // Predicated region
        $region25: #{model_forward.1} parent=19 // pred_check
          %p204 = pneg %p58
        $region26: #{model_forward.1} parent=19 // pred_check_branch
          %206 = sbr.rel (%p204) target = $region28
        $region27: #{model_forward.1} parent=19 // pred_region
          %p207 = scmp.lt.s32.totalorder %s12, 1
          %s208 = scalar_select %p207, %s12, 1
          %s209 = smul.addr %s208, 2
          %s210 = smul.addr %s209, 8
          %s211 = scalar_lea.vmem %s1, %s210
        $region28: #{model_forward.1} parent=19 // pred_fallthru
          _
        // Predicated region
        $region29: #{model_forward.1} parent=19 // pred_check
          %p212 = pneg %p84
        $region30: #{model_forward.1} parent=19 // pred_check_branch
          %214 = sbr.rel (%p212) target = $region32
        $region31: #{model_forward.1} parent=19 // pred_region
          %p215 = scmp.lt.s32.totalorder %s12, 1
          %s216 = scalar_select %p215, %s12, 1
          %s217 = smul.addr %s216, 2
          %s218 = smul.addr %s217, 8
          %s219 = scalar_lea.vmem %s2, %s218
        $region32: #{model_forward.1} parent=19 // pred_fallthru
          _
        // Predicated region
        $region33: #{model_forward.1} parent=19 // pred_check
          %p220 = pneg %p110
        $region34: #{model_forward.1} parent=19 // pred_check_branch
          %222 = sbr.rel (%p220) target = $region36
        $region35: #{model_forward.1} parent=19 // pred_region
          %p223 = scmp.lt.s32.totalorder %s12, 1
          %s224 = scalar_select %p223, %s12, 1
          %s225 = smul.addr %s224, 2
          %s226 = smul.addr %s225, 8
          %s227 = scalar_lea.vmem %s3, %s226
        $region36: #{model_forward.1} parent=19 // pred_fallthru
          _
      $region20: #{model_forward.1} parent=5 // pred_fallthru
        _
      %p228 = scmp.le.s32.totalorder 1, %s12
      %p229 = scmp.lt.s32.totalorder %s12, 3
      %p230 = pnand %p228, %p229
      %p231 = pneg %p230
      // Predicated region
      $region37: #{model_forward.1} parent=5 // pred_check
        _
      $region38: #{model_forward.1} parent=5 // pred_check_branch
        %233 = sbr.rel (%p230) target = $region40
      $region39: #{model_forward.1} parent=5 // pred_region
        %s234 = ssub.s32 %s12, 1
        // Predicated region
        $region41: #{model_forward.1} parent=39 // pred_check
          %p235 = pneg %p137
        $region42: #{model_forward.1} parent=39 // pred_check_branch
          %237 = sbr.rel (%p235) target = $region44
        $region43: #{model_forward.1} parent=39 // pred_region
          %239 = dma.done [#allocation3], 13312
        $region44: #{model_forward.1} parent=39 // pred_fallthru
          _
        %p240 = scmp.lt.s32.totalorder %s17, 1
        %s241 = scalar_select %p240, %s17, 1
        %s242 = smul.addr %s241, 2
        %s243 = smul.addr %s242, 8
        %s244 = scalar_lea.vmem %s0, %s243
        %p245 = pneg %p38
        %p246 = pneg %p35
        %p247 = scmp.lt.s32.totalorder %s17, 1
        %s248 = scalar_select %p247, %s17, 1
        %s249 = smul.addr %s248, 2
        %s250 = smul.addr %s249, 8
        %s251 = scalar_lea.vmem %s1, %s250
        %p252 = pneg %p64
        %p253 = pneg %p61
        %p254 = scmp.lt.s32.totalorder %s17, 1
        %s255 = scalar_select %p254, %s17, 1
        %s256 = smul.addr %s255, 2
        %s257 = smul.addr %s256, 8
        %s258 = scalar_lea.vmem %s2, %s257
        %p259 = pneg %p90
        %p260 = pneg %p87
        %p261 = scmp.lt.s32.totalorder %s17, 1
        %s262 = scalar_select %p261, %s17, 1
        %s263 = smul.addr %s262, 2
        %s264 = smul.addr %s263, 8
        %s265 = scalar_lea.vmem %s3, %s264
        %p266 = pneg %p116
        %p267 = pneg %p113
        %p268 = pneg %p137
        %p269 = pneg %p134
        %p270 = pneg %p163
        %p271 = pneg %p160
        %p272 = scmp.lt.s32.totalorder %s17, 1
        %s273 = scalar_select %p272, %s17, 1
        %s274 = smul.addr %s273, 8
        %s275 = scalar_lea.vmem %s5, %s274
        %p276 = scmp.lt.s32.totalorder %s17, 1
        %s277 = scalar_select %p276, %s17, 1
        %s278 = smul.addr %s277, 2
        %s279 = smul.addr %s278, 8
        %s280 = scalar_lea.vmem %s0, %s279
        %p281 = scmp.lt.s32.totalorder %s17, 1
        %s282 = scalar_select %p281, %s17, 1
        %s283 = smul.addr %s282, 2
        %s284 = smul.addr %s283, 8
        %s285 = scalar_lea.vmem %s1, %s284
        %p286 = scmp.lt.s32.totalorder %s17, 1
        %s287 = scalar_select %p286, %s17, 1
        %s288 = smul.addr %s287, 2
        %s289 = smul.addr %s288, 8
        %s290 = scalar_lea.vmem %s2, %s289
        %p291 = scmp.lt.s32.totalorder %s17, 1
        %s292 = scalar_select %p291, %s17, 1
        %s293 = smul.addr %s292, 2
        %s294 = smul.addr %s293, 8
        %s295 = scalar_lea.vmem %s3, %s294
        %p296 = scmp.lt.s32.totalorder %s17, 1
        %s297 = scalar_select %p296, %s17, 1
        %s298 = smul.addr %s297, 8
        %s299 = scalar_lea.vmem %s5, %s298
        %v300 = vld [vmem:[%s280] sm:$0xff]
        %v301 = vld [vmem:[%s280 + $0x8] sm:$0xff]
        %v302 = vld [vmem:[%s285] sm:$0xff]
        %v303 = vld [vmem:[%s285 + $0x8] sm:$0xff]
        %v304 = vld [vmem:[%s290] sm:$0xff]
        %v305 = vld [vmem:[%s290 + $0x8] sm:$0xff]
        %v306 = vld [vmem:[%s295] sm:$0xff]
        %v307 = vld [vmem:[%s295 + $0x8] sm:$0xff]
        %v308 = vld [vmem:[#allocation2 + $0x60] sm:$0x7f]
        %v309 = vld [vmem:[#allocation2 + $0x68] sm:$0x1]
        %v310 = vperm.slane %v309, 0
        %vm311 = vcmask 56320
        %v313 = vsel %vm311, %v300, 0
        %v316 = vsel %vm311, %v301, 0
        %vm318 = vcmask 1046528
        %v320 = vsel %vm318, %v308, 0
        %322 = vmatpush.msra.mxu0 0.0
        %323 = vmatpush.msra.mxu0 0.0
        %324 = vmatpush.msra.mxu0 0.0
        %325 = vmatpush.msra.mxu0 0.0
        %326 = vmatpush.msra.mxu0 0.0
        %327 = vmatpush.msra.mxu0 0.0
        %328 = vmatpush.msra.mxu0 0.0
        %329 = vmatpush.msra.mxu0 0.0
        %330 = vmatpush.msra.mxu0 0.0
        %331 = vmatpush.msra.mxu0 0.0
        %332 = vmatpush.msra.mxu0 0.0
        %333 = vmatpush.msra.mxu0 0.0
        %334 = vmatpush.msra.mxu0 0.0
        %335 = vmatpush.msra.mxu0 0.0
        %336 = vmatpush.msra.mxu0 0.0
        %337 = vmatpush.msra.mxu0 %v320
        %338 = vmatmul.f32.gmra.mxu0 %v313
        %v339 = vpop.f32.mrf.mxu0
        %v340 = vadd.f32 %v310, %v339
        %341 = vmatmul.f32.gmra.mxu0 %v316
        %v342 = vpop.f32.mrf.mxu0
        %v343 = vadd.f32 %v310, %v342
        %344 = vdwg.mxu0
        %vm345 = vcmask 7168
        %v346 = vsel %vm345, %v340, -inf
        %v347 = vsel %vm345, %v343, -inf
        %v348 = vmax.f32 %v346, %v347
        %v349 = vrot.slane %v348, 4
        %v350 = vmax.f32 %v348, %v349
        %v351 = vrot.slane %v350, 2
        %v352 = vmax.f32 %v350, %v351
        %v353 = vrot.slane %v352, 1
        %v354 = vmax.f32 %v352, %v353
        %v355 = vsub.f32 %v340, %v354
        %v356 = vsub.f32 %v343, %v354
        %v357 = vmul.f32 %v355, 1.442695
        %v358 = vpow.pop %v357
        %v359 = vmul.f32 %v356, 1.442695
        %v360 = vpow.pop %v359
        %v361 = vsel %vm345, %v358, 0.0
        %v362 = vsel %vm345, %v360, 0.0
        %v363 = vadd.f32 %v361, %v362
        %v364 = vrot.slane %v363, 4
        %v365 = vadd.f32 %v363, %v364
        %v366 = vrot.slane %v365, 2
        %v367 = vadd.f32 %v365, %v366
        %v368 = vrot.slane %v367, 1
        %v369 = vadd.f32 %v367, %v368
        %v370 = vrcp.pop %v369
        %v371 = vmul.f32 %v369, %v370
        %v372 = vsub.f32 1.0, %v371
        %v373 = vmul.f32 %v370, %v372
        %v374 = vadd.f32 %v370, %v373
        %vm375 = vweird.f32 %v369
        %vm376 = vweird.f32 %v370
        %vm377 = vmor %vm375, %vm376
        %v378 = vsel %vm377, %v370, %v374
        %v379 = vand.u32 2147483647, %v369
        %vm380 = vcmp.eq.f32.partialorder %v379, 8.507059e+37
        %v381 = vand.u32 %v369, 2147483648
        %v382 = vor.u32 1.1754944e-38, %v381
        %v383 = vsel %vm380, %v382, %v378
        %v384 = vmul.f32 %v358, %v383
        %v385 = vmul.f32 %v360, %v383
        %v386 = vperm.slane %v301, 7
        %v387 = vsub.f32 %v300, %v386
        %v388 = vsub.f32 %v301, %v386
        %390 = vset.pattern.permute.xlu0 0
        %391 = vperm.xlu0 %390, %v384
        %v392 = vpop.permute.xlu0 %391
        %395 = vset.pattern.permute.xlu0 0
        %396 = vperm.xlu0 %395, %v385
        %v397 = vpop.permute.xlu0 %396
        %v399 = vmul.f32 %v387, %v392
        %v400 = vmul.f32 %v388, %v397
        %v401 = vld [vmem:[#allocation2 + $0x20] sm:$0xff]
        %v402 = vld [vmem:[#allocation2 + $0x28] sm:$0xff]
        %vm403 = vcmask 130048
        %v405 = vsel %vm403, %v401, 0
        %v408 = vsel %vm403, %v402, 0
        %410 = vmatpush.msra.mxu0 0.0
        %411 = vmatpush.msra.mxu0 0.0
        %412 = vmatpush.msra.mxu0 0.0
        %413 = vmatpush.msra.mxu0 0.0
        %414 = vmatpush.msra.mxu0 0.0
        %415 = vmatpush.msra.mxu0 0.0
        %416 = vmatpush.msra.mxu0 0.0
        %417 = vmatpush.msra.mxu0 0.0
        %418 = vmatpush.msra.mxu0 0.0
        %419 = vmatpush.msra.mxu0 0.0
        %420 = vmatpush.msra.mxu0 0.0
        %421 = vmatpush.msra.mxu0 0.0
        %422 = vmatpush.msra.mxu0 0.0
        %423 = vmatpush.msra.mxu0 0.0
        %424 = vmatpush.msra.mxu0 %v400
        %425 = vmatpush.msra.mxu0 %v399
        %426 = vmatmul.f32.gmra.mxu0 %v405
        %v427 = vpop.f32.mrf.mxu0
        %v428 = vadd.f32 0.0, %v427
        %429 = vmatmul.f32.gmra.mxu0 %v408
        %v430 = vpop.f32.mrf.mxu0
        %v431 = vadd.f32 0.0, %v430
        %432 = vdwg.mxu0
        %v433 = vld [vmem:[#allocation2 + $0x30] sm:$0xff]
        %v434 = vld [vmem:[#allocation2 + $0x38] sm:$0xff]
        %v436 = vsel %vm403, %v433, 0
        %v439 = vsel %vm403, %v434, 0
        %441 = vmatpush.msra.mxu0 0.0
        %442 = vmatpush.msra.mxu0 0.0
        %443 = vmatpush.msra.mxu0 0.0
        %444 = vmatpush.msra.mxu0 0.0
        %445 = vmatpush.msra.mxu0 0.0
        %446 = vmatpush.msra.mxu0 0.0
        %447 = vmatpush.msra.mxu0 0.0
        %448 = vmatpush.msra.mxu0 0.0
        %449 = vmatpush.msra.mxu0 0.0
        %450 = vmatpush.msra.mxu0 0.0
        %451 = vmatpush.msra.mxu0 0.0
        %452 = vmatpush.msra.mxu0 0.0
        %453 = vmatpush.msra.mxu0 0.0
        %454 = vmatpush.msra.mxu0 0.0
        %455 = vmatpush.msra.mxu0 %v400
        %456 = vmatpush.msra.mxu0 %v399
        %457 = vmatmul.f32.gmra.mxu0 %v436
        %v458 = vpop.f32.mrf.mxu0
        %v459 = vadd.f32 0.0, %v458
        %460 = vmatmul.f32.gmra.mxu0 %v439
        %v461 = vpop.f32.mrf.mxu0
        %v462 = vadd.f32 0.0, %v461
        %463 = vdwg.mxu0
        %v464 = vld [vmem:[#allocation2 + $0x70] sm:$0x7f]
        %v465 = vld [vmem:[#allocation2 + $0x78] sm:$0x7f]
        %v467 = vsel %vm311, %v399, 0
        %v470 = vsel %vm311, %v400, 0
        %v473 = vsel %vm318, %v465, 0
        %475 = vmatpush.msra.mxu0 0.0
        %476 = vmatpush.msra.mxu0 0.0
        %477 = vmatpush.msra.mxu0 0.0
        %478 = vmatpush.msra.mxu0 0.0
        %479 = vmatpush.msra.mxu0 0.0
        %480 = vmatpush.msra.mxu0 0.0
        %481 = vmatpush.msra.mxu0 0.0
        %482 = vmatpush.msra.mxu0 0.0
        %483 = vmatpush.msra.mxu0 0.0
        %484 = vmatpush.msra.mxu0 0.0
        %485 = vmatpush.msra.mxu0 0.0
        %486 = vmatpush.msra.mxu0 0.0
        %487 = vmatpush.msra.mxu0 0.0
        %488 = vmatpush.msra.mxu0 0.0
        %489 = vmatpush.msra.mxu0 0.0
        %490 = vmatpush.msra.mxu0 %v473
        %491 = vmatmul.f32.gmra.mxu0 %v467
        %v492 = vpop.f32.mrf.mxu0
        %v493 = vadd.f32 0.0, %v492
        %494 = vmatmul.f32.gmra.mxu0 %v470
        %v495 = vpop.f32.mrf.mxu0
        %v496 = vadd.f32 0.0, %v495
        %497 = vdwg.mxu0
        %v499 = vsel %vm311, %v428, 0
        %v502 = vsel %vm311, %v431, 0
        %v505 = vsel %vm318, %v464, 0
        %507 = vmatpush.msra.mxu0 0.0
        %508 = vmatpush.msra.mxu0 0.0
        %509 = vmatpush.msra.mxu0 0.0
        %510 = vmatpush.msra.mxu0 0.0
        %511 = vmatpush.msra.mxu0 0.0
        %512 = vmatpush.msra.mxu0 0.0
        %513 = vmatpush.msra.mxu0 0.0
        %514 = vmatpush.msra.mxu0 0.0
        %515 = vmatpush.msra.mxu0 0.0
        %516 = vmatpush.msra.mxu0 0.0
        %517 = vmatpush.msra.mxu0 0.0
        %518 = vmatpush.msra.mxu0 0.0
        %519 = vmatpush.msra.mxu0 0.0
        %520 = vmatpush.msra.mxu0 0.0
        %521 = vmatpush.msra.mxu0 0.0
        %522 = vmatpush.msra.mxu0 %v505
        %523 = vmatmul.f32.gmra.mxu0 %v499
        %v524 = vpop.f32.mrf.mxu0
        %v525 = vadd.f32 %v493, %v524
        %526 = vmatmul.f32.gmra.mxu0 %v502
        %v527 = vpop.f32.mrf.mxu0
        %v528 = vadd.f32 %v496, %v527
        %529 = vdwg.mxu0
        %v530 = vld [vmem:[#allocation2 + $0x80] sm:$0x7f]
        %v532 = vsel %vm311, %v459, 0
        %v535 = vsel %vm311, %v462, 0
        %v538 = vsel %vm318, %v530, 0
        %540 = vmatpush.msra.mxu0 0.0
        %541 = vmatpush.msra.mxu0 0.0
        %542 = vmatpush.msra.mxu0 0.0
        %543 = vmatpush.msra.mxu0 0.0
        %544 = vmatpush.msra.mxu0 0.0
        %545 = vmatpush.msra.mxu0 0.0
        %546 = vmatpush.msra.mxu0 0.0
        %547 = vmatpush.msra.mxu0 0.0
        %548 = vmatpush.msra.mxu0 0.0
        %549 = vmatpush.msra.mxu0 0.0
        %550 = vmatpush.msra.mxu0 0.0
        %551 = vmatpush.msra.mxu0 0.0
        %552 = vmatpush.msra.mxu0 0.0
        %553 = vmatpush.msra.mxu0 0.0
        %554 = vmatpush.msra.mxu0 0.0
        %555 = vmatpush.msra.mxu0 %v538
        %556 = vmatmul.f32.gmra.mxu0 %v532
        %v557 = vpop.f32.mrf.mxu0
        %v558 = vadd.f32 0.0, %v557
        %559 = vmatmul.f32.gmra.mxu0 %v535
        %v560 = vpop.f32.mrf.mxu0
        %v561 = vadd.f32 0.0, %v560
        %562 = vdwg.mxu0
        %v563 = vadd.f32 %v525, %v558
        %v564 = vadd.f32 %v528, %v561
        %v565 = vld [vmem:[#allocation2 + $0x88] sm:$0xf]
        %vm566 = vcmask 31744
        %v568 = vsel %vm566, %v302, 0
        %v571 = vsel %vm566, %v303, 0
        %vm573 = vcmask 1043456
        %v575 = vsel %vm573, %v565, 0
        %577 = vmatpush.msra.mxu0 0.0
        %578 = vmatpush.msra.mxu0 0.0
        %579 = vmatpush.msra.mxu0 0.0
        %580 = vmatpush.msra.mxu0 0.0
        %581 = vmatpush.msra.mxu0 0.0
        %582 = vmatpush.msra.mxu0 0.0
        %583 = vmatpush.msra.mxu0 0.0
        %584 = vmatpush.msra.mxu0 0.0
        %585 = vmatpush.msra.mxu0 0.0
        %586 = vmatpush.msra.mxu0 0.0
        %587 = vmatpush.msra.mxu0 0.0
        %588 = vmatpush.msra.mxu0 0.0
        %589 = vmatpush.msra.mxu0 0.0
        %590 = vmatpush.msra.mxu0 0.0
        %591 = vmatpush.msra.mxu0 0.0
        %592 = vmatpush.msra.mxu0 %v575
        %593 = vmatmul.f32.gmra.mxu0 %v568
        %v594 = vpop.f32.mrf.mxu0
        %v595 = vadd.f32 0.0, %v594
        %596 = vmatmul.f32.gmra.mxu0 %v571
        %v597 = vpop.f32.mrf.mxu0
        %v598 = vadd.f32 0.0, %v597
        %599 = vdwg.mxu0
        %v600 = vadd.f32 %v563, %v595
        %v601 = vadd.f32 %v564, %v598
        %v602 = vld [vmem:[#allocation2] sm:$0xff]
        %v603 = vld [vmem:[#allocation2 + $0x8] sm:$0xff]
        %v604 = vadd.f32 %v600, %v602
        %v605 = vadd.f32 %v601, %v603
        %v606 = vld [vmem:[#allocation2 + $0xb0] sm:$0xff]
        %v607 = vld [vmem:[#allocation2 + $0xb8] sm:$0xff]
        %v608 = vld [vmem:[#allocation2 + $0xc0] sm:$0xff]
        %v609 = vld [vmem:[#allocation2 + $0xc8] sm:$0xff]
        %v610 = vld [vmem:[#allocation2 + $0xd0] sm:$0x1]
        %v611 = vperm.slane %v610, 0
        %vm612 = vcmask 261120
        %v614 = vsel %vm612, %v604, 0
        %v617 = vsel %vm612, %v605, 0
        %619 = vmatpush.msra.mxu0 0.0
        %620 = vmatpush.msra.mxu0 0.0
        %621 = vmatpush.msra.mxu0 0.0
        %622 = vmatpush.msra.mxu0 0.0
        %623 = vmatpush.msra.mxu0 0.0
        %624 = vmatpush.msra.mxu0 0.0
        %625 = vmatpush.msra.mxu0 0.0
        %626 = vmatpush.msra.mxu0 0.0
        %627 = vmatpush.msra.mxu0 0.0
        %628 = vmatpush.msra.mxu0 0.0
        %629 = vmatpush.msra.mxu0 0.0
        %630 = vmatpush.msra.mxu0 0.0
        %631 = vmatpush.msra.mxu0 %v609
        %632 = vmatpush.msra.mxu0 %v608
        %633 = vmatpush.msra.mxu0 %v607
        %634 = vmatpush.msra.mxu0 %v606
        %635 = vmatmul.f32.gmra.mxu0 %v614
        %v636 = vpop.f32.mrf.mxu0
        %v637 = vadd.f32 %v611, %v636
        %638 = vmatmul.f32.gmra.mxu0 %v617
        %v639 = vpop.f32.mrf.mxu0
        %v640 = vadd.f32 %v611, %v639
        %641 = vdwg.mxu0
        %v642 = vld [vmem:[#allocation2 + $0xd8] sm:$0xff]
        %v643 = vld [vmem:[#allocation2 + $0xe0] sm:$0xff]
        %v644 = vld [vmem:[#allocation2 + $0xe8] sm:$0xff]
        %v645 = vld [vmem:[#allocation2 + $0xf0] sm:$0xff]
        %v646 = vld [vmem:[#allocation2 + $0xf8] sm:$0x1]
        %649 = vrot.lane.b32.xlu0 %v637, 96
        %v650 = vpop.permute.xlu0 %649
        %651 = vrot.lane.b32.xlu0 %v640, 96
        %v652 = vpop.permute.xlu0 %651
        %vm653 = vcmask 64512
        %v654 = vsel %vm653, %v637, 0
        %v656 = vsel %vm653, %v640, 0
        %v658 = vsel %vm653, %v650, 0
        %v660 = vsel %vm653, %v652, 0
        %662 = vmatpush.xpose.msra.mxu0 0.0
        %663 = vmatpush.xpose.msra.mxu0 0.0
        %664 = vmatpush.xpose.msra.mxu0 0.0
        %665 = vmatpush.xpose.msra.mxu0 0.0
        %666 = vmatpush.xpose.msra.mxu0 0.0
        %667 = vmatpush.xpose.msra.mxu0 0.0
        %668 = vmatpush.xpose.msra.mxu0 0.0
        %669 = vmatpush.xpose.msra.mxu0 0.0
        %670 = vmatpush.xpose.msra.mxu0 0.0
        %671 = vmatpush.xpose.msra.mxu0 0.0
        %672 = vmatpush.xpose.msra.mxu0 0.0
        %673 = vmatpush.xpose.msra.mxu0 0.0
        %674 = vmatpush.xpose.msra.mxu0 0.0
        %675 = vmatpush.xpose.msra.mxu0 0.0
        %676 = vmatpush.xpose.msra.mxu0 %v660
        %677 = vmatpush.xpose.msra.mxu0 %v658
        %678 = vmatmul.f32.gmra.mxu0 %v654
        %v679 = vpop.f32.mrf.mxu0
        %v680 = vadd.f32 0.0, %v679
        %681 = vmatmul.f32.gmra.mxu0 %v656
        %v682 = vpop.f32.mrf.mxu0
        %v683 = vadd.f32 0.0, %v682
        %684 = vdwg.mxu0
        %v685 = vmul.f32 %v680, 0.35355338
        %v686 = vmul.f32 %v683, 0.35355338
        %v687 = vsel %vm403, %v685, -inf
        %688 = vmax.xlane.f32.xlu0 %v687
        %v689 = vpop.xlane.xlu0 %688
        %v690 = vsel %vm403, %v686, -inf
        %691 = vmax.xlane.f32.xlu0 %v690
        %v692 = vpop.xlane.xlu0 %691
        %v693 = vsub.f32 %v685, %v689
        %v694 = vsub.f32 %v686, %v692
        %v695 = vmul.f32 %v693, 1.442695
        %v696 = vpow.pop %v695
        %v697 = vmul.f32 %v694, 1.442695
        %v698 = vpow.pop %v697
        %v699 = vsel %vm403, %v696, 0.0
        %700 = vadd.xlane.f32.xlu0 %v699
        %v701 = vpop.xlane.xlu0 %700
        %v702 = vsel %vm403, %v698, 0.0
        %703 = vadd.xlane.f32.xlu0 %v702
        %v704 = vpop.xlane.xlu0 %703
        %v705 = vrcp.pop %v701
        %v706 = vmul.f32 %v701, %v705
        %v707 = vsub.f32 1.0, %v706
        %v708 = vmul.f32 %v705, %v707
        %v709 = vadd.f32 %v705, %v708
        %vm710 = vweird.f32 %v701
        %vm711 = vweird.f32 %v705
        %vm712 = vmor %vm710, %vm711
        %v713 = vsel %vm712, %v705, %v709
        %v714 = vand.u32 2147483647, %v701
        %vm715 = vcmp.eq.f32.partialorder %v714, 8.507059e+37
        %v716 = vand.u32 %v701, 2147483648
        %v717 = vor.u32 1.1754944e-38, %v716
        %v718 = vsel %vm715, %v717, %v713
        %v719 = vmul.f32 %v696, %v718
        %v720 = vrcp.pop %v704
        %v721 = vmul.f32 %v704, %v720
        %v722 = vsub.f32 1.0, %v721
        %v723 = vmul.f32 %v720, %v722
        %v724 = vadd.f32 %v720, %v723
        %vm725 = vweird.f32 %v704
        %vm726 = vweird.f32 %v720
        %vm727 = vmor %vm725, %vm726
        %v728 = vsel %vm727, %v720, %v724
        %v729 = vand.u32 2147483647, %v704
        %vm730 = vcmp.eq.f32.partialorder %v729, 8.507059e+37
        %v731 = vand.u32 %v704, 2147483648
        %v732 = vor.u32 1.1754944e-38, %v731
        %v733 = vsel %vm730, %v732, %v728
        %v734 = vmul.f32 %v698, %v733
        %735 = vrot.lane.b32.xlu0 %v637, 64
        %v736 = vpop.permute.xlu0 %735
        %737 = vrot.lane.b32.xlu0 %v640, 64
        %v738 = vpop.permute.xlu0 %737
        %v742 = vsel %vm403, %v719, 0
        %v745 = vsel %vm403, %v734, 0
        %747 = vmatpush.msra.mxu0 0.0
        %748 = vmatpush.msra.mxu0 0.0
        %749 = vmatpush.msra.mxu0 0.0
        %750 = vmatpush.msra.mxu0 0.0
        %751 = vmatpush.msra.mxu0 0.0
        %752 = vmatpush.msra.mxu0 0.0
        %753 = vmatpush.msra.mxu0 0.0
        %754 = vmatpush.msra.mxu0 0.0
        %755 = vmatpush.msra.mxu0 0.0
        %756 = vmatpush.msra.mxu0 0.0
        %757 = vmatpush.msra.mxu0 0.0
        %758 = vmatpush.msra.mxu0 0.0
        %759 = vmatpush.msra.mxu0 0.0
        %760 = vmatpush.msra.mxu0 0.0
        %761 = vmatpush.msra.mxu0 %v738
        %762 = vmatpush.msra.mxu0 %v736
        %763 = vmatmul.f32.gmra.mxu0 %v742
        %v764 = vpop.f32.mrf.mxu0
        %v765 = vadd.f32 0.0, %v764
        %766 = vmatmul.f32.gmra.mxu0 %v745
        %v767 = vpop.f32.mrf.mxu0
        %v768 = vadd.f32 0.0, %v767
        %769 = vdwg.mxu0
        %770 = vrot.lane.b32.xlu0 %v637, 120
        %v771 = vpop.permute.xlu0 %770
        %772 = vrot.lane.b32.xlu0 %v640, 120
        %v773 = vpop.permute.xlu0 %772
        %774 = vrot.lane.b32.xlu0 %v637, 88
        %v775 = vpop.permute.xlu0 %774
        %776 = vrot.lane.b32.xlu0 %v640, 88
        %v777 = vpop.permute.xlu0 %776
        %v778 = vsel %vm653, %v771, 0
        %v780 = vsel %vm653, %v773, 0
        %v782 = vsel %vm653, %v775, 0
        %v784 = vsel %vm653, %v777, 0
        %786 = vmatpush.xpose.msra.mxu0 0.0
        %787 = vmatpush.xpose.msra.mxu0 0.0
        %788 = vmatpush.xpose.msra.mxu0 0.0
        %789 = vmatpush.xpose.msra.mxu0 0.0
        %790 = vmatpush.xpose.msra.mxu0 0.0
        %791 = vmatpush.xpose.msra.mxu0 0.0
        %792 = vmatpush.xpose.msra.mxu0 0.0
        %793 = vmatpush.xpose.msra.mxu0 0.0
        %794 = vmatpush.xpose.msra.mxu0 0.0
        %795 = vmatpush.xpose.msra.mxu0 0.0
        %796 = vmatpush.xpose.msra.mxu0 0.0
        %797 = vmatpush.xpose.msra.mxu0 0.0
        %798 = vmatpush.xpose.msra.mxu0 0.0
        %799 = vmatpush.xpose.msra.mxu0 0.0
        %800 = vmatpush.xpose.msra.mxu0 %v784
        %801 = vmatpush.xpose.msra.mxu0 %v782
        %802 = vmatmul.f32.gmra.mxu0 %v778
        %v803 = vpop.f32.mrf.mxu0
        %v804 = vadd.f32 0.0, %v803
        %805 = vmatmul.f32.gmra.mxu0 %v780
        %v806 = vpop.f32.mrf.mxu0
        %v807 = vadd.f32 0.0, %v806
        %808 = vdwg.mxu0
        %v809 = vmul.f32 %v804, 0.35355338
        %v810 = vmul.f32 %v807, 0.35355338
        %v811 = vsel %vm403, %v809, -inf
        %812 = vmax.xlane.f32.xlu0 %v811
        %v813 = vpop.xlane.xlu0 %812
        %v814 = vsel %vm403, %v810, -inf
        %815 = vmax.xlane.f32.xlu0 %v814
        %v816 = vpop.xlane.xlu0 %815
        %v817 = vsub.f32 %v809, %v813
        %v818 = vsub.f32 %v810, %v816
        %v819 = vmul.f32 %v817, 1.442695
        %v820 = vpow.pop %v819
        %v821 = vmul.f32 %v818, 1.442695
        %v822 = vpow.pop %v821
        %v823 = vsel %vm403, %v820, 0.0
        %824 = vadd.xlane.f32.xlu0 %v823
        %v825 = vpop.xlane.xlu0 %824
        %v826 = vsel %vm403, %v822, 0.0
        %827 = vadd.xlane.f32.xlu0 %v826
        %v828 = vpop.xlane.xlu0 %827
        %v829 = vrcp.pop %v825
        %v830 = vmul.f32 %v825, %v829
        %v831 = vsub.f32 1.0, %v830
        %v832 = vmul.f32 %v829, %v831
        %v833 = vadd.f32 %v829, %v832
        %vm834 = vweird.f32 %v825
        %vm835 = vweird.f32 %v829
        %vm836 = vmor %vm834, %vm835
        %v837 = vsel %vm836, %v829, %v833
        %v838 = vand.u32 2147483647, %v825
        %vm839 = vcmp.eq.f32.partialorder %v838, 8.507059e+37
        %v840 = vand.u32 %v825, 2147483648
        %v841 = vor.u32 1.1754944e-38, %v840
        %v842 = vsel %vm839, %v841, %v837
        %v843 = vmul.f32 %v820, %v842
        %v844 = vrcp.pop %v828
        %v845 = vmul.f32 %v828, %v844
        %v846 = vsub.f32 1.0, %v845
        %v847 = vmul.f32 %v844, %v846
        %v848 = vadd.f32 %v844, %v847
        %vm849 = vweird.f32 %v828
        %vm850 = vweird.f32 %v844
        %vm851 = vmor %vm849, %vm850
        %v852 = vsel %vm851, %v844, %v848
        %v853 = vand.u32 2147483647, %v828
        %vm854 = vcmp.eq.f32.partialorder %v853, 8.507059e+37
        %v855 = vand.u32 %v828, 2147483648
        %v856 = vor.u32 1.1754944e-38, %v855
        %v857 = vsel %vm854, %v856, %v852
        %v858 = vmul.f32 %v822, %v857
        %859 = vrot.lane.b32.xlu0 %v637, 56
        %v860 = vpop.permute.xlu0 %859
        %861 = vrot.lane.b32.xlu0 %v640, 56
        %v862 = vpop.permute.xlu0 %861
        %v866 = vsel %vm403, %v843, 0
        %v869 = vsel %vm403, %v858, 0
        %871 = vmatpush.msra.mxu0 0.0
        %872 = vmatpush.msra.mxu0 0.0
        %873 = vmatpush.msra.mxu0 0.0
        %874 = vmatpush.msra.mxu0 0.0
        %875 = vmatpush.msra.mxu0 0.0
        %876 = vmatpush.msra.mxu0 0.0
        %877 = vmatpush.msra.mxu0 0.0
        %878 = vmatpush.msra.mxu0 0.0
        %879 = vmatpush.msra.mxu0 0.0
        %880 = vmatpush.msra.mxu0 0.0
        %881 = vmatpush.msra.mxu0 0.0
        %882 = vmatpush.msra.mxu0 0.0
        %883 = vmatpush.msra.mxu0 0.0
        %884 = vmatpush.msra.mxu0 0.0
        %885 = vmatpush.msra.mxu0 %v862
        %886 = vmatpush.msra.mxu0 %v860
        %887 = vmatmul.f32.gmra.mxu0 %v866
        %v888 = vpop.f32.mrf.mxu0
        %v889 = vadd.f32 0.0, %v888
        %890 = vmatmul.f32.gmra.mxu0 %v869
        %v891 = vpop.f32.mrf.mxu0
        %v892 = vadd.f32 0.0, %v891
        %893 = vdwg.mxu0
        %v895 = vsel %vm653, %v889, 0
        %v898 = vsel %vm653, %v892, 0
        %900 = vmatpush.msra.mxu0 0.0
        %901 = vmatpush.msra.mxu0 0.0
        %902 = vmatpush.msra.mxu0 0.0
        %903 = vmatpush.msra.mxu0 0.0
        %904 = vmatpush.msra.mxu0 0.0
        %905 = vmatpush.msra.mxu0 0.0
        %906 = vmatpush.msra.mxu0 0.0
        %907 = vmatpush.msra.mxu0 0.0
        %908 = vmatpush.msra.mxu0 0.0
        %909 = vmatpush.msra.mxu0 0.0
        %910 = vmatpush.msra.mxu0 0.0
        %911 = vmatpush.msra.mxu0 0.0
        %912 = vmatpush.msra.mxu0 0.0
        %913 = vmatpush.msra.mxu0 0.0
        %914 = vmatpush.msra.mxu0 0.0
        %915 = vmatpush.msra.mxu0 %v643
        %916 = vmatmul.f32.gmra.mxu0 %v895
        %v917 = vpop.f32.mrf.mxu0
        %v918 = vadd.f32 0.0, %v917
        %919 = vmatmul.f32.gmra.mxu0 %v898
        %v920 = vpop.f32.mrf.mxu0
        %v921 = vadd.f32 0.0, %v920
        %922 = vdwg.mxu0
        %v924 = vsel %vm653, %v765, 0
        %v927 = vsel %vm653, %v768, 0
        %929 = vmatpush.msra.mxu0 0.0
        %930 = vmatpush.msra.mxu0 0.0
        %931 = vmatpush.msra.mxu0 0.0
        %932 = vmatpush.msra.mxu0 0.0
        %933 = vmatpush.msra.mxu0 0.0
        %934 = vmatpush.msra.mxu0 0.0
        %935 = vmatpush.msra.mxu0 0.0
        %936 = vmatpush.msra.mxu0 0.0
        %937 = vmatpush.msra.mxu0 0.0
        %938 = vmatpush.msra.mxu0 0.0
        %939 = vmatpush.msra.mxu0 0.0
        %940 = vmatpush.msra.mxu0 0.0
        %941 = vmatpush.msra.mxu0 0.0
        %942 = vmatpush.msra.mxu0 0.0
        %943 = vmatpush.msra.mxu0 0.0
        %944 = vmatpush.msra.mxu0 %v642
        %945 = vmatmul.f32.gmra.mxu0 %v924
        %v946 = vpop.f32.mrf.mxu0
        %v947 = vadd.f32 %v918, %v946
        %948 = vmatmul.f32.gmra.mxu0 %v927
        %v949 = vpop.f32.mrf.mxu0
        %v950 = vadd.f32 %v921, %v949
        %951 = vdwg.mxu0
        %952 = vrot.lane.b32.xlu0 %v637, 112
        %v953 = vpop.permute.xlu0 %952
        %954 = vrot.lane.b32.xlu0 %v640, 112
        %v955 = vpop.permute.xlu0 %954
        %956 = vrot.lane.b32.xlu0 %v637, 80
        %v957 = vpop.permute.xlu0 %956
        %958 = vrot.lane.b32.xlu0 %v640, 80
        %v959 = vpop.permute.xlu0 %958
        %v960 = vsel %vm653, %v953, 0
        %v962 = vsel %vm653, %v955, 0
        %v964 = vsel %vm653, %v957, 0
        %v966 = vsel %vm653, %v959, 0
        %968 = vmatpush.xpose.msra.mxu0 0.0
        %969 = vmatpush.xpose.msra.mxu0 0.0
        %970 = vmatpush.xpose.msra.mxu0 0.0
        %971 = vmatpush.xpose.msra.mxu0 0.0
        %972 = vmatpush.xpose.msra.mxu0 0.0
        %973 = vmatpush.xpose.msra.mxu0 0.0
        %974 = vmatpush.xpose.msra.mxu0 0.0
        %975 = vmatpush.xpose.msra.mxu0 0.0
        %976 = vmatpush.xpose.msra.mxu0 0.0
        %977 = vmatpush.xpose.msra.mxu0 0.0
        %978 = vmatpush.xpose.msra.mxu0 0.0
        %979 = vmatpush.xpose.msra.mxu0 0.0
        %980 = vmatpush.xpose.msra.mxu0 0.0
        %981 = vmatpush.xpose.msra.mxu0 0.0
        %982 = vmatpush.xpose.msra.mxu0 %v966
        %983 = vmatpush.xpose.msra.mxu0 %v964
        %984 = vmatmul.f32.gmra.mxu0 %v960
        %v985 = vpop.f32.mrf.mxu0
        %v986 = vadd.f32 0.0, %v985
        %987 = vmatmul.f32.gmra.mxu0 %v962
        %v988 = vpop.f32.mrf.mxu0
        %v989 = vadd.f32 0.0, %v988
        %990 = vdwg.mxu0
        %v991 = vmul.f32 %v986, 0.35355338
        %v992 = vmul.f32 %v989, 0.35355338
        %v993 = vsel %vm403, %v991, -inf
        %994 = vmax.xlane.f32.xlu0 %v993
        %v995 = vpop.xlane.xlu0 %994
        %v996 = vsel %vm403, %v992, -inf
        %997 = vmax.xlane.f32.xlu0 %v996
        %v998 = vpop.xlane.xlu0 %997
        %v999 = vsub.f32 %v991, %v995
        %v1000 = vsub.f32 %v992, %v998
        %v1001 = vmul.f32 %v999, 1.442695
        %v1002 = vpow.pop %v1001
        %v1003 = vmul.f32 %v1000, 1.442695
        %v1004 = vpow.pop %v1003
        %v1005 = vsel %vm403, %v1002, 0.0
        %1006 = vadd.xlane.f32.xlu0 %v1005
        %v1007 = vpop.xlane.xlu0 %1006
        %v1008 = vsel %vm403, %v1004, 0.0
        %1009 = vadd.xlane.f32.xlu0 %v1008
        %v1010 = vpop.xlane.xlu0 %1009
        %v1011 = vrcp.pop %v1007
        %v1012 = vmul.f32 %v1007, %v1011
        %v1013 = vsub.f32 1.0, %v1012
        %v1014 = vmul.f32 %v1011, %v1013
        %v1015 = vadd.f32 %v1011, %v1014
        %vm1016 = vweird.f32 %v1007
        %vm1017 = vweird.f32 %v1011
        %vm1018 = vmor %vm1016, %vm1017
        %v1019 = vsel %vm1018, %v1011, %v1015
        %v1020 = vand.u32 2147483647, %v1007
        %vm1021 = vcmp.eq.f32.partialorder %v1020, 8.507059e+37
        %v1022 = vand.u32 %v1007, 2147483648
        %v1023 = vor.u32 1.1754944e-38, %v1022
        %v1024 = vsel %vm1021, %v1023, %v1019
        %v1025 = vmul.f32 %v1002, %v1024
        %v1026 = vrcp.pop %v1010
        %v1027 = vmul.f32 %v1010, %v1026
        %v1028 = vsub.f32 1.0, %v1027
        %v1029 = vmul.f32 %v1026, %v1028
        %v1030 = vadd.f32 %v1026, %v1029
        %vm1031 = vweird.f32 %v1010
        %vm1032 = vweird.f32 %v1026
        %vm1033 = vmor %vm1031, %vm1032
        %v1034 = vsel %vm1033, %v1026, %v1030
        %v1035 = vand.u32 2147483647, %v1010
        %vm1036 = vcmp.eq.f32.partialorder %v1035, 8.507059e+37
        %v1037 = vand.u32 %v1010, 2147483648
        %v1038 = vor.u32 1.1754944e-38, %v1037
        %v1039 = vsel %vm1036, %v1038, %v1034
        %v1040 = vmul.f32 %v1004, %v1039
        %1041 = vrot.lane.b32.xlu0 %v637, 48
        %v1042 = vpop.permute.xlu0 %1041
        %1043 = vrot.lane.b32.xlu0 %v640, 48
        %v1044 = vpop.permute.xlu0 %1043
        %v1048 = vsel %vm403, %v1025, 0
        %v1051 = vsel %vm403, %v1040, 0
        %1053 = vmatpush.msra.mxu0 0.0
        %1054 = vmatpush.msra.mxu0 0.0
        %1055 = vmatpush.msra.mxu0 0.0
        %1056 = vmatpush.msra.mxu0 0.0
        %1057 = vmatpush.msra.mxu0 0.0
        %1058 = vmatpush.msra.mxu0 0.0
        %1059 = vmatpush.msra.mxu0 0.0
        %1060 = vmatpush.msra.mxu0 0.0
        %1061 = vmatpush.msra.mxu0 0.0
        %1062 = vmatpush.msra.mxu0 0.0
        %1063 = vmatpush.msra.mxu0 0.0
        %1064 = vmatpush.msra.mxu0 0.0
        %1065 = vmatpush.msra.mxu0 0.0
        %1066 = vmatpush.msra.mxu0 0.0
        %1067 = vmatpush.msra.mxu0 %v1044
        %1068 = vmatpush.msra.mxu0 %v1042
        %1069 = vmatmul.f32.gmra.mxu0 %v1048
        %v1070 = vpop.f32.mrf.mxu0
        %v1071 = vadd.f32 0.0, %v1070
        %1072 = vmatmul.f32.gmra.mxu0 %v1051
        %v1073 = vpop.f32.mrf.mxu0
        %v1074 = vadd.f32 0.0, %v1073
        %1075 = vdwg.mxu0
        %v1077 = vsel %vm653, %v1071, 0
        %v1080 = vsel %vm653, %v1074, 0
        %1082 = vmatpush.msra.mxu0 0.0
        %1083 = vmatpush.msra.mxu0 0.0
        %1084 = vmatpush.msra.mxu0 0.0
        %1085 = vmatpush.msra.mxu0 0.0
        %1086 = vmatpush.msra.mxu0 0.0
        %1087 = vmatpush.msra.mxu0 0.0
        %1088 = vmatpush.msra.mxu0 0.0
        %1089 = vmatpush.msra.mxu0 0.0
        %1090 = vmatpush.msra.mxu0 0.0
        %1091 = vmatpush.msra.mxu0 0.0
        %1092 = vmatpush.msra.mxu0 0.0
        %1093 = vmatpush.msra.mxu0 0.0
        %1094 = vmatpush.msra.mxu0 0.0
        %1095 = vmatpush.msra.mxu0 0.0
        %1096 = vmatpush.msra.mxu0 0.0
        %1097 = vmatpush.msra.mxu0 %v644
        %1098 = vmatmul.f32.gmra.mxu0 %v1077
        %v1099 = vpop.f32.mrf.mxu0
        %v1100 = vadd.f32 0.0, %v1099
        %1101 = vmatmul.f32.gmra.mxu0 %v1080
        %v1102 = vpop.f32.mrf.mxu0
        %v1103 = vadd.f32 0.0, %v1102
        %1104 = vdwg.mxu0
        %v1105 = vadd.f32 %v947, %v1100
        %v1106 = vadd.f32 %v950, %v1103
        %1107 = vrot.lane.b32.xlu0 %v637, 104
        %v1108 = vpop.permute.xlu0 %1107
        %1109 = vrot.lane.b32.xlu0 %v640, 104
        %v1110 = vpop.permute.xlu0 %1109
        %1111 = vrot.lane.b32.xlu0 %v637, 72
        %v1112 = vpop.permute.xlu0 %1111
        %1113 = vrot.lane.b32.xlu0 %v640, 72
        %v1114 = vpop.permute.xlu0 %1113
        %v1115 = vsel %vm653, %v1108, 0
        %v1117 = vsel %vm653, %v1110, 0
        %v1119 = vsel %vm653, %v1112, 0
        %v1121 = vsel %vm653, %v1114, 0
        %1123 = vmatpush.xpose.msra.mxu0 0.0
        %1124 = vmatpush.xpose.msra.mxu0 0.0
        %1125 = vmatpush.xpose.msra.mxu0 0.0
        %1126 = vmatpush.xpose.msra.mxu0 0.0
        %1127 = vmatpush.xpose.msra.mxu0 0.0
        %1128 = vmatpush.xpose.msra.mxu0 0.0
        %1129 = vmatpush.xpose.msra.mxu0 0.0
        %1130 = vmatpush.xpose.msra.mxu0 0.0
        %1131 = vmatpush.xpose.msra.mxu0 0.0
        %1132 = vmatpush.xpose.msra.mxu0 0.0
        %1133 = vmatpush.xpose.msra.mxu0 0.0
        %1134 = vmatpush.xpose.msra.mxu0 0.0
        %1135 = vmatpush.xpose.msra.mxu0 0.0
        %1136 = vmatpush.xpose.msra.mxu0 0.0
        %1137 = vmatpush.xpose.msra.mxu0 %v1121
        %1138 = vmatpush.xpose.msra.mxu0 %v1119
        %1139 = vmatmul.f32.gmra.mxu0 %v1115
        %v1140 = vpop.f32.mrf.mxu0
        %v1141 = vadd.f32 0.0, %v1140
        %1142 = vmatmul.f32.gmra.mxu0 %v1117
        %v1143 = vpop.f32.mrf.mxu0
        %v1144 = vadd.f32 0.0, %v1143
        %1145 = vdwg.mxu0
        %v1146 = vmul.f32 %v1141, 0.35355338
        %v1147 = vmul.f32 %v1144, 0.35355338
        %v1148 = vsel %vm403, %v1146, -inf
        %1149 = vmax.xlane.f32.xlu0 %v1148
        %v1150 = vpop.xlane.xlu0 %1149
        %v1151 = vsel %vm403, %v1147, -inf
        %1152 = vmax.xlane.f32.xlu0 %v1151
        %v1153 = vpop.xlane.xlu0 %1152
        %v1154 = vsub.f32 %v1146, %v1150
        %v1155 = vsub.f32 %v1147, %v1153
        %v1156 = vmul.f32 %v1154, 1.442695
        %v1157 = vpow.pop %v1156
        %v1158 = vmul.f32 %v1155, 1.442695
        %v1159 = vpow.pop %v1158
        %v1160 = vsel %vm403, %v1157, 0.0
        %1161 = vadd.xlane.f32.xlu0 %v1160
        %v1162 = vpop.xlane.xlu0 %1161
        %v1163 = vsel %vm403, %v1159, 0.0
        %1164 = vadd.xlane.f32.xlu0 %v1163
        %v1165 = vpop.xlane.xlu0 %1164
        %v1166 = vrcp.pop %v1162
        %v1167 = vmul.f32 %v1162, %v1166
        %v1168 = vsub.f32 1.0, %v1167
        %v1169 = vmul.f32 %v1166, %v1168
        %v1170 = vadd.f32 %v1166, %v1169
        %vm1171 = vweird.f32 %v1162
        %vm1172 = vweird.f32 %v1166
        %vm1173 = vmor %vm1171, %vm1172
        %v1174 = vsel %vm1173, %v1166, %v1170
        %v1175 = vand.u32 2147483647, %v1162
        %vm1176 = vcmp.eq.f32.partialorder %v1175, 8.507059e+37
        %v1177 = vand.u32 %v1162, 2147483648
        %v1178 = vor.u32 1.1754944e-38, %v1177
        %v1179 = vsel %vm1176, %v1178, %v1174
        %v1180 = vmul.f32 %v1157, %v1179
        %v1181 = vrcp.pop %v1165
        %v1182 = vmul.f32 %v1165, %v1181
        %v1183 = vsub.f32 1.0, %v1182
        %v1184 = vmul.f32 %v1181, %v1183
        %v1185 = vadd.f32 %v1181, %v1184
        %vm1186 = vweird.f32 %v1165
        %vm1187 = vweird.f32 %v1181
        %vm1188 = vmor %vm1186, %vm1187
        %v1189 = vsel %vm1188, %v1181, %v1185
        %v1190 = vand.u32 2147483647, %v1165
        %vm1191 = vcmp.eq.f32.partialorder %v1190, 8.507059e+37
        %v1192 = vand.u32 %v1165, 2147483648
        %v1193 = vor.u32 1.1754944e-38, %v1192
        %v1194 = vsel %vm1191, %v1193, %v1189
        %v1195 = vmul.f32 %v1159, %v1194
        %1196 = vrot.lane.b32.xlu0 %v637, 40
        %v1197 = vpop.permute.xlu0 %1196
        %1198 = vrot.lane.b32.xlu0 %v640, 40
        %v1199 = vpop.permute.xlu0 %1198
        %v1203 = vsel %vm403, %v1180, 0
        %v1206 = vsel %vm403, %v1195, 0
        %1208 = vmatpush.msra.mxu0 0.0
        %1209 = vmatpush.msra.mxu0 0.0
        %1210 = vmatpush.msra.mxu0 0.0
        %1211 = vmatpush.msra.mxu0 0.0
        %1212 = vmatpush.msra.mxu0 0.0
        %1213 = vmatpush.msra.mxu0 0.0
        %1214 = vmatpush.msra.mxu0 0.0
        %1215 = vmatpush.msra.mxu0 0.0
        %1216 = vmatpush.msra.mxu0 0.0
        %1217 = vmatpush.msra.mxu0 0.0
        %1218 = vmatpush.msra.mxu0 0.0
        %1219 = vmatpush.msra.mxu0 0.0
        %1220 = vmatpush.msra.mxu0 0.0
        %1221 = vmatpush.msra.mxu0 0.0
        %1222 = vmatpush.msra.mxu0 %v1199
        %1223 = vmatpush.msra.mxu0 %v1197
        %1224 = vmatmul.f32.gmra.mxu0 %v1203
        %v1225 = vpop.f32.mrf.mxu0
        %v1226 = vadd.f32 0.0, %v1225
        %1227 = vmatmul.f32.gmra.mxu0 %v1206
        %v1228 = vpop.f32.mrf.mxu0
        %v1229 = vadd.f32 0.0, %v1228
        %1230 = vdwg.mxu0
        %v1232 = vsel %vm653, %v1226, 0
        %v1235 = vsel %vm653, %v1229, 0
        %1237 = vmatpush.msra.mxu0 0.0
        %1238 = vmatpush.msra.mxu0 0.0
        %1239 = vmatpush.msra.mxu0 0.0
        %1240 = vmatpush.msra.mxu0 0.0
        %1241 = vmatpush.msra.mxu0 0.0
        %1242 = vmatpush.msra.mxu0 0.0
        %1243 = vmatpush.msra.mxu0 0.0
        %1244 = vmatpush.msra.mxu0 0.0
        %1245 = vmatpush.msra.mxu0 0.0
        %1246 = vmatpush.msra.mxu0 0.0
        %1247 = vmatpush.msra.mxu0 0.0
        %1248 = vmatpush.msra.mxu0 0.0
        %1249 = vmatpush.msra.mxu0 0.0
        %1250 = vmatpush.msra.mxu0 0.0
        %1251 = vmatpush.msra.mxu0 0.0
        %1252 = vmatpush.msra.mxu0 %v645
        %1253 = vmatmul.f32.gmra.mxu0 %v1232
        %v1254 = vpop.f32.mrf.mxu0
        %v1255 = vadd.f32 0.0, %v1254
        %1256 = vmatmul.f32.gmra.mxu0 %v1235
        %v1257 = vpop.f32.mrf.mxu0
        %v1258 = vadd.f32 0.0, %v1257
        %1259 = vdwg.mxu0
        %v1260 = vadd.f32 %v1105, %v1255
        %v1261 = vadd.f32 %v1106, %v1258
        %v1262 = vperm.slane %v646, 0
        %v1263 = vadd.f32 %v1260, %v1262
        %v1264 = vadd.f32 %v1261, %v1262
        %v1265 = vadd.f32 %v604, %v1263
        %v1266 = vadd.f32 %v605, %v1264
        %v1267 = vld [vmem:[#allocation2 + $0x100] sm:$0x1]
        %v1268 = vld [vmem:[#allocation2 + $0x108] sm:$0x1]
        %v1269 = vsel %vm612, %v1265, 0.0
        %1270 = vadd.xlane.f32.xlu0 %v1269
        %v1271 = vpop.xlane.xlu0 %1270
        %v1272 = vsel %vm612, %v1266, 0.0
        %1273 = vadd.xlane.f32.xlu0 %v1272
        %v1274 = vpop.xlane.xlu0 %1273
        %v1275 = vrcp.pop 32.0
        %v1276 = vmul.f32 32.0, %v1275
        %v1277 = vsub.f32 1.0, %v1276
        %v1278 = vmul.f32 %v1275, %v1277
        %v1279 = vadd.f32 %v1275, %v1278
        %vm1280 = vweird.f32 %v1275
        %v1281 = vsel %vm1280, %v1275, %v1279
        %v1282 = vmul.f32 %v1271, %v1281
        %v1283 = vmul.f32 %v1274, %v1281
        %v1284 = vsub.f32 %v1265, %v1282
        %v1285 = vsub.f32 %v1266, %v1283
        %v1286 = vmul.f32 %v1284, %v1284
        %v1287 = vmul.f32 %v1285, %v1285
        %v1288 = vsel %vm612, %v1286, 0.0
        %1289 = vadd.xlane.f32.xlu0 %v1288
        %v1290 = vpop.xlane.xlu0 %1289
        %v1291 = vsel %vm612, %v1287, 0.0
        %1292 = vadd.xlane.f32.xlu0 %v1291
        %v1293 = vpop.xlane.xlu0 %1292
        %v1294 = vmul.f32 %v1290, %v1281
        %v1295 = vmul.f32 %v1293, %v1281
        %v1296 = vadd.f32 %v1294, 1e-05
        %v1297 = vadd.f32 %v1295, 1e-05
        %v1298 = vrsqrt.pop %v1296
        %v1299 = vmul.f32 %v1298, %v1296
        %v1300 = vmul.f32 %v1299, %v1298
        %v1301 = vmul.f32 0.5, %v1300
        %v1302 = vsub.f32 1.5, %v1301
        %v1303 = vmul.f32 %v1298, %v1302
        %vm1304 = vweird.f32 %v1296
        %vm1305 = vweird.f32 %v1298
        %vm1306 = vmor %vm1304, %vm1305
        %v1307 = vsel %vm1306, %v1298, %v1303
        %v1308 = vrsqrt.pop %v1297
        %v1309 = vmul.f32 %v1308, %v1297
        %v1310 = vmul.f32 %v1309, %v1308
        %v1311 = vmul.f32 0.5, %v1310
        %v1312 = vsub.f32 1.5, %v1311
        %v1313 = vmul.f32 %v1308, %v1312
        %vm1314 = vweird.f32 %v1297
        %vm1315 = vweird.f32 %v1308
        %vm1316 = vmor %vm1314, %vm1315
        %v1317 = vsel %vm1316, %v1308, %v1313
        %v1318 = vmul.f32 %v1284, %v1307
        %v1319 = vmul.f32 %v1285, %v1317
        %v1320 = vperm.slane %v1267, 0
        %v1321 = vmul.f32 %v1318, %v1320
        %v1322 = vmul.f32 %v1319, %v1320
        %v1323 = vperm.slane %v1268, 0
        %v1324 = vadd.f32 %v1321, %v1323
        %v1325 = vadd.f32 %v1322, %v1323
        %v1326 = vld [vmem:[#allocation2 + $0x110] sm:$0xff]
        %v1327 = vld [vmem:[#allocation2 + $0x118] sm:$0xff]
        %v1328 = vld [vmem:[#allocation2 + $0x120] sm:$0xff]
        %v1329 = vld [vmem:[#allocation2 + $0x128] sm:$0xff]
        %v1330 = vld [vmem:[#allocation2 + $0x130] sm:$0x1]
        %v1331 = vperm.slane %v1330, 0
        %v1333 = vsel %vm612, %v1324, 0
        %v1336 = vsel %vm612, %v1325, 0
        %1338 = vmatpush.msra.mxu0 0.0
        %1339 = vmatpush.msra.mxu0 0.0
        %1340 = vmatpush.msra.mxu0 0.0
        %1341 = vmatpush.msra.mxu0 0.0
        %1342 = vmatpush.msra.mxu0 0.0
        %1343 = vmatpush.msra.mxu0 0.0
        %1344 = vmatpush.msra.mxu0 0.0
        %1345 = vmatpush.msra.mxu0 0.0
        %1346 = vmatpush.msra.mxu0 0.0
        %1347 = vmatpush.msra.mxu0 0.0
        %1348 = vmatpush.msra.mxu0 0.0
        %1349 = vmatpush.msra.mxu0 0.0
        %1350 = vmatpush.msra.mxu0 %v1329
        %1351 = vmatpush.msra.mxu0 %v1328
        %1352 = vmatpush.msra.mxu0 %v1327
        %1353 = vmatpush.msra.mxu0 %v1326
        %1354 = vmatmul.f32.gmra.mxu0 %v1333
        %v1355 = vpop.f32.mrf.mxu0
        %v1356 = vadd.f32 %v1331, %v1355
        %1357 = vmatmul.f32.gmra.mxu0 %v1336
        %v1358 = vpop.f32.mrf.mxu0
        %v1359 = vadd.f32 %v1331, %v1358
        %1360 = vdwg.mxu0
        %v1361 = vmax.f32 %v1356, 0.0
        %v1362 = vmax.f32 %v1359, 0.0
        %v1363 = vld [vmem:[#allocation2 + $0x138] sm:$0xff]
        %v1364 = vld [vmem:[#allocation2 + $0x140] sm:$0xff]
        %v1365 = vld [vmem:[#allocation2 + $0x148] sm:$0xff]
        %v1366 = vld [vmem:[#allocation2 + $0x150] sm:$0xff]
        %v1367 = vld [vmem:[#allocation2 + $0x158] sm:$0xff]
        %v1368 = vld [vmem:[#allocation2 + $0x160] sm:$0xff]
        %v1369 = vld [vmem:[#allocation2 + $0x168] sm:$0xff]
        %v1370 = vld [vmem:[#allocation2 + $0x170] sm:$0xff]
        %v1371 = vld [vmem:[#allocation2 + $0x178] sm:$0x1]
        %v1372 = vperm.slane %v1371, 0
        %vm1373 = vcmask 523264
        %v1375 = vsel %vm1373, %v1361, 0
        %v1378 = vsel %vm1373, %v1362, 0
        %1380 = vmatpush.msra.mxu0 0.0
        %1381 = vmatpush.msra.mxu0 0.0
        %1382 = vmatpush.msra.mxu0 0.0
        %1383 = vmatpush.msra.mxu0 0.0
        %1384 = vmatpush.msra.mxu0 0.0
        %1385 = vmatpush.msra.mxu0 0.0
        %1386 = vmatpush.msra.mxu0 0.0
        %1387 = vmatpush.msra.mxu0 0.0
        %1388 = vmatpush.msra.mxu0 %v1370
        %1389 = vmatpush.msra.mxu0 %v1369
        %1390 = vmatpush.msra.mxu0 %v1368
        %1391 = vmatpush.msra.mxu0 %v1367
        %1392 = vmatpush.msra.mxu0 %v1366
        %1393 = vmatpush.msra.mxu0 %v1365
        %1394 = vmatpush.msra.mxu0 %v1364
        %1395 = vmatpush.msra.mxu0 %v1363
        %1396 = vmatmul.f32.gmra.mxu0 %v1375
        %v1397 = vpop.f32.mrf.mxu0
        %v1398 = vadd.f32 %v1372, %v1397
        %1399 = vmatmul.f32.gmra.mxu0 %v1378
        %v1400 = vpop.f32.mrf.mxu0
        %v1401 = vadd.f32 %v1372, %v1400
        %1402 = vdwg.mxu0
        %v1403 = vadd.f32 %v1324, %v1398
        %v1404 = vadd.f32 %v1325, %v1401
        %v1405 = vld [vmem:[#allocation2 + $0x180] sm:$0x1]
        %v1406 = vld [vmem:[#allocation2 + $0x188] sm:$0x1]
        %v1407 = vsel %vm612, %v1403, 0.0
        %1408 = vadd.xlane.f32.xlu0 %v1407
        %v1409 = vpop.xlane.xlu0 %1408
        %v1410 = vsel %vm612, %v1404, 0.0
        %1411 = vadd.xlane.f32.xlu0 %v1410
        %v1412 = vpop.xlane.xlu0 %1411
        %v1413 = vmul.f32 %v1409, %v1281
        %v1414 = vmul.f32 %v1412, %v1281
        %v1415 = vsub.f32 %v1403, %v1413
        %v1416 = vsub.f32 %v1404, %v1414
        %v1417 = vmul.f32 %v1415, %v1415
        %v1418 = vmul.f32 %v1416, %v1416
        %v1419 = vsel %vm612, %v1417, 0.0
        %1420 = vadd.xlane.f32.xlu0 %v1419
        %v1421 = vpop.xlane.xlu0 %1420
        %v1422 = vsel %vm612, %v1418, 0.0
        %1423 = vadd.xlane.f32.xlu0 %v1422
        %v1424 = vpop.xlane.xlu0 %1423
        %v1425 = vmul.f32 %v1421, %v1281
        %v1426 = vmul.f32 %v1424, %v1281
        %v1427 = vadd.f32 %v1425, 1e-05
        %v1428 = vadd.f32 %v1426, 1e-05
        %v1429 = vrsqrt.pop %v1427
        %v1430 = vmul.f32 %v1429, %v1427
        %v1431 = vmul.f32 %v1430, %v1429
        %v1432 = vmul.f32 0.5, %v1431
        %v1433 = vsub.f32 1.5, %v1432
        %v1434 = vmul.f32 %v1429, %v1433
        %vm1435 = vweird.f32 %v1427
        %vm1436 = vweird.f32 %v1429
        %vm1437 = vmor %vm1435, %vm1436
        %v1438 = vsel %vm1437, %v1429, %v1434
        %v1439 = vrsqrt.pop %v1428
        %v1440 = vmul.f32 %v1439, %v1428
        %v1441 = vmul.f32 %v1440, %v1439
        %v1442 = vmul.f32 0.5, %v1441
        %v1443 = vsub.f32 1.5, %v1442
        %v1444 = vmul.f32 %v1439, %v1443
        %vm1445 = vweird.f32 %v1428
        %vm1446 = vweird.f32 %v1439
        %vm1447 = vmor %vm1445, %vm1446
        %v1448 = vsel %vm1447, %v1439, %v1444
        %v1449 = vmul.f32 %v1415, %v1438
        %v1450 = vmul.f32 %v1416, %v1448
        %v1451 = vperm.slane %v1405, 0
        %v1452 = vmul.f32 %v1449, %v1451
        %v1453 = vmul.f32 %v1450, %v1451
        %v1454 = vperm.slane %v1406, 0
        %v1455 = vadd.f32 %v1452, %v1454
        %v1456 = vadd.f32 %v1453, %v1454
        %v1457 = vld [vmem:[#allocation2 + $0x190] sm:$0x1]
        %v1458 = vld [vmem:[#allocation2 + $0x198] sm:$0x1]
        %v1459 = vsel %vm612, %v1455, 0.0
        %1460 = vadd.xlane.f32.xlu0 %v1459
        %v1461 = vpop.xlane.xlu0 %1460
        %v1462 = vsel %vm612, %v1456, 0.0
        %1463 = vadd.xlane.f32.xlu0 %v1462
        %v1464 = vpop.xlane.xlu0 %1463
        %v1465 = vmul.f32 %v1461, %v1281
        %v1466 = vmul.f32 %v1464, %v1281
        %v1467 = vsub.f32 %v1455, %v1465
        %v1468 = vsub.f32 %v1456, %v1466
        %v1469 = vmul.f32 %v1467, %v1467
        %v1470 = vmul.f32 %v1468, %v1468
        %v1471 = vsel %vm612, %v1469, 0.0
        %1472 = vadd.xlane.f32.xlu0 %v1471
        %v1473 = vpop.xlane.xlu0 %1472
        %v1474 = vsel %vm612, %v1470, 0.0
        %1475 = vadd.xlane.f32.xlu0 %v1474
        %v1476 = vpop.xlane.xlu0 %1475
        %v1477 = vmul.f32 %v1473, %v1281
        %v1478 = vmul.f32 %v1476, %v1281
        %v1479 = vadd.f32 %v1477, 1e-05
        %v1480 = vadd.f32 %v1478, 1e-05
        %v1481 = vrsqrt.pop %v1479
        %v1482 = vmul.f32 %v1481, %v1479
        %v1483 = vmul.f32 %v1482, %v1481
        %v1484 = vmul.f32 0.5, %v1483
        %v1485 = vsub.f32 1.5, %v1484
        %v1486 = vmul.f32 %v1481, %v1485
        %vm1487 = vweird.f32 %v1479
        %vm1488 = vweird.f32 %v1481
        %vm1489 = vmor %vm1487, %vm1488
        %v1490 = vsel %vm1489, %v1481, %v1486
        %v1491 = vrsqrt.pop %v1480
        %v1492 = vmul.f32 %v1491, %v1480
        %v1493 = vmul.f32 %v1492, %v1491
        %v1494 = vmul.f32 0.5, %v1493
        %v1495 = vsub.f32 1.5, %v1494
        %v1496 = vmul.f32 %v1491, %v1495
        %vm1497 = vweird.f32 %v1480
        %vm1498 = vweird.f32 %v1491
        %vm1499 = vmor %vm1497, %vm1498
        %v1500 = vsel %vm1499, %v1491, %v1496
        %v1501 = vmul.f32 %v1467, %v1490
        %v1502 = vmul.f32 %v1468, %v1500
        %v1503 = vperm.slane %v1457, 0
        %v1504 = vmul.f32 %v1501, %v1503
        %v1505 = vmul.f32 %v1502, %v1503
        %v1506 = vperm.slane %v1458, 0
        %v1507 = vadd.f32 %v1504, %v1506
        %v1508 = vadd.f32 %v1505, %v1506
        %v1509 = vld [vmem:[#allocation2 + $0x40] sm:$0xff]
        %v1510 = vld [vmem:[#allocation2 + $0x48] sm:$0xff]
        %v1512 = vsel %vm403, %v1509, 0
        %v1515 = vsel %vm403, %v1510, 0
        %1517 = vmatpush.msra.mxu0 0.0
        %1518 = vmatpush.msra.mxu0 0.0
        %1519 = vmatpush.msra.mxu0 0.0
        %1520 = vmatpush.msra.mxu0 0.0
        %1521 = vmatpush.msra.mxu0 0.0
        %1522 = vmatpush.msra.mxu0 0.0
        %1523 = vmatpush.msra.mxu0 0.0
        %1524 = vmatpush.msra.mxu0 0.0
        %1525 = vmatpush.msra.mxu0 0.0
        %1526 = vmatpush.msra.mxu0 0.0
        %1527 = vmatpush.msra.mxu0 0.0
        %1528 = vmatpush.msra.mxu0 0.0
        %1529 = vmatpush.msra.mxu0 0.0
        %1530 = vmatpush.msra.mxu0 0.0
        %1531 = vmatpush.msra.mxu0 %v305
        %1532 = vmatpush.msra.mxu0 %v304
        %1533 = vmatmul.f32.gmra.mxu0 %v1512
        %v1534 = vpop.f32.mrf.mxu0
        %v1535 = vadd.f32 0.0, %v1534
        %1536 = vmatmul.f32.gmra.mxu0 %v1515
        %v1537 = vpop.f32.mrf.mxu0
        %v1538 = vadd.f32 0.0, %v1537
        %1539 = vdwg.mxu0
        %v1540 = vld [vmem:[#allocation2 + $0x50] sm:$0xff]
        %v1541 = vld [vmem:[#allocation2 + $0x58] sm:$0xff]
        %v1543 = vsel %vm403, %v1540, 0
        %v1546 = vsel %vm403, %v1541, 0
        %1548 = vmatpush.msra.mxu0 0.0
        %1549 = vmatpush.msra.mxu0 0.0
        %1550 = vmatpush.msra.mxu0 0.0
        %1551 = vmatpush.msra.mxu0 0.0
        %1552 = vmatpush.msra.mxu0 0.0
        %1553 = vmatpush.msra.mxu0 0.0
        %1554 = vmatpush.msra.mxu0 0.0
        %1555 = vmatpush.msra.mxu0 0.0
        %1556 = vmatpush.msra.mxu0 0.0
        %1557 = vmatpush.msra.mxu0 0.0
        %1558 = vmatpush.msra.mxu0 0.0
        %1559 = vmatpush.msra.mxu0 0.0
        %1560 = vmatpush.msra.mxu0 0.0
        %1561 = vmatpush.msra.mxu0 0.0
        %1562 = vmatpush.msra.mxu0 %v305
        %1563 = vmatpush.msra.mxu0 %v304
        %1564 = vmatmul.f32.gmra.mxu0 %v1543
        %v1565 = vpop.f32.mrf.mxu0
        %v1566 = vadd.f32 0.0, %v1565
        %1567 = vmatmul.f32.gmra.mxu0 %v1546
        %v1568 = vpop.f32.mrf.mxu0
        %v1569 = vadd.f32 0.0, %v1568
        %1570 = vdwg.mxu0
        %v1571 = vld [vmem:[#allocation2 + $0x90] sm:$0x7f]
        %v1572 = vld [vmem:[#allocation2 + $0x98] sm:$0x7f]
        %v1574 = vsel %vm311, %v304, 0
        %v1577 = vsel %vm311, %v305, 0
        %v1580 = vsel %vm318, %v1572, 0
        %1582 = vmatpush.msra.mxu0 0.0
        %1583 = vmatpush.msra.mxu0 0.0
        %1584 = vmatpush.msra.mxu0 0.0
        %1585 = vmatpush.msra.mxu0 0.0
        %1586 = vmatpush.msra.mxu0 0.0
        %1587 = vmatpush.msra.mxu0 0.0
        %1588 = vmatpush.msra.mxu0 0.0
        %1589 = vmatpush.msra.mxu0 0.0
        %1590 = vmatpush.msra.mxu0 0.0
        %1591 = vmatpush.msra.mxu0 0.0
        %1592 = vmatpush.msra.mxu0 0.0
        %1593 = vmatpush.msra.mxu0 0.0
        %1594 = vmatpush.msra.mxu0 0.0
        %1595 = vmatpush.msra.mxu0 0.0
        %1596 = vmatpush.msra.mxu0 0.0
        %1597 = vmatpush.msra.mxu0 %v1580
        %1598 = vmatmul.f32.gmra.mxu0 %v1574
        %v1599 = vpop.f32.mrf.mxu0
        %v1600 = vadd.f32 0.0, %v1599
        %1601 = vmatmul.f32.gmra.mxu0 %v1577
        %v1602 = vpop.f32.mrf.mxu0
        %v1603 = vadd.f32 0.0, %v1602
        %1604 = vdwg.mxu0
        %v1606 = vsel %vm311, %v1535, 0
        %v1609 = vsel %vm311, %v1538, 0
        %v1612 = vsel %vm318, %v1571, 0
        %1614 = vmatpush.msra.mxu0 0.0
        %1615 = vmatpush.msra.mxu0 0.0
        %1616 = vmatpush.msra.mxu0 0.0
        %1617 = vmatpush.msra.mxu0 0.0
        %1618 = vmatpush.msra.mxu0 0.0
        %1619 = vmatpush.msra.mxu0 0.0
        %1620 = vmatpush.msra.mxu0 0.0
        %1621 = vmatpush.msra.mxu0 0.0
        %1622 = vmatpush.msra.mxu0 0.0
        %1623 = vmatpush.msra.mxu0 0.0
        %1624 = vmatpush.msra.mxu0 0.0
        %1625 = vmatpush.msra.mxu0 0.0
        %1626 = vmatpush.msra.mxu0 0.0
        %1627 = vmatpush.msra.mxu0 0.0
        %1628 = vmatpush.msra.mxu0 0.0
        %1629 = vmatpush.msra.mxu0 %v1612
        %1630 = vmatmul.f32.gmra.mxu0 %v1606
        %v1631 = vpop.f32.mrf.mxu0
        %v1632 = vadd.f32 %v1600, %v1631
        %1633 = vmatmul.f32.gmra.mxu0 %v1609
        %v1634 = vpop.f32.mrf.mxu0
        %v1635 = vadd.f32 %v1603, %v1634
        %1636 = vdwg.mxu0
        %v1637 = vld [vmem:[#allocation2 + $0xa0] sm:$0x7f]
        %v1639 = vsel %vm311, %v1566, 0
        %v1642 = vsel %vm311, %v1569, 0
        %v1645 = vsel %vm318, %v1637, 0
        %1647 = vmatpush.msra.mxu0 0.0
        %1648 = vmatpush.msra.mxu0 0.0
        %1649 = vmatpush.msra.mxu0 0.0
        %1650 = vmatpush.msra.mxu0 0.0
        %1651 = vmatpush.msra.mxu0 0.0
        %1652 = vmatpush.msra.mxu0 0.0
        %1653 = vmatpush.msra.mxu0 0.0
        %1654 = vmatpush.msra.mxu0 0.0
        %1655 = vmatpush.msra.mxu0 0.0
        %1656 = vmatpush.msra.mxu0 0.0
        %1657 = vmatpush.msra.mxu0 0.0
        %1658 = vmatpush.msra.mxu0 0.0
        %1659 = vmatpush.msra.mxu0 0.0
        %1660 = vmatpush.msra.mxu0 0.0
        %1661 = vmatpush.msra.mxu0 0.0
        %1662 = vmatpush.msra.mxu0 %v1645
        %1663 = vmatmul.f32.gmra.mxu0 %v1639
        %v1664 = vpop.f32.mrf.mxu0
        %v1665 = vadd.f32 0.0, %v1664
        %1666 = vmatmul.f32.gmra.mxu0 %v1642
        %v1667 = vpop.f32.mrf.mxu0
        %v1668 = vadd.f32 0.0, %v1667
        %1669 = vdwg.mxu0
        %v1670 = vadd.f32 %v1632, %v1665
        %v1671 = vadd.f32 %v1635, %v1668
        %v1672 = vld [vmem:[#allocation2 + $0xa8] sm:$0xf]
        %v1674 = vsel %vm566, %v306, 0
        %v1677 = vsel %vm566, %v307, 0
        %v1680 = vsel %vm573, %v1672, 0
        %1682 = vmatpush.msra.mxu0 0.0
        %1683 = vmatpush.msra.mxu0 0.0
        %1684 = vmatpush.msra.mxu0 0.0
        %1685 = vmatpush.msra.mxu0 0.0
        %1686 = vmatpush.msra.mxu0 0.0
        %1687 = vmatpush.msra.mxu0 0.0
        %1688 = vmatpush.msra.mxu0 0.0
        %1689 = vmatpush.msra.mxu0 0.0
        %1690 = vmatpush.msra.mxu0 0.0
        %1691 = vmatpush.msra.mxu0 0.0
        %1692 = vmatpush.msra.mxu0 0.0
        %1693 = vmatpush.msra.mxu0 0.0
        %1694 = vmatpush.msra.mxu0 0.0
        %1695 = vmatpush.msra.mxu0 0.0
        %1696 = vmatpush.msra.mxu0 0.0
        %1697 = vmatpush.msra.mxu0 %v1680
        %1698 = vmatmul.f32.gmra.mxu0 %v1674
        %v1699 = vpop.f32.mrf.mxu0
        %v1700 = vadd.f32 0.0, %v1699
        %1701 = vmatmul.f32.gmra.mxu0 %v1677
        %v1702 = vpop.f32.mrf.mxu0
        %v1703 = vadd.f32 0.0, %v1702
        %1704 = vdwg.mxu0
        %v1705 = vadd.f32 %v1670, %v1700
        %v1706 = vadd.f32 %v1671, %v1703
        %v1707 = vadd.f32 %v1705, %v602
        %v1708 = vadd.f32 %v1706, %v603
        %v1709 = vld [vmem:[#allocation2 + $0x10] sm:$0xff]
        %v1710 = vld [vmem:[#allocation2 + $0x18] sm:$0xff]
        %v1711 = vld [vmem:[#allocation2 + $0x1a0] sm:$0xff]
        %v1712 = vld [vmem:[#allocation2 + $0x1a8] sm:$0xff]
        %v1713 = vld [vmem:[#allocation2 + $0x1b0] sm:$0xff]
        %v1714 = vld [vmem:[#allocation2 + $0x1b8] sm:$0xff]
        %v1715 = vld [vmem:[#allocation2 + $0x1c0] sm:$0x1]
        %v1716 = vperm.slane %v1715, 0
        %v1718 = vsel %vm612, %v1707, 0
        %v1721 = vsel %vm612, %v1708, 0
        %1723 = vmatpush.msra.mxu0 0.0
        %1724 = vmatpush.msra.mxu0 0.0
        %1725 = vmatpush.msra.mxu0 0.0
        %1726 = vmatpush.msra.mxu0 0.0
        %1727 = vmatpush.msra.mxu0 0.0
        %1728 = vmatpush.msra.mxu0 0.0
        %1729 = vmatpush.msra.mxu0 0.0
        %1730 = vmatpush.msra.mxu0 0.0
        %1731 = vmatpush.msra.mxu0 0.0
        %1732 = vmatpush.msra.mxu0 0.0
        %1733 = vmatpush.msra.mxu0 0.0
        %1734 = vmatpush.msra.mxu0 0.0
        %1735 = vmatpush.msra.mxu0 %v1714
        %1736 = vmatpush.msra.mxu0 %v1713
        %1737 = vmatpush.msra.mxu0 %v1712
        %1738 = vmatpush.msra.mxu0 %v1711
        %1739 = vmatmul.f32.gmra.mxu0 %v1718
        %v1740 = vpop.f32.mrf.mxu0
        %v1741 = vadd.f32 %v1716, %v1740
        %1742 = vmatmul.f32.gmra.mxu0 %v1721
        %v1743 = vpop.f32.mrf.mxu0
        %v1744 = vadd.f32 %v1716, %v1743
        %1745 = vdwg.mxu0
        %v1746 = vld [vmem:[#allocation2 + $0x1c8] sm:$0xff]
        %v1747 = vld [vmem:[#allocation2 + $0x1d0] sm:$0xff]
        %v1748 = vld [vmem:[#allocation2 + $0x1d8] sm:$0xff]
        %v1749 = vld [vmem:[#allocation2 + $0x1e0] sm:$0xff]
        %v1750 = vld [vmem:[#allocation2 + $0x1e8] sm:$0x1]
        %1753 = vrot.lane.b32.xlu0 %v1741, 96
        %v1754 = vpop.permute.xlu0 %1753
        %1755 = vrot.lane.b32.xlu0 %v1744, 96
        %v1756 = vpop.permute.xlu0 %1755
        %v1757 = vsel %vm653, %v1741, 0
        %v1759 = vsel %vm653, %v1744, 0
        %v1761 = vsel %vm653, %v1754, 0
        %v1763 = vsel %vm653, %v1756, 0
        %1765 = vmatpush.xpose.msra.mxu0 0.0
        %1766 = vmatpush.xpose.msra.mxu0 0.0
        %1767 = vmatpush.xpose.msra.mxu0 0.0
        %1768 = vmatpush.xpose.msra.mxu0 0.0
        %1769 = vmatpush.xpose.msra.mxu0 0.0
        %1770 = vmatpush.xpose.msra.mxu0 0.0
        %1771 = vmatpush.xpose.msra.mxu0 0.0
        %1772 = vmatpush.xpose.msra.mxu0 0.0
        %1773 = vmatpush.xpose.msra.mxu0 0.0
        %1774 = vmatpush.xpose.msra.mxu0 0.0
        %1775 = vmatpush.xpose.msra.mxu0 0.0
        %1776 = vmatpush.xpose.msra.mxu0 0.0
        %1777 = vmatpush.xpose.msra.mxu0 0.0
        %1778 = vmatpush.xpose.msra.mxu0 0.0
        %1779 = vmatpush.xpose.msra.mxu0 %v1763
        %1780 = vmatpush.xpose.msra.mxu0 %v1761
        %1781 = vmatmul.f32.gmra.mxu0 %v1757
        %v1782 = vpop.f32.mrf.mxu0
        %v1783 = vadd.f32 0.0, %v1782
        %1784 = vmatmul.f32.gmra.mxu0 %v1759
        %v1785 = vpop.f32.mrf.mxu0
        %v1786 = vadd.f32 0.0, %v1785
        %1787 = vdwg.mxu0
        %v1788 = vmul.f32 %v1783, 0.35355338
        %v1789 = vmul.f32 %v1786, 0.35355338
        %v1790 = vadd.f32 %v1788, %v1709
        %v1791 = vadd.f32 %v1789, %v1710
        %v1792 = vsel %vm403, %v1790, -inf
        %1793 = vmax.xlane.f32.xlu0 %v1792
        %v1794 = vpop.xlane.xlu0 %1793
        %v1795 = vsel %vm403, %v1791, -inf
        %1796 = vmax.xlane.f32.xlu0 %v1795
        %v1797 = vpop.xlane.xlu0 %1796
        %v1798 = vsub.f32 %v1790, %v1794
        %v1799 = vsub.f32 %v1791, %v1797
        %v1800 = vmul.f32 %v1798, 1.442695
        %v1801 = vpow.pop %v1800
        %v1802 = vmul.f32 %v1799, 1.442695
        %v1803 = vpow.pop %v1802
        %v1804 = vsel %vm403, %v1801, 0.0
        %1805 = vadd.xlane.f32.xlu0 %v1804
        %v1806 = vpop.xlane.xlu0 %1805
        %v1807 = vsel %vm403, %v1803, 0.0
        %1808 = vadd.xlane.f32.xlu0 %v1807
        %v1809 = vpop.xlane.xlu0 %1808
        %v1810 = vrcp.pop %v1806
        %v1811 = vmul.f32 %v1806, %v1810
        %v1812 = vsub.f32 1.0, %v1811
        %v1813 = vmul.f32 %v1810, %v1812
        %v1814 = vadd.f32 %v1810, %v1813
        %vm1815 = vweird.f32 %v1806
        %vm1816 = vweird.f32 %v1810
        %vm1817 = vmor %vm1815, %vm1816
        %v1818 = vsel %vm1817, %v1810, %v1814
        %v1819 = vand.u32 2147483647, %v1806
        %vm1820 = vcmp.eq.f32.partialorder %v1819, 8.507059e+37
        %v1821 = vand.u32 %v1806, 2147483648
        %v1822 = vor.u32 1.1754944e-38, %v1821
        %v1823 = vsel %vm1820, %v1822, %v1818
        %v1824 = vmul.f32 %v1801, %v1823
        %v1825 = vrcp.pop %v1809
        %v1826 = vmul.f32 %v1809, %v1825
        %v1827 = vsub.f32 1.0, %v1826
        %v1828 = vmul.f32 %v1825, %v1827
        %v1829 = vadd.f32 %v1825, %v1828
        %vm1830 = vweird.f32 %v1809
        %vm1831 = vweird.f32 %v1825
        %vm1832 = vmor %vm1830, %vm1831
        %v1833 = vsel %vm1832, %v1825, %v1829
        %v1834 = vand.u32 2147483647, %v1809
        %vm1835 = vcmp.eq.f32.partialorder %v1834, 8.507059e+37
        %v1836 = vand.u32 %v1809, 2147483648
        %v1837 = vor.u32 1.1754944e-38, %v1836
        %v1838 = vsel %vm1835, %v1837, %v1833
        %v1839 = vmul.f32 %v1803, %v1838
        %1840 = vrot.lane.b32.xlu0 %v1741, 64
        %v1841 = vpop.permute.xlu0 %1840
        %1842 = vrot.lane.b32.xlu0 %v1744, 64
        %v1843 = vpop.permute.xlu0 %1842
        %v1847 = vsel %vm403, %v1824, 0
        %v1850 = vsel %vm403, %v1839, 0
        %1852 = vmatpush.msra.mxu0 0.0
        %1853 = vmatpush.msra.mxu0 0.0
        %1854 = vmatpush.msra.mxu0 0.0
        %1855 = vmatpush.msra.mxu0 0.0
        %1856 = vmatpush.msra.mxu0 0.0
        %1857 = vmatpush.msra.mxu0 0.0
        %1858 = vmatpush.msra.mxu0 0.0
        %1859 = vmatpush.msra.mxu0 0.0
        %1860 = vmatpush.msra.mxu0 0.0
        %1861 = vmatpush.msra.mxu0 0.0
        %1862 = vmatpush.msra.mxu0 0.0
        %1863 = vmatpush.msra.mxu0 0.0
        %1864 = vmatpush.msra.mxu0 0.0
        %1865 = vmatpush.msra.mxu0 0.0
        %1866 = vmatpush.msra.mxu0 %v1843
        %1867 = vmatpush.msra.mxu0 %v1841
        %1868 = vmatmul.f32.gmra.mxu0 %v1847
        %v1869 = vpop.f32.mrf.mxu0
        %v1870 = vadd.f32 0.0, %v1869
        %1871 = vmatmul.f32.gmra.mxu0 %v1850
        %v1872 = vpop.f32.mrf.mxu0
        %v1873 = vadd.f32 0.0, %v1872
        %1874 = vdwg.mxu0
        %1875 = vrot.lane.b32.xlu0 %v1741, 120
        %v1876 = vpop.permute.xlu0 %1875
        %1877 = vrot.lane.b32.xlu0 %v1744, 120
        %v1878 = vpop.permute.xlu0 %1877
        %1879 = vrot.lane.b32.xlu0 %v1741, 88
        %v1880 = vpop.permute.xlu0 %1879
        %1881 = vrot.lane.b32.xlu0 %v1744, 88
        %v1882 = vpop.permute.xlu0 %1881
        %v1883 = vsel %vm653, %v1876, 0
        %v1885 = vsel %vm653, %v1878, 0
        %v1887 = vsel %vm653, %v1880, 0
        %v1889 = vsel %vm653, %v1882, 0
        %1891 = vmatpush.xpose.msra.mxu0 0.0
        %1892 = vmatpush.xpose.msra.mxu0 0.0
        %1893 = vmatpush.xpose.msra.mxu0 0.0
        %1894 = vmatpush.xpose.msra.mxu0 0.0
        %1895 = vmatpush.xpose.msra.mxu0 0.0
        %1896 = vmatpush.xpose.msra.mxu0 0.0
        %1897 = vmatpush.xpose.msra.mxu0 0.0
        %1898 = vmatpush.xpose.msra.mxu0 0.0
        %1899 = vmatpush.xpose.msra.mxu0 0.0
        %1900 = vmatpush.xpose.msra.mxu0 0.0
        %1901 = vmatpush.xpose.msra.mxu0 0.0
        %1902 = vmatpush.xpose.msra.mxu0 0.0
        %1903 = vmatpush.xpose.msra.mxu0 0.0
        %1904 = vmatpush.xpose.msra.mxu0 0.0
        %1905 = vmatpush.xpose.msra.mxu0 %v1889
        %1906 = vmatpush.xpose.msra.mxu0 %v1887
        %1907 = vmatmul.f32.gmra.mxu0 %v1883
        %v1908 = vpop.f32.mrf.mxu0
        %v1909 = vadd.f32 0.0, %v1908
        %1910 = vmatmul.f32.gmra.mxu0 %v1885
        %v1911 = vpop.f32.mrf.mxu0
        %v1912 = vadd.f32 0.0, %v1911
        %1913 = vdwg.mxu0
        %v1914 = vmul.f32 %v1909, 0.35355338
        %v1915 = vmul.f32 %v1912, 0.35355338
        %v1916 = vadd.f32 %v1914, %v1709
        %v1917 = vadd.f32 %v1915, %v1710
        %v1918 = vsel %vm403, %v1916, -inf
        %1919 = vmax.xlane.f32.xlu0 %v1918
        %v1920 = vpop.xlane.xlu0 %1919
        %v1921 = vsel %vm403, %v1917, -inf
        %1922 = vmax.xlane.f32.xlu0 %v1921
        %v1923 = vpop.xlane.xlu0 %1922
        %v1924 = vsub.f32 %v1916, %v1920
        %v1925 = vsub.f32 %v1917, %v1923
        %v1926 = vmul.f32 %v1924, 1.442695
        %v1927 = vpow.pop %v1926
        %v1928 = vmul.f32 %v1925, 1.442695
        %v1929 = vpow.pop %v1928
        %v1930 = vsel %vm403, %v1927, 0.0
        %1931 = vadd.xlane.f32.xlu0 %v1930
        %v1932 = vpop.xlane.xlu0 %1931
        %v1933 = vsel %vm403, %v1929, 0.0
        %1934 = vadd.xlane.f32.xlu0 %v1933
        %v1935 = vpop.xlane.xlu0 %1934
        %v1936 = vrcp.pop %v1932
        %v1937 = vmul.f32 %v1932, %v1936
        %v1938 = vsub.f32 1.0, %v1937
        %v1939 = vmul.f32 %v1936, %v1938
        %v1940 = vadd.f32 %v1936, %v1939
        %vm1941 = vweird.f32 %v1932
        %vm1942 = vweird.f32 %v1936
        %vm1943 = vmor %vm1941, %vm1942
        %v1944 = vsel %vm1943, %v1936, %v1940
        %v1945 = vand.u32 2147483647, %v1932
        %vm1946 = vcmp.eq.f32.partialorder %v1945, 8.507059e+37
        %v1947 = vand.u32 %v1932, 2147483648
        %v1948 = vor.u32 1.1754944e-38, %v1947
        %v1949 = vsel %vm1946, %v1948, %v1944
        %v1950 = vmul.f32 %v1927, %v1949
        %v1951 = vrcp.pop %v1935
        %v1952 = vmul.f32 %v1935, %v1951
        %v1953 = vsub.f32 1.0, %v1952
        %v1954 = vmul.f32 %v1951, %v1953
        %v1955 = vadd.f32 %v1951, %v1954
        %vm1956 = vweird.f32 %v1935
        %vm1957 = vweird.f32 %v1951
        %vm1958 = vmor %vm1956, %vm1957
        %v1959 = vsel %vm1958, %v1951, %v1955
        %v1960 = vand.u32 2147483647, %v1935
        %vm1961 = vcmp.eq.f32.partialorder %v1960, 8.507059e+37
        %v1962 = vand.u32 %v1935, 2147483648
        %v1963 = vor.u32 1.1754944e-38, %v1962
        %v1964 = vsel %vm1961, %v1963, %v1959
        %v1965 = vmul.f32 %v1929, %v1964
        %1966 = vrot.lane.b32.xlu0 %v1741, 56
        %v1967 = vpop.permute.xlu0 %1966
        %1968 = vrot.lane.b32.xlu0 %v1744, 56
        %v1969 = vpop.permute.xlu0 %1968
        %v1973 = vsel %vm403, %v1950, 0
        %v1976 = vsel %vm403, %v1965, 0
        %1978 = vmatpush.msra.mxu0 0.0
        %1979 = vmatpush.msra.mxu0 0.0
        %1980 = vmatpush.msra.mxu0 0.0
        %1981 = vmatpush.msra.mxu0 0.0
        %1982 = vmatpush.msra.mxu0 0.0
        %1983 = vmatpush.msra.mxu0 0.0
        %1984 = vmatpush.msra.mxu0 0.0
        %1985 = vmatpush.msra.mxu0 0.0
        %1986 = vmatpush.msra.mxu0 0.0
        %1987 = vmatpush.msra.mxu0 0.0
        %1988 = vmatpush.msra.mxu0 0.0
        %1989 = vmatpush.msra.mxu0 0.0
        %1990 = vmatpush.msra.mxu0 0.0
        %1991 = vmatpush.msra.mxu0 0.0
        %1992 = vmatpush.msra.mxu0 %v1969
        %1993 = vmatpush.msra.mxu0 %v1967
        %1994 = vmatmul.f32.gmra.mxu0 %v1973
        %v1995 = vpop.f32.mrf.mxu0
        %v1996 = vadd.f32 0.0, %v1995
        %1997 = vmatmul.f32.gmra.mxu0 %v1976
        %v1998 = vpop.f32.mrf.mxu0
        %v1999 = vadd.f32 0.0, %v1998
        %2000 = vdwg.mxu0
        %v2002 = vsel %vm653, %v1996, 0
        %v2005 = vsel %vm653, %v1999, 0
        %2007 = vmatpush.msra.mxu0 0.0
        %2008 = vmatpush.msra.mxu0 0.0
        %2009 = vmatpush.msra.mxu0 0.0
        %2010 = vmatpush.msra.mxu0 0.0
        %2011 = vmatpush.msra.mxu0 0.0
        %2012 = vmatpush.msra.mxu0 0.0
        %2013 = vmatpush.msra.mxu0 0.0
        %2014 = vmatpush.msra.mxu0 0.0
        %2015 = vmatpush.msra.mxu0 0.0
        %2016 = vmatpush.msra.mxu0 0.0
        %2017 = vmatpush.msra.mxu0 0.0
        %2018 = vmatpush.msra.mxu0 0.0
        %2019 = vmatpush.msra.mxu0 0.0
        %2020 = vmatpush.msra.mxu0 0.0
        %2021 = vmatpush.msra.mxu0 0.0
        %2022 = vmatpush.msra.mxu0 %v1747
        %2023 = vmatmul.f32.gmra.mxu0 %v2002
        %v2024 = vpop.f32.mrf.mxu0
        %v2025 = vadd.f32 0.0, %v2024
        %2026 = vmatmul.f32.gmra.mxu0 %v2005
        %v2027 = vpop.f32.mrf.mxu0
        %v2028 = vadd.f32 0.0, %v2027
        %2029 = vdwg.mxu0
        %v2031 = vsel %vm653, %v1870, 0
        %v2034 = vsel %vm653, %v1873, 0
        %2036 = vmatpush.msra.mxu0 0.0
        %2037 = vmatpush.msra.mxu0 0.0
        %2038 = vmatpush.msra.mxu0 0.0
        %2039 = vmatpush.msra.mxu0 0.0
        %2040 = vmatpush.msra.mxu0 0.0
        %2041 = vmatpush.msra.mxu0 0.0
        %2042 = vmatpush.msra.mxu0 0.0
        %2043 = vmatpush.msra.mxu0 0.0
        %2044 = vmatpush.msra.mxu0 0.0
        %2045 = vmatpush.msra.mxu0 0.0
        %2046 = vmatpush.msra.mxu0 0.0
        %2047 = vmatpush.msra.mxu0 0.0
        %2048 = vmatpush.msra.mxu0 0.0
        %2049 = vmatpush.msra.mxu0 0.0
        %2050 = vmatpush.msra.mxu0 0.0
        %2051 = vmatpush.msra.mxu0 %v1746
        %2052 = vmatmul.f32.gmra.mxu0 %v2031
        %v2053 = vpop.f32.mrf.mxu0
        %v2054 = vadd.f32 %v2025, %v2053
        %2055 = vmatmul.f32.gmra.mxu0 %v2034
        %v2056 = vpop.f32.mrf.mxu0
        %v2057 = vadd.f32 %v2028, %v2056
        %2058 = vdwg.mxu0
        %2059 = vrot.lane.b32.xlu0 %v1741, 112
        %v2060 = vpop.permute.xlu0 %2059
        %2061 = vrot.lane.b32.xlu0 %v1744, 112
        %v2062 = vpop.permute.xlu0 %2061
        %2063 = vrot.lane.b32.xlu0 %v1741, 80
        %v2064 = vpop.permute.xlu0 %2063
        %2065 = vrot.lane.b32.xlu0 %v1744, 80
        %v2066 = vpop.permute.xlu0 %2065
        %v2067 = vsel %vm653, %v2060, 0
        %v2069 = vsel %vm653, %v2062, 0
        %v2071 = vsel %vm653, %v2064, 0
        %v2073 = vsel %vm653, %v2066, 0
        %2075 = vmatpush.xpose.msra.mxu0 0.0
        %2076 = vmatpush.xpose.msra.mxu0 0.0
        %2077 = vmatpush.xpose.msra.mxu0 0.0
        %2078 = vmatpush.xpose.msra.mxu0 0.0
        %2079 = vmatpush.xpose.msra.mxu0 0.0
        %2080 = vmatpush.xpose.msra.mxu0 0.0
        %2081 = vmatpush.xpose.msra.mxu0 0.0
        %2082 = vmatpush.xpose.msra.mxu0 0.0
        %2083 = vmatpush.xpose.msra.mxu0 0.0
        %2084 = vmatpush.xpose.msra.mxu0 0.0
        %2085 = vmatpush.xpose.msra.mxu0 0.0
        %2086 = vmatpush.xpose.msra.mxu0 0.0
        %2087 = vmatpush.xpose.msra.mxu0 0.0
        %2088 = vmatpush.xpose.msra.mxu0 0.0
        %2089 = vmatpush.xpose.msra.mxu0 %v2073
        %2090 = vmatpush.xpose.msra.mxu0 %v2071
        %2091 = vmatmul.f32.gmra.mxu0 %v2067
        %v2092 = vpop.f32.mrf.mxu0
        %v2093 = vadd.f32 0.0, %v2092
        %2094 = vmatmul.f32.gmra.mxu0 %v2069
        %v2095 = vpop.f32.mrf.mxu0
        %v2096 = vadd.f32 0.0, %v2095
        %2097 = vdwg.mxu0
        %v2098 = vmul.f32 %v2093, 0.35355338
        %v2099 = vmul.f32 %v2096, 0.35355338
        %v2100 = vadd.f32 %v2098, %v1709
        %v2101 = vadd.f32 %v2099, %v1710
        %v2102 = vsel %vm403, %v2100, -inf
        %2103 = vmax.xlane.f32.xlu0 %v2102
        %v2104 = vpop.xlane.xlu0 %2103
        %v2105 = vsel %vm403, %v2101, -inf
        %2106 = vmax.xlane.f32.xlu0 %v2105
        %v2107 = vpop.xlane.xlu0 %2106
        %v2108 = vsub.f32 %v2100, %v2104
        %v2109 = vsub.f32 %v2101, %v2107
        %v2110 = vmul.f32 %v2108, 1.442695
        %v2111 = vpow.pop %v2110
        %v2112 = vmul.f32 %v2109, 1.442695
        %v2113 = vpow.pop %v2112
        %v2114 = vsel %vm403, %v2111, 0.0
        %2115 = vadd.xlane.f32.xlu0 %v2114
        %v2116 = vpop.xlane.xlu0 %2115
        %v2117 = vsel %vm403, %v2113, 0.0
        %2118 = vadd.xlane.f32.xlu0 %v2117
        %v2119 = vpop.xlane.xlu0 %2118
        %v2120 = vrcp.pop %v2116
        %v2121 = vmul.f32 %v2116, %v2120
        %v2122 = vsub.f32 1.0, %v2121
        %v2123 = vmul.f32 %v2120, %v2122
        %v2124 = vadd.f32 %v2120, %v2123
        %vm2125 = vweird.f32 %v2116
        %vm2126 = vweird.f32 %v2120
        %vm2127 = vmor %vm2125, %vm2126
        %v2128 = vsel %vm2127, %v2120, %v2124
        %v2129 = vand.u32 2147483647, %v2116
        %vm2130 = vcmp.eq.f32.partialorder %v2129, 8.507059e+37
        %v2131 = vand.u32 %v2116, 2147483648
        %v2132 = vor.u32 1.1754944e-38, %v2131
        %v2133 = vsel %vm2130, %v2132, %v2128
        %v2134 = vmul.f32 %v2111, %v2133
        %v2135 = vrcp.pop %v2119
        %v2136 = vmul.f32 %v2119, %v2135
        %v2137 = vsub.f32 1.0, %v2136
        %v2138 = vmul.f32 %v2135, %v2137
        %v2139 = vadd.f32 %v2135, %v2138
        %vm2140 = vweird.f32 %v2119
        %vm2141 = vweird.f32 %v2135
        %vm2142 = vmor %vm2140, %vm2141
        %v2143 = vsel %vm2142, %v2135, %v2139
        %v2144 = vand.u32 2147483647, %v2119
        %vm2145 = vcmp.eq.f32.partialorder %v2144, 8.507059e+37
        %v2146 = vand.u32 %v2119, 2147483648
        %v2147 = vor.u32 1.1754944e-38, %v2146
        %v2148 = vsel %vm2145, %v2147, %v2143
        %v2149 = vmul.f32 %v2113, %v2148
        %2150 = vrot.lane.b32.xlu0 %v1741, 48
        %v2151 = vpop.permute.xlu0 %2150
        %2152 = vrot.lane.b32.xlu0 %v1744, 48
        %v2153 = vpop.permute.xlu0 %2152
        %v2157 = vsel %vm403, %v2134, 0
        %v2160 = vsel %vm403, %v2149, 0
        %2162 = vmatpush.msra.mxu0 0.0
        %2163 = vmatpush.msra.mxu0 0.0
        %2164 = vmatpush.msra.mxu0 0.0
        %2165 = vmatpush.msra.mxu0 0.0
        %2166 = vmatpush.msra.mxu0 0.0
        %2167 = vmatpush.msra.mxu0 0.0
        %2168 = vmatpush.msra.mxu0 0.0
        %2169 = vmatpush.msra.mxu0 0.0
        %2170 = vmatpush.msra.mxu0 0.0
        %2171 = vmatpush.msra.mxu0 0.0
        %2172 = vmatpush.msra.mxu0 0.0
        %2173 = vmatpush.msra.mxu0 0.0
        %2174 = vmatpush.msra.mxu0 0.0
        %2175 = vmatpush.msra.mxu0 0.0
        %2176 = vmatpush.msra.mxu0 %v2153
        %2177 = vmatpush.msra.mxu0 %v2151
        %2178 = vmatmul.f32.gmra.mxu0 %v2157
        %v2179 = vpop.f32.mrf.mxu0
        %v2180 = vadd.f32 0.0, %v2179
        %2181 = vmatmul.f32.gmra.mxu0 %v2160
        %v2182 = vpop.f32.mrf.mxu0
        %v2183 = vadd.f32 0.0, %v2182
        %2184 = vdwg.mxu0
        %v2186 = vsel %vm653, %v2180, 0
        %v2189 = vsel %vm653, %v2183, 0
        %2191 = vmatpush.msra.mxu0 0.0
        %2192 = vmatpush.msra.mxu0 0.0
        %2193 = vmatpush.msra.mxu0 0.0
        %2194 = vmatpush.msra.mxu0 0.0
        %2195 = vmatpush.msra.mxu0 0.0
        %2196 = vmatpush.msra.mxu0 0.0
        %2197 = vmatpush.msra.mxu0 0.0
        %2198 = vmatpush.msra.mxu0 0.0
        %2199 = vmatpush.msra.mxu0 0.0
        %2200 = vmatpush.msra.mxu0 0.0
        %2201 = vmatpush.msra.mxu0 0.0
        %2202 = vmatpush.msra.mxu0 0.0
        %2203 = vmatpush.msra.mxu0 0.0
        %2204 = vmatpush.msra.mxu0 0.0
        %2205 = vmatpush.msra.mxu0 0.0
        %2206 = vmatpush.msra.mxu0 %v1748
        %2207 = vmatmul.f32.gmra.mxu0 %v2186
        %v2208 = vpop.f32.mrf.mxu0
        %v2209 = vadd.f32 0.0, %v2208
        %2210 = vmatmul.f32.gmra.mxu0 %v2189
        %v2211 = vpop.f32.mrf.mxu0
        %v2212 = vadd.f32 0.0, %v2211
        %2213 = vdwg.mxu0
        %v2214 = vadd.f32 %v2054, %v2209
        %v2215 = vadd.f32 %v2057, %v2212
        %2216 = vrot.lane.b32.xlu0 %v1741, 104
        %v2217 = vpop.permute.xlu0 %2216
        %2218 = vrot.lane.b32.xlu0 %v1744, 104
        %v2219 = vpop.permute.xlu0 %2218
        %2220 = vrot.lane.b32.xlu0 %v1741, 72
        %v2221 = vpop.permute.xlu0 %2220
        %2222 = vrot.lane.b32.xlu0 %v1744, 72
        %v2223 = vpop.permute.xlu0 %2222
        %v2224 = vsel %vm653, %v2217, 0
        %v2226 = vsel %vm653, %v2219, 0
        %v2228 = vsel %vm653, %v2221, 0
        %v2230 = vsel %vm653, %v2223, 0
        %2232 = vmatpush.xpose.msra.mxu0 0.0
        %2233 = vmatpush.xpose.msra.mxu0 0.0
        %2234 = vmatpush.xpose.msra.mxu0 0.0
        %2235 = vmatpush.xpose.msra.mxu0 0.0
        %2236 = vmatpush.xpose.msra.mxu0 0.0
        %2237 = vmatpush.xpose.msra.mxu0 0.0
        %2238 = vmatpush.xpose.msra.mxu0 0.0
        %2239 = vmatpush.xpose.msra.mxu0 0.0
        %2240 = vmatpush.xpose.msra.mxu0 0.0
        %2241 = vmatpush.xpose.msra.mxu0 0.0
        %2242 = vmatpush.xpose.msra.mxu0 0.0
        %2243 = vmatpush.xpose.msra.mxu0 0.0
        %2244 = vmatpush.xpose.msra.mxu0 0.0
        %2245 = vmatpush.xpose.msra.mxu0 0.0
        %2246 = vmatpush.xpose.msra.mxu0 %v2230
        %2247 = vmatpush.xpose.msra.mxu0 %v2228
        %2248 = vmatmul.f32.gmra.mxu0 %v2224
        %v2249 = vpop.f32.mrf.mxu0
        %v2250 = vadd.f32 0.0, %v2249
        %2251 = vmatmul.f32.gmra.mxu0 %v2226
        %v2252 = vpop.f32.mrf.mxu0
        %v2253 = vadd.f32 0.0, %v2252
        %2254 = vdwg.mxu0
        %v2255 = vmul.f32 %v2250, 0.35355338
        %v2256 = vmul.f32 %v2253, 0.35355338
        %v2257 = vadd.f32 %v2255, %v1709
        %v2258 = vadd.f32 %v2256, %v1710
        %v2259 = vsel %vm403, %v2257, -inf
        %2260 = vmax.xlane.f32.xlu0 %v2259
        %v2261 = vpop.xlane.xlu0 %2260
        %v2262 = vsel %vm403, %v2258, -inf
        %2263 = vmax.xlane.f32.xlu0 %v2262
        %v2264 = vpop.xlane.xlu0 %2263
        %v2265 = vsub.f32 %v2257, %v2261
        %v2266 = vsub.f32 %v2258, %v2264
        %v2267 = vmul.f32 %v2265, 1.442695
        %v2268 = vpow.pop %v2267
        %v2269 = vmul.f32 %v2266, 1.442695
        %v2270 = vpow.pop %v2269
        %v2271 = vsel %vm403, %v2268, 0.0
        %2272 = vadd.xlane.f32.xlu0 %v2271
        %v2273 = vpop.xlane.xlu0 %2272
        %v2274 = vsel %vm403, %v2270, 0.0
        %2275 = vadd.xlane.f32.xlu0 %v2274
        %v2276 = vpop.xlane.xlu0 %2275
        %v2277 = vrcp.pop %v2273
        %v2278 = vmul.f32 %v2273, %v2277
        %v2279 = vsub.f32 1.0, %v2278
        %v2280 = vmul.f32 %v2277, %v2279
        %v2281 = vadd.f32 %v2277, %v2280
        %vm2282 = vweird.f32 %v2273
        %vm2283 = vweird.f32 %v2277
        %vm2284 = vmor %vm2282, %vm2283
        %v2285 = vsel %vm2284, %v2277, %v2281
        %v2286 = vand.u32 2147483647, %v2273
        %vm2287 = vcmp.eq.f32.partialorder %v2286, 8.507059e+37
        %v2288 = vand.u32 %v2273, 2147483648
        %v2289 = vor.u32 1.1754944e-38, %v2288
        %v2290 = vsel %vm2287, %v2289, %v2285
        %v2291 = vmul.f32 %v2268, %v2290
        %v2292 = vrcp.pop %v2276
        %v2293 = vmul.f32 %v2276, %v2292
        %v2294 = vsub.f32 1.0, %v2293
        %v2295 = vmul.f32 %v2292, %v2294
        %v2296 = vadd.f32 %v2292, %v2295
        %vm2297 = vweird.f32 %v2276
        %vm2298 = vweird.f32 %v2292
        %vm2299 = vmor %vm2297, %vm2298
        %v2300 = vsel %vm2299, %v2292, %v2296
        %v2301 = vand.u32 2147483647, %v2276
        %vm2302 = vcmp.eq.f32.partialorder %v2301, 8.507059e+37
        %v2303 = vand.u32 %v2276, 2147483648
        %v2304 = vor.u32 1.1754944e-38, %v2303
        %v2305 = vsel %vm2302, %v2304, %v2300
        %v2306 = vmul.f32 %v2270, %v2305
        %2307 = vrot.lane.b32.xlu0 %v1741, 40
        %v2308 = vpop.permute.xlu0 %2307
        %2309 = vrot.lane.b32.xlu0 %v1744, 40
        %v2310 = vpop.permute.xlu0 %2309
        %v2314 = vsel %vm403, %v2291, 0
        %v2317 = vsel %vm403, %v2306, 0
        %2319 = vmatpush.msra.mxu0 0.0
        %2320 = vmatpush.msra.mxu0 0.0
        %2321 = vmatpush.msra.mxu0 0.0
        %2322 = vmatpush.msra.mxu0 0.0
        %2323 = vmatpush.msra.mxu0 0.0
        %2324 = vmatpush.msra.mxu0 0.0
        %2325 = vmatpush.msra.mxu0 0.0
        %2326 = vmatpush.msra.mxu0 0.0
        %2327 = vmatpush.msra.mxu0 0.0
        %2328 = vmatpush.msra.mxu0 0.0
        %2329 = vmatpush.msra.mxu0 0.0
        %2330 = vmatpush.msra.mxu0 0.0
        %2331 = vmatpush.msra.mxu0 0.0
        %2332 = vmatpush.msra.mxu0 0.0
        %2333 = vmatpush.msra.mxu0 %v2310
        %2334 = vmatpush.msra.mxu0 %v2308
        %2335 = vmatmul.f32.gmra.mxu0 %v2314
        %v2336 = vpop.f32.mrf.mxu0
        %v2337 = vadd.f32 0.0, %v2336
        %2338 = vmatmul.f32.gmra.mxu0 %v2317
        %v2339 = vpop.f32.mrf.mxu0
        %v2340 = vadd.f32 0.0, %v2339
        %2341 = vdwg.mxu0
        %v2343 = vsel %vm653, %v2337, 0
        %v2346 = vsel %vm653, %v2340, 0
        %2348 = vmatpush.msra.mxu0 0.0
        %2349 = vmatpush.msra.mxu0 0.0
        %2350 = vmatpush.msra.mxu0 0.0
        %2351 = vmatpush.msra.mxu0 0.0
        %2352 = vmatpush.msra.mxu0 0.0
        %2353 = vmatpush.msra.mxu0 0.0
        %2354 = vmatpush.msra.mxu0 0.0
        %2355 = vmatpush.msra.mxu0 0.0
        %2356 = vmatpush.msra.mxu0 0.0
        %2357 = vmatpush.msra.mxu0 0.0
        %2358 = vmatpush.msra.mxu0 0.0
        %2359 = vmatpush.msra.mxu0 0.0
        %2360 = vmatpush.msra.mxu0 0.0
        %2361 = vmatpush.msra.mxu0 0.0
        %2362 = vmatpush.msra.mxu0 0.0
        %2363 = vmatpush.msra.mxu0 %v1749
        %2364 = vmatmul.f32.gmra.mxu0 %v2343
        %v2365 = vpop.f32.mrf.mxu0
        %v2366 = vadd.f32 0.0, %v2365
        %2367 = vmatmul.f32.gmra.mxu0 %v2346
        %v2368 = vpop.f32.mrf.mxu0
        %v2369 = vadd.f32 0.0, %v2368
        %2370 = vdwg.mxu0
        %v2371 = vadd.f32 %v2214, %v2366
        %v2372 = vadd.f32 %v2215, %v2369
        %v2373 = vperm.slane %v1750, 0
        %v2374 = vadd.f32 %v2371, %v2373
        %v2375 = vadd.f32 %v2372, %v2373
        %v2376 = vadd.f32 %v1707, %v2374
        %v2377 = vadd.f32 %v1708, %v2375
        %v2378 = vld [vmem:[#allocation2 + $0x1f0] sm:$0x1]
        %v2379 = vld [vmem:[#allocation2 + $0x1f8] sm:$0x1]
        %v2380 = vsel %vm612, %v2376, 0.0
        %2381 = vadd.xlane.f32.xlu0 %v2380
        %v2382 = vpop.xlane.xlu0 %2381
        %v2383 = vsel %vm612, %v2377, 0.0
        %2384 = vadd.xlane.f32.xlu0 %v2383
        %v2385 = vpop.xlane.xlu0 %2384
        %v2386 = vmul.f32 %v2382, %v1281
        %v2387 = vmul.f32 %v2385, %v1281
        %v2388 = vsub.f32 %v2376, %v2386
        %v2389 = vsub.f32 %v2377, %v2387
        %v2390 = vmul.f32 %v2388, %v2388
        %v2391 = vmul.f32 %v2389, %v2389
        %v2392 = vsel %vm612, %v2390, 0.0
        %2393 = vadd.xlane.f32.xlu0 %v2392
        %v2394 = vpop.xlane.xlu0 %2393
        %v2395 = vsel %vm612, %v2391, 0.0
        %2396 = vadd.xlane.f32.xlu0 %v2395
        %v2397 = vpop.xlane.xlu0 %2396
        %v2398 = vmul.f32 %v2394, %v1281
        %v2399 = vmul.f32 %v2397, %v1281
        %v2400 = vadd.f32 %v2398, 1e-05
        %v2401 = vadd.f32 %v2399, 1e-05
        %v2402 = vrsqrt.pop %v2400
        %v2403 = vmul.f32 %v2402, %v2400
        %v2404 = vmul.f32 %v2403, %v2402
        %v2405 = vmul.f32 0.5, %v2404
        %v2406 = vsub.f32 1.5, %v2405
        %v2407 = vmul.f32 %v2402, %v2406
        %vm2408 = vweird.f32 %v2400
        %vm2409 = vweird.f32 %v2402
        %vm2410 = vmor %vm2408, %vm2409
        %v2411 = vsel %vm2410, %v2402, %v2407
        %v2412 = vrsqrt.pop %v2401
        %v2413 = vmul.f32 %v2412, %v2401
        %v2414 = vmul.f32 %v2413, %v2412
        %v2415 = vmul.f32 0.5, %v2414
        %v2416 = vsub.f32 1.5, %v2415
        %v2417 = vmul.f32 %v2412, %v2416
        %vm2418 = vweird.f32 %v2401
        %vm2419 = vweird.f32 %v2412
        %vm2420 = vmor %vm2418, %vm2419
        %v2421 = vsel %vm2420, %v2412, %v2417
        %v2422 = vmul.f32 %v2388, %v2411
        %v2423 = vmul.f32 %v2389, %v2421
        %v2424 = vperm.slane %v2378, 0
        %v2425 = vmul.f32 %v2422, %v2424
        %v2426 = vmul.f32 %v2423, %v2424
        %v2427 = vperm.slane %v2379, 0
        %v2428 = vadd.f32 %v2425, %v2427
        %v2429 = vadd.f32 %v2426, %v2427
        %v2430 = vld [vmem:[#allocation2 + $0x200] sm:$0xff]
        %v2431 = vld [vmem:[#allocation2 + $0x208] sm:$0xff]
        %v2432 = vld [vmem:[#allocation2 + $0x210] sm:$0xff]
        %v2433 = vld [vmem:[#allocation2 + $0x218] sm:$0xff]
        %v2434 = vld [vmem:[#allocation2 + $0x220] sm:$0x1]
        %v2435 = vperm.slane %v2434, 0
        %v2437 = vsel %vm612, %v2428, 0
        %v2440 = vsel %vm612, %v2429, 0
        %2442 = vmatpush.msra.mxu0 0.0
        %2443 = vmatpush.msra.mxu0 0.0
        %2444 = vmatpush.msra.mxu0 0.0
        %2445 = vmatpush.msra.mxu0 0.0
        %2446 = vmatpush.msra.mxu0 0.0
        %2447 = vmatpush.msra.mxu0 0.0
        %2448 = vmatpush.msra.mxu0 0.0
        %2449 = vmatpush.msra.mxu0 0.0
        %2450 = vmatpush.msra.mxu0 0.0
        %2451 = vmatpush.msra.mxu0 0.0
        %2452 = vmatpush.msra.mxu0 0.0
        %2453 = vmatpush.msra.mxu0 0.0
        %2454 = vmatpush.msra.mxu0 %v2433
        %2455 = vmatpush.msra.mxu0 %v2432
        %2456 = vmatpush.msra.mxu0 %v2431
        %2457 = vmatpush.msra.mxu0 %v2430
        %2458 = vmatmul.f32.gmra.mxu0 %v2437
        %v2459 = vpop.f32.mrf.mxu0
        %v2460 = vadd.f32 %v2435, %v2459
        %2461 = vmatmul.f32.gmra.mxu0 %v2440
        %v2462 = vpop.f32.mrf.mxu0
        %v2463 = vadd.f32 %v2435, %v2462
        %2464 = vdwg.mxu0
        %v2465 = vld [vmem:[#allocation2 + $0x228] sm:$0xff]
        %v2466 = vld [vmem:[#allocation2 + $0x230] sm:$0xff]
        %v2467 = vld [vmem:[#allocation2 + $0x238] sm:$0xff]
        %v2468 = vld [vmem:[#allocation2 + $0x240] sm:$0xff]
        %v2469 = vld [vmem:[#allocation2 + $0x248] sm:$0x1]
        %v2470 = vperm.slane %v2469, 0
        %v2472 = vsel %vm612, %v1507, 0
        %v2475 = vsel %vm612, %v1508, 0
        %2477 = vmatpush.msra.mxu0 0.0
        %2478 = vmatpush.msra.mxu0 0.0
        %2479 = vmatpush.msra.mxu0 0.0
        %2480 = vmatpush.msra.mxu0 0.0
        %2481 = vmatpush.msra.mxu0 0.0
        %2482 = vmatpush.msra.mxu0 0.0
        %2483 = vmatpush.msra.mxu0 0.0
        %2484 = vmatpush.msra.mxu0 0.0
        %2485 = vmatpush.msra.mxu0 0.0
        %2486 = vmatpush.msra.mxu0 0.0
        %2487 = vmatpush.msra.mxu0 0.0
        %2488 = vmatpush.msra.mxu0 0.0
        %2489 = vmatpush.msra.mxu0 %v2468
        %2490 = vmatpush.msra.mxu0 %v2467
        %2491 = vmatpush.msra.mxu0 %v2466
        %2492 = vmatpush.msra.mxu0 %v2465
        %2493 = vmatmul.f32.gmra.mxu0 %v2472
        %v2494 = vpop.f32.mrf.mxu0
        %v2495 = vadd.f32 %v2470, %v2494
        %2496 = vmatmul.f32.gmra.mxu0 %v2475
        %v2497 = vpop.f32.mrf.mxu0
        %v2498 = vadd.f32 %v2470, %v2497
        %2499 = vdwg.mxu0
        %v2500 = vld [vmem:[#allocation2 + $0x250] sm:$0xff]
        %v2501 = vld [vmem:[#allocation2 + $0x258] sm:$0xff]
        %v2502 = vld [vmem:[#allocation2 + $0x260] sm:$0xff]
        %v2503 = vld [vmem:[#allocation2 + $0x268] sm:$0xff]
        %v2504 = vld [vmem:[#allocation2 + $0x270] sm:$0x1]
        %v2506 = vsel %vm653, %v2460, 0
        %v2509 = vsel %vm653, %v2463, 0
        %v2512 = vsel %vm653, %v2495, 0
        %v2515 = vsel %vm653, %v2498, 0
        %2517 = vmatpush.xpose.msra.mxu0 0.0
        %2518 = vmatpush.xpose.msra.mxu0 0.0
        %2519 = vmatpush.xpose.msra.mxu0 0.0
        %2520 = vmatpush.xpose.msra.mxu0 0.0
        %2521 = vmatpush.xpose.msra.mxu0 0.0
        %2522 = vmatpush.xpose.msra.mxu0 0.0
        %2523 = vmatpush.xpose.msra.mxu0 0.0
        %2524 = vmatpush.xpose.msra.mxu0 0.0
        %2525 = vmatpush.xpose.msra.mxu0 0.0
        %2526 = vmatpush.xpose.msra.mxu0 0.0
        %2527 = vmatpush.xpose.msra.mxu0 0.0
        %2528 = vmatpush.xpose.msra.mxu0 0.0
        %2529 = vmatpush.xpose.msra.mxu0 0.0
        %2530 = vmatpush.xpose.msra.mxu0 0.0
        %2531 = vmatpush.xpose.msra.mxu0 %v2515
        %2532 = vmatpush.xpose.msra.mxu0 %v2512
        %2533 = vmatmul.f32.gmra.mxu0 %v2506
        %v2534 = vpop.f32.mrf.mxu0
        %v2535 = vadd.f32 0.0, %v2534
        %2536 = vmatmul.f32.gmra.mxu0 %v2509
        %v2537 = vpop.f32.mrf.mxu0
        %v2538 = vadd.f32 0.0, %v2537
        %2539 = vdwg.mxu0
        %v2540 = vmul.f32 %v2535, 0.35355338
        %v2541 = vmul.f32 %v2538, 0.35355338
        %v2542 = vsel %vm403, %v2540, -inf
        %2543 = vmax.xlane.f32.xlu0 %v2542
        %v2544 = vpop.xlane.xlu0 %2543
        %v2545 = vsel %vm403, %v2541, -inf
        %2546 = vmax.xlane.f32.xlu0 %v2545
        %v2547 = vpop.xlane.xlu0 %2546
        %v2548 = vsub.f32 %v2540, %v2544
        %v2549 = vsub.f32 %v2541, %v2547
        %v2550 = vmul.f32 %v2548, 1.442695
        %v2551 = vpow.pop %v2550
        %v2552 = vmul.f32 %v2549, 1.442695
        %v2553 = vpow.pop %v2552
        %v2554 = vsel %vm403, %v2551, 0.0
        %2555 = vadd.xlane.f32.xlu0 %v2554
        %v2556 = vpop.xlane.xlu0 %2555
        %v2557 = vsel %vm403, %v2553, 0.0
        %2558 = vadd.xlane.f32.xlu0 %v2557
        %v2559 = vpop.xlane.xlu0 %2558
        %v2560 = vrcp.pop %v2556
        %v2561 = vmul.f32 %v2556, %v2560
        %v2562 = vsub.f32 1.0, %v2561
        %v2563 = vmul.f32 %v2560, %v2562
        %v2564 = vadd.f32 %v2560, %v2563
        %vm2565 = vweird.f32 %v2556
        %vm2566 = vweird.f32 %v2560
        %vm2567 = vmor %vm2565, %vm2566
        %v2568 = vsel %vm2567, %v2560, %v2564
        %v2569 = vand.u32 2147483647, %v2556
        %vm2570 = vcmp.eq.f32.partialorder %v2569, 8.507059e+37
        %v2571 = vand.u32 %v2556, 2147483648
        %v2572 = vor.u32 1.1754944e-38, %v2571
        %v2573 = vsel %vm2570, %v2572, %v2568
        %v2574 = vmul.f32 %v2551, %v2573
        %v2575 = vrcp.pop %v2559
        %v2576 = vmul.f32 %v2559, %v2575
        %v2577 = vsub.f32 1.0, %v2576
        %v2578 = vmul.f32 %v2575, %v2577
        %v2579 = vadd.f32 %v2575, %v2578
        %vm2580 = vweird.f32 %v2559
        %vm2581 = vweird.f32 %v2575
        %vm2582 = vmor %vm2580, %vm2581
        %v2583 = vsel %vm2582, %v2575, %v2579
        %v2584 = vand.u32 2147483647, %v2559
        %vm2585 = vcmp.eq.f32.partialorder %v2584, 8.507059e+37
        %v2586 = vand.u32 %v2559, 2147483648
        %v2587 = vor.u32 1.1754944e-38, %v2586
        %v2588 = vsel %vm2585, %v2587, %v2583
        %v2589 = vmul.f32 %v2553, %v2588
        %2590 = vrot.lane.b32.xlu0 %v2495, 96
        %v2591 = vpop.permute.xlu0 %2590
        %2592 = vrot.lane.b32.xlu0 %v2498, 96
        %v2593 = vpop.permute.xlu0 %2592
        %v2597 = vsel %vm403, %v2574, 0
        %v2600 = vsel %vm403, %v2589, 0
        %2602 = vmatpush.msra.mxu0 0.0
        %2603 = vmatpush.msra.mxu0 0.0
        %2604 = vmatpush.msra.mxu0 0.0
        %2605 = vmatpush.msra.mxu0 0.0
        %2606 = vmatpush.msra.mxu0 0.0
        %2607 = vmatpush.msra.mxu0 0.0
        %2608 = vmatpush.msra.mxu0 0.0
        %2609 = vmatpush.msra.mxu0 0.0
        %2610 = vmatpush.msra.mxu0 0.0
        %2611 = vmatpush.msra.mxu0 0.0
        %2612 = vmatpush.msra.mxu0 0.0
        %2613 = vmatpush.msra.mxu0 0.0
        %2614 = vmatpush.msra.mxu0 0.0
        %2615 = vmatpush.msra.mxu0 0.0
        %2616 = vmatpush.msra.mxu0 %v2593
        %2617 = vmatpush.msra.mxu0 %v2591
        %2618 = vmatmul.f32.gmra.mxu0 %v2597
        %v2619 = vpop.f32.mrf.mxu0
        %v2620 = vadd.f32 0.0, %v2619
        %2621 = vmatmul.f32.gmra.mxu0 %v2600
        %v2622 = vpop.f32.mrf.mxu0
        %v2623 = vadd.f32 0.0, %v2622
        %2624 = vdwg.mxu0
        %2625 = vrot.lane.b32.xlu0 %v2460, 120
        %v2626 = vpop.permute.xlu0 %2625
        %2627 = vrot.lane.b32.xlu0 %v2463, 120
        %v2628 = vpop.permute.xlu0 %2627
        %2629 = vrot.lane.b32.xlu0 %v2495, 120
        %v2630 = vpop.permute.xlu0 %2629
        %2631 = vrot.lane.b32.xlu0 %v2498, 120
        %v2632 = vpop.permute.xlu0 %2631
        %v2633 = vsel %vm653, %v2626, 0
        %v2635 = vsel %vm653, %v2628, 0
        %v2637 = vsel %vm653, %v2630, 0
        %v2639 = vsel %vm653, %v2632, 0
        %2641 = vmatpush.xpose.msra.mxu0 0.0
        %2642 = vmatpush.xpose.msra.mxu0 0.0
        %2643 = vmatpush.xpose.msra.mxu0 0.0
        %2644 = vmatpush.xpose.msra.mxu0 0.0
        %2645 = vmatpush.xpose.msra.mxu0 0.0
        %2646 = vmatpush.xpose.msra.mxu0 0.0
        %2647 = vmatpush.xpose.msra.mxu0 0.0
        %2648 = vmatpush.xpose.msra.mxu0 0.0
        %2649 = vmatpush.xpose.msra.mxu0 0.0
        %2650 = vmatpush.xpose.msra.mxu0 0.0
        %2651 = vmatpush.xpose.msra.mxu0 0.0
        %2652 = vmatpush.xpose.msra.mxu0 0.0
        %2653 = vmatpush.xpose.msra.mxu0 0.0
        %2654 = vmatpush.xpose.msra.mxu0 0.0
        %2655 = vmatpush.xpose.msra.mxu0 %v2639
        %2656 = vmatpush.xpose.msra.mxu0 %v2637
        %2657 = vmatmul.f32.gmra.mxu0 %v2633
        %v2658 = vpop.f32.mrf.mxu0
        %v2659 = vadd.f32 0.0, %v2658
        %2660 = vmatmul.f32.gmra.mxu0 %v2635
        %v2661 = vpop.f32.mrf.mxu0
        %v2662 = vadd.f32 0.0, %v2661
        %2663 = vdwg.mxu0
        %v2664 = vmul.f32 %v2659, 0.35355338
        %v2665 = vmul.f32 %v2662, 0.35355338
        %v2666 = vsel %vm403, %v2664, -inf
        %2667 = vmax.xlane.f32.xlu0 %v2666
        %v2668 = vpop.xlane.xlu0 %2667
        %v2669 = vsel %vm403, %v2665, -inf
        %2670 = vmax.xlane.f32.xlu0 %v2669
        %v2671 = vpop.xlane.xlu0 %2670
        %v2672 = vsub.f32 %v2664, %v2668
        %v2673 = vsub.f32 %v2665, %v2671
        %v2674 = vmul.f32 %v2672, 1.442695
        %v2675 = vpow.pop %v2674
        %v2676 = vmul.f32 %v2673, 1.442695
        %v2677 = vpow.pop %v2676
        %v2678 = vsel %vm403, %v2675, 0.0
        %2679 = vadd.xlane.f32.xlu0 %v2678
        %v2680 = vpop.xlane.xlu0 %2679
        %v2681 = vsel %vm403, %v2677, 0.0
        %2682 = vadd.xlane.f32.xlu0 %v2681
        %v2683 = vpop.xlane.xlu0 %2682
        %v2684 = vrcp.pop %v2680
        %v2685 = vmul.f32 %v2680, %v2684
        %v2686 = vsub.f32 1.0, %v2685
        %v2687 = vmul.f32 %v2684, %v2686
        %v2688 = vadd.f32 %v2684, %v2687
        %vm2689 = vweird.f32 %v2680
        %vm2690 = vweird.f32 %v2684
        %vm2691 = vmor %vm2689, %vm2690
        %v2692 = vsel %vm2691, %v2684, %v2688
        %v2693 = vand.u32 2147483647, %v2680
        %vm2694 = vcmp.eq.f32.partialorder %v2693, 8.507059e+37
        %v2695 = vand.u32 %v2680, 2147483648
        %v2696 = vor.u32 1.1754944e-38, %v2695
        %v2697 = vsel %vm2694, %v2696, %v2692
        %v2698 = vmul.f32 %v2675, %v2697
        %v2699 = vrcp.pop %v2683
        %v2700 = vmul.f32 %v2683, %v2699
        %v2701 = vsub.f32 1.0, %v2700
        %v2702 = vmul.f32 %v2699, %v2701
        %v2703 = vadd.f32 %v2699, %v2702
        %vm2704 = vweird.f32 %v2683
        %vm2705 = vweird.f32 %v2699
        %vm2706 = vmor %vm2704, %vm2705
        %v2707 = vsel %vm2706, %v2699, %v2703
        %v2708 = vand.u32 2147483647, %v2683
        %vm2709 = vcmp.eq.f32.partialorder %v2708, 8.507059e+37
        %v2710 = vand.u32 %v2683, 2147483648
        %v2711 = vor.u32 1.1754944e-38, %v2710
        %v2712 = vsel %vm2709, %v2711, %v2707
        %v2713 = vmul.f32 %v2677, %v2712
        %2714 = vrot.lane.b32.xlu0 %v2495, 88
        %v2715 = vpop.permute.xlu0 %2714
        %2716 = vrot.lane.b32.xlu0 %v2498, 88
        %v2717 = vpop.permute.xlu0 %2716
        %v2721 = vsel %vm403, %v2698, 0
        %v2724 = vsel %vm403, %v2713, 0
        %2726 = vmatpush.msra.mxu0 0.0
        %2727 = vmatpush.msra.mxu0 0.0
        %2728 = vmatpush.msra.mxu0 0.0
        %2729 = vmatpush.msra.mxu0 0.0
        %2730 = vmatpush.msra.mxu0 0.0
        %2731 = vmatpush.msra.mxu0 0.0
        %2732 = vmatpush.msra.mxu0 0.0
        %2733 = vmatpush.msra.mxu0 0.0
        %2734 = vmatpush.msra.mxu0 0.0
        %2735 = vmatpush.msra.mxu0 0.0
        %2736 = vmatpush.msra.mxu0 0.0
        %2737 = vmatpush.msra.mxu0 0.0
        %2738 = vmatpush.msra.mxu0 0.0
        %2739 = vmatpush.msra.mxu0 0.0
        %2740 = vmatpush.msra.mxu0 %v2717
        %2741 = vmatpush.msra.mxu0 %v2715
        %2742 = vmatmul.f32.gmra.mxu0 %v2721
        %v2743 = vpop.f32.mrf.mxu0
        %v2744 = vadd.f32 0.0, %v2743
        %2745 = vmatmul.f32.gmra.mxu0 %v2724
        %v2746 = vpop.f32.mrf.mxu0
        %v2747 = vadd.f32 0.0, %v2746
        %2748 = vdwg.mxu0
        %v2750 = vsel %vm653, %v2744, 0
        %v2753 = vsel %vm653, %v2747, 0
        %2755 = vmatpush.msra.mxu0 0.0
        %2756 = vmatpush.msra.mxu0 0.0
        %2757 = vmatpush.msra.mxu0 0.0
        %2758 = vmatpush.msra.mxu0 0.0
        %2759 = vmatpush.msra.mxu0 0.0
        %2760 = vmatpush.msra.mxu0 0.0
        %2761 = vmatpush.msra.mxu0 0.0
        %2762 = vmatpush.msra.mxu0 0.0
        %2763 = vmatpush.msra.mxu0 0.0
        %2764 = vmatpush.msra.mxu0 0.0
        %2765 = vmatpush.msra.mxu0 0.0
        %2766 = vmatpush.msra.mxu0 0.0
        %2767 = vmatpush.msra.mxu0 0.0
        %2768 = vmatpush.msra.mxu0 0.0
        %2769 = vmatpush.msra.mxu0 0.0
        %2770 = vmatpush.msra.mxu0 %v2501
        %2771 = vmatmul.f32.gmra.mxu0 %v2750
        %v2772 = vpop.f32.mrf.mxu0
        %v2773 = vadd.f32 0.0, %v2772
        %2774 = vmatmul.f32.gmra.mxu0 %v2753
        %v2775 = vpop.f32.mrf.mxu0
        %v2776 = vadd.f32 0.0, %v2775
        %2777 = vdwg.mxu0
        %v2779 = vsel %vm653, %v2620, 0
        %v2782 = vsel %vm653, %v2623, 0
        %2784 = vmatpush.msra.mxu0 0.0
        %2785 = vmatpush.msra.mxu0 0.0
        %2786 = vmatpush.msra.mxu0 0.0
        %2787 = vmatpush.msra.mxu0 0.0
        %2788 = vmatpush.msra.mxu0 0.0
        %2789 = vmatpush.msra.mxu0 0.0
        %2790 = vmatpush.msra.mxu0 0.0
        %2791 = vmatpush.msra.mxu0 0.0
        %2792 = vmatpush.msra.mxu0 0.0
        %2793 = vmatpush.msra.mxu0 0.0
        %2794 = vmatpush.msra.mxu0 0.0
        %2795 = vmatpush.msra.mxu0 0.0
        %2796 = vmatpush.msra.mxu0 0.0
        %2797 = vmatpush.msra.mxu0 0.0
        %2798 = vmatpush.msra.mxu0 0.0
        %2799 = vmatpush.msra.mxu0 %v2500
        %2800 = vmatmul.f32.gmra.mxu0 %v2779
        %v2801 = vpop.f32.mrf.mxu0
        %v2802 = vadd.f32 %v2773, %v2801
        %2803 = vmatmul.f32.gmra.mxu0 %v2782
        %v2804 = vpop.f32.mrf.mxu0
        %v2805 = vadd.f32 %v2776, %v2804
        %2806 = vdwg.mxu0
        %2807 = vrot.lane.b32.xlu0 %v2460, 112
        %v2808 = vpop.permute.xlu0 %2807
        %2809 = vrot.lane.b32.xlu0 %v2463, 112
        %v2810 = vpop.permute.xlu0 %2809
        %2811 = vrot.lane.b32.xlu0 %v2495, 112
        %v2812 = vpop.permute.xlu0 %2811
        %2813 = vrot.lane.b32.xlu0 %v2498, 112
        %v2814 = vpop.permute.xlu0 %2813
        %v2815 = vsel %vm653, %v2808, 0
        %v2817 = vsel %vm653, %v2810, 0
        %v2819 = vsel %vm653, %v2812, 0
        %v2821 = vsel %vm653, %v2814, 0
        %2823 = vmatpush.xpose.msra.mxu0 0.0
        %2824 = vmatpush.xpose.msra.mxu0 0.0
        %2825 = vmatpush.xpose.msra.mxu0 0.0
        %2826 = vmatpush.xpose.msra.mxu0 0.0
        %2827 = vmatpush.xpose.msra.mxu0 0.0
        %2828 = vmatpush.xpose.msra.mxu0 0.0
        %2829 = vmatpush.xpose.msra.mxu0 0.0
        %2830 = vmatpush.xpose.msra.mxu0 0.0
        %2831 = vmatpush.xpose.msra.mxu0 0.0
        %2832 = vmatpush.xpose.msra.mxu0 0.0
        %2833 = vmatpush.xpose.msra.mxu0 0.0
        %2834 = vmatpush.xpose.msra.mxu0 0.0
        %2835 = vmatpush.xpose.msra.mxu0 0.0
        %2836 = vmatpush.xpose.msra.mxu0 0.0
        %2837 = vmatpush.xpose.msra.mxu0 %v2821
        %2838 = vmatpush.xpose.msra.mxu0 %v2819
        %2839 = vmatmul.f32.gmra.mxu0 %v2815
        %v2840 = vpop.f32.mrf.mxu0
        %v2841 = vadd.f32 0.0, %v2840
        %2842 = vmatmul.f32.gmra.mxu0 %v2817
        %v2843 = vpop.f32.mrf.mxu0
        %v2844 = vadd.f32 0.0, %v2843
        %2845 = vdwg.mxu0
        %v2846 = vmul.f32 %v2841, 0.35355338
        %v2847 = vmul.f32 %v2844, 0.35355338
        %v2848 = vsel %vm403, %v2846, -inf
        %2849 = vmax.xlane.f32.xlu0 %v2848
        %v2850 = vpop.xlane.xlu0 %2849
        %v2851 = vsel %vm403, %v2847, -inf
        %2852 = vmax.xlane.f32.xlu0 %v2851
        %v2853 = vpop.xlane.xlu0 %2852
        %v2854 = vsub.f32 %v2846, %v2850
        %v2855 = vsub.f32 %v2847, %v2853
        %v2856 = vmul.f32 %v2854, 1.442695
        %v2857 = vpow.pop %v2856
        %v2858 = vmul.f32 %v2855, 1.442695
        %v2859 = vpow.pop %v2858
        %v2860 = vsel %vm403, %v2857, 0.0
        %2861 = vadd.xlane.f32.xlu0 %v2860
        %v2862 = vpop.xlane.xlu0 %2861
        %v2863 = vsel %vm403, %v2859, 0.0
        %2864 = vadd.xlane.f32.xlu0 %v2863
        %v2865 = vpop.xlane.xlu0 %2864
        %v2866 = vrcp.pop %v2862
        %v2867 = vmul.f32 %v2862, %v2866
        %v2868 = vsub.f32 1.0, %v2867
        %v2869 = vmul.f32 %v2866, %v2868
        %v2870 = vadd.f32 %v2866, %v2869
        %vm2871 = vweird.f32 %v2862
        %vm2872 = vweird.f32 %v2866
        %vm2873 = vmor %vm2871, %vm2872
        %v2874 = vsel %vm2873, %v2866, %v2870
        %v2875 = vand.u32 2147483647, %v2862
        %vm2876 = vcmp.eq.f32.partialorder %v2875, 8.507059e+37
        %v2877 = vand.u32 %v2862, 2147483648
        %v2878 = vor.u32 1.1754944e-38, %v2877
        %v2879 = vsel %vm2876, %v2878, %v2874
        %v2880 = vmul.f32 %v2857, %v2879
        %v2881 = vrcp.pop %v2865
        %v2882 = vmul.f32 %v2865, %v2881
        %v2883 = vsub.f32 1.0, %v2882
        %v2884 = vmul.f32 %v2881, %v2883
        %v2885 = vadd.f32 %v2881, %v2884
        %vm2886 = vweird.f32 %v2865
        %vm2887 = vweird.f32 %v2881
        %vm2888 = vmor %vm2886, %vm2887
        %v2889 = vsel %vm2888, %v2881, %v2885
        %v2890 = vand.u32 2147483647, %v2865
        %vm2891 = vcmp.eq.f32.partialorder %v2890, 8.507059e+37
        %v2892 = vand.u32 %v2865, 2147483648
        %v2893 = vor.u32 1.1754944e-38, %v2892
        %v2894 = vsel %vm2891, %v2893, %v2889
        %v2895 = vmul.f32 %v2859, %v2894
        %2896 = vrot.lane.b32.xlu0 %v2495, 80
        %v2897 = vpop.permute.xlu0 %2896
        %2898 = vrot.lane.b32.xlu0 %v2498, 80
        %v2899 = vpop.permute.xlu0 %2898
        %v2903 = vsel %vm403, %v2880, 0
        %v2906 = vsel %vm403, %v2895, 0
        %2908 = vmatpush.msra.mxu0 0.0
        %2909 = vmatpush.msra.mxu0 0.0
        %2910 = vmatpush.msra.mxu0 0.0
        %2911 = vmatpush.msra.mxu0 0.0
        %2912 = vmatpush.msra.mxu0 0.0
        %2913 = vmatpush.msra.mxu0 0.0
        %2914 = vmatpush.msra.mxu0 0.0
        %2915 = vmatpush.msra.mxu0 0.0
        %2916 = vmatpush.msra.mxu0 0.0
        %2917 = vmatpush.msra.mxu0 0.0
        %2918 = vmatpush.msra.mxu0 0.0
        %2919 = vmatpush.msra.mxu0 0.0
        %2920 = vmatpush.msra.mxu0 0.0
        %2921 = vmatpush.msra.mxu0 0.0
        %2922 = vmatpush.msra.mxu0 %v2899
        %2923 = vmatpush.msra.mxu0 %v2897
        %2924 = vmatmul.f32.gmra.mxu0 %v2903
        %v2925 = vpop.f32.mrf.mxu0
        %v2926 = vadd.f32 0.0, %v2925
        %2927 = vmatmul.f32.gmra.mxu0 %v2906
        %v2928 = vpop.f32.mrf.mxu0
        %v2929 = vadd.f32 0.0, %v2928
        %2930 = vdwg.mxu0
        %v2932 = vsel %vm653, %v2926, 0
        %v2935 = vsel %vm653, %v2929, 0
        %2937 = vmatpush.msra.mxu0 0.0
        %2938 = vmatpush.msra.mxu0 0.0
        %2939 = vmatpush.msra.mxu0 0.0
        %2940 = vmatpush.msra.mxu0 0.0
        %2941 = vmatpush.msra.mxu0 0.0
        %2942 = vmatpush.msra.mxu0 0.0
        %2943 = vmatpush.msra.mxu0 0.0
        %2944 = vmatpush.msra.mxu0 0.0
        %2945 = vmatpush.msra.mxu0 0.0
        %2946 = vmatpush.msra.mxu0 0.0
        %2947 = vmatpush.msra.mxu0 0.0
        %2948 = vmatpush.msra.mxu0 0.0
        %2949 = vmatpush.msra.mxu0 0.0
        %2950 = vmatpush.msra.mxu0 0.0
        %2951 = vmatpush.msra.mxu0 0.0
        %2952 = vmatpush.msra.mxu0 %v2502
        %2953 = vmatmul.f32.gmra.mxu0 %v2932
        %v2954 = vpop.f32.mrf.mxu0
        %v2955 = vadd.f32 0.0, %v2954
        %2956 = vmatmul.f32.gmra.mxu0 %v2935
        %v2957 = vpop.f32.mrf.mxu0
        %v2958 = vadd.f32 0.0, %v2957
        %2959 = vdwg.mxu0
        %v2960 = vadd.f32 %v2802, %v2955
        %v2961 = vadd.f32 %v2805, %v2958
        %2962 = vrot.lane.b32.xlu0 %v2460, 104
        %v2963 = vpop.permute.xlu0 %2962
        %2964 = vrot.lane.b32.xlu0 %v2463, 104
        %v2965 = vpop.permute.xlu0 %2964
        %2966 = vrot.lane.b32.xlu0 %v2495, 104
        %v2967 = vpop.permute.xlu0 %2966
        %2968 = vrot.lane.b32.xlu0 %v2498, 104
        %v2969 = vpop.permute.xlu0 %2968
        %v2970 = vsel %vm653, %v2963, 0
        %v2972 = vsel %vm653, %v2965, 0
        %v2974 = vsel %vm653, %v2967, 0
        %v2976 = vsel %vm653, %v2969, 0
        %2978 = vmatpush.xpose.msra.mxu0 0.0
        %2979 = vmatpush.xpose.msra.mxu0 0.0
        %2980 = vmatpush.xpose.msra.mxu0 0.0
        %2981 = vmatpush.xpose.msra.mxu0 0.0
        %2982 = vmatpush.xpose.msra.mxu0 0.0
        %2983 = vmatpush.xpose.msra.mxu0 0.0
        %2984 = vmatpush.xpose.msra.mxu0 0.0
        %2985 = vmatpush.xpose.msra.mxu0 0.0
        %2986 = vmatpush.xpose.msra.mxu0 0.0
        %2987 = vmatpush.xpose.msra.mxu0 0.0
        %2988 = vmatpush.xpose.msra.mxu0 0.0
        %2989 = vmatpush.xpose.msra.mxu0 0.0
        %2990 = vmatpush.xpose.msra.mxu0 0.0
        %2991 = vmatpush.xpose.msra.mxu0 0.0
        %2992 = vmatpush.xpose.msra.mxu0 %v2976
        %2993 = vmatpush.xpose.msra.mxu0 %v2974
        %2994 = vmatmul.f32.gmra.mxu0 %v2970
        %v2995 = vpop.f32.mrf.mxu0
        %v2996 = vadd.f32 0.0, %v2995
        %2997 = vmatmul.f32.gmra.mxu0 %v2972
        %v2998 = vpop.f32.mrf.mxu0
        %v2999 = vadd.f32 0.0, %v2998
        %3000 = vdwg.mxu0
        %v3001 = vmul.f32 %v2996, 0.35355338
        %v3002 = vmul.f32 %v2999, 0.35355338
        %v3003 = vsel %vm403, %v3001, -inf
        %3004 = vmax.xlane.f32.xlu0 %v3003
        %v3005 = vpop.xlane.xlu0 %3004
        %v3006 = vsel %vm403, %v3002, -inf
        %3007 = vmax.xlane.f32.xlu0 %v3006
        %v3008 = vpop.xlane.xlu0 %3007
        %v3009 = vsub.f32 %v3001, %v3005
        %v3010 = vsub.f32 %v3002, %v3008
        %v3011 = vmul.f32 %v3009, 1.442695
        %v3012 = vpow.pop %v3011
        %v3013 = vmul.f32 %v3010, 1.442695
        %v3014 = vpow.pop %v3013
        %v3015 = vsel %vm403, %v3012, 0.0
        %3016 = vadd.xlane.f32.xlu0 %v3015
        %v3017 = vpop.xlane.xlu0 %3016
        %v3018 = vsel %vm403, %v3014, 0.0
        %3019 = vadd.xlane.f32.xlu0 %v3018
        %v3020 = vpop.xlane.xlu0 %3019
        %v3021 = vrcp.pop %v3017
        %v3022 = vmul.f32 %v3017, %v3021
        %v3023 = vsub.f32 1.0, %v3022
        %v3024 = vmul.f32 %v3021, %v3023
        %v3025 = vadd.f32 %v3021, %v3024
        %vm3026 = vweird.f32 %v3017
        %vm3027 = vweird.f32 %v3021
        %vm3028 = vmor %vm3026, %vm3027
        %v3029 = vsel %vm3028, %v3021, %v3025
        %v3030 = vand.u32 2147483647, %v3017
        %vm3031 = vcmp.eq.f32.partialorder %v3030, 8.507059e+37
        %v3032 = vand.u32 %v3017, 2147483648
        %v3033 = vor.u32 1.1754944e-38, %v3032
        %v3034 = vsel %vm3031, %v3033, %v3029
        %v3035 = vmul.f32 %v3012, %v3034
        %v3036 = vrcp.pop %v3020
        %v3037 = vmul.f32 %v3020, %v3036
        %v3038 = vsub.f32 1.0, %v3037
        %v3039 = vmul.f32 %v3036, %v3038
        %v3040 = vadd.f32 %v3036, %v3039
        %vm3041 = vweird.f32 %v3020
        %vm3042 = vweird.f32 %v3036
        %vm3043 = vmor %vm3041, %vm3042
        %v3044 = vsel %vm3043, %v3036, %v3040
        %v3045 = vand.u32 2147483647, %v3020
        %vm3046 = vcmp.eq.f32.partialorder %v3045, 8.507059e+37
        %v3047 = vand.u32 %v3020, 2147483648
        %v3048 = vor.u32 1.1754944e-38, %v3047
        %v3049 = vsel %vm3046, %v3048, %v3044
        %v3050 = vmul.f32 %v3014, %v3049
        %3051 = vrot.lane.b32.xlu0 %v2495, 72
        %v3052 = vpop.permute.xlu0 %3051
        %3053 = vrot.lane.b32.xlu0 %v2498, 72
        %v3054 = vpop.permute.xlu0 %3053
        %v3058 = vsel %vm403, %v3035, 0
        %v3061 = vsel %vm403, %v3050, 0
        %3063 = vmatpush.msra.mxu0 0.0
        %3064 = vmatpush.msra.mxu0 0.0
        %3065 = vmatpush.msra.mxu0 0.0
        %3066 = vmatpush.msra.mxu0 0.0
        %3067 = vmatpush.msra.mxu0 0.0
        %3068 = vmatpush.msra.mxu0 0.0
        %3069 = vmatpush.msra.mxu0 0.0
        %3070 = vmatpush.msra.mxu0 0.0
        %3071 = vmatpush.msra.mxu0 0.0
        %3072 = vmatpush.msra.mxu0 0.0
        %3073 = vmatpush.msra.mxu0 0.0
        %3074 = vmatpush.msra.mxu0 0.0
        %3075 = vmatpush.msra.mxu0 0.0
        %3076 = vmatpush.msra.mxu0 0.0
        %3077 = vmatpush.msra.mxu0 %v3054
        %3078 = vmatpush.msra.mxu0 %v3052
        %3079 = vmatmul.f32.gmra.mxu0 %v3058
        %v3080 = vpop.f32.mrf.mxu0
        %v3081 = vadd.f32 0.0, %v3080
        %3082 = vmatmul.f32.gmra.mxu0 %v3061
        %v3083 = vpop.f32.mrf.mxu0
        %v3084 = vadd.f32 0.0, %v3083
        %3085 = vdwg.mxu0
        %v3087 = vsel %vm653, %v3081, 0
        %v3090 = vsel %vm653, %v3084, 0
        %3092 = vmatpush.msra.mxu0 0.0
        %3093 = vmatpush.msra.mxu0 0.0
        %3094 = vmatpush.msra.mxu0 0.0
        %3095 = vmatpush.msra.mxu0 0.0
        %3096 = vmatpush.msra.mxu0 0.0
        %3097 = vmatpush.msra.mxu0 0.0
        %3098 = vmatpush.msra.mxu0 0.0
        %3099 = vmatpush.msra.mxu0 0.0
        %3100 = vmatpush.msra.mxu0 0.0
        %3101 = vmatpush.msra.mxu0 0.0
        %3102 = vmatpush.msra.mxu0 0.0
        %3103 = vmatpush.msra.mxu0 0.0
        %3104 = vmatpush.msra.mxu0 0.0
        %3105 = vmatpush.msra.mxu0 0.0
        %3106 = vmatpush.msra.mxu0 0.0
        %3107 = vmatpush.msra.mxu0 %v2503
        %3108 = vmatmul.f32.gmra.mxu0 %v3087
        %v3109 = vpop.f32.mrf.mxu0
        %v3110 = vadd.f32 0.0, %v3109
        %3111 = vmatmul.f32.gmra.mxu0 %v3090
        %v3112 = vpop.f32.mrf.mxu0
        %v3113 = vadd.f32 0.0, %v3112
        %3114 = vdwg.mxu0
        %v3115 = vadd.f32 %v2960, %v3110
        %v3116 = vadd.f32 %v2961, %v3113
        %v3117 = vperm.slane %v2504, 0
        %v3118 = vadd.f32 %v3115, %v3117
        %v3119 = vadd.f32 %v3116, %v3117
        %v3120 = vadd.f32 %v2428, %v3118
        %v3121 = vadd.f32 %v2429, %v3119
        %v3122 = vld [vmem:[#allocation2 + $0x278] sm:$0x1]
        %v3123 = vld [vmem:[#allocation2 + $0x280] sm:$0x1]
        %v3124 = vsel %vm612, %v3120, 0.0
        %3125 = vadd.xlane.f32.xlu0 %v3124
        %v3126 = vpop.xlane.xlu0 %3125
        %v3127 = vsel %vm612, %v3121, 0.0
        %3128 = vadd.xlane.f32.xlu0 %v3127
        %v3129 = vpop.xlane.xlu0 %3128
        %v3130 = vmul.f32 %v3126, %v1281
        %v3131 = vmul.f32 %v3129, %v1281
        %v3132 = vsub.f32 %v3120, %v3130
        %v3133 = vsub.f32 %v3121, %v3131
        %v3134 = vmul.f32 %v3132, %v3132
        %v3135 = vmul.f32 %v3133, %v3133
        %v3136 = vsel %vm612, %v3134, 0.0
        %3137 = vadd.xlane.f32.xlu0 %v3136
        %v3138 = vpop.xlane.xlu0 %3137
        %v3139 = vsel %vm612, %v3135, 0.0
        %3140 = vadd.xlane.f32.xlu0 %v3139
        %v3141 = vpop.xlane.xlu0 %3140
        %v3142 = vmul.f32 %v3138, %v1281
        %v3143 = vmul.f32 %v3141, %v1281
        %v3144 = vadd.f32 %v3142, 1e-05
        %v3145 = vadd.f32 %v3143, 1e-05
        %v3146 = vrsqrt.pop %v3144
        %v3147 = vmul.f32 %v3146, %v3144
        %v3148 = vmul.f32 %v3147, %v3146
        %v3149 = vmul.f32 0.5, %v3148
        %v3150 = vsub.f32 1.5, %v3149
        %v3151 = vmul.f32 %v3146, %v3150
        %vm3152 = vweird.f32 %v3144
        %vm3153 = vweird.f32 %v3146
        %vm3154 = vmor %vm3152, %vm3153
        %v3155 = vsel %vm3154, %v3146, %v3151
        %v3156 = vrsqrt.pop %v3145
        %v3157 = vmul.f32 %v3156, %v3145
        %v3158 = vmul.f32 %v3157, %v3156
        %v3159 = vmul.f32 0.5, %v3158
        %v3160 = vsub.f32 1.5, %v3159
        %v3161 = vmul.f32 %v3156, %v3160
        %vm3162 = vweird.f32 %v3145
        %vm3163 = vweird.f32 %v3156
        %vm3164 = vmor %vm3162, %vm3163
        %v3165 = vsel %vm3164, %v3156, %v3161
        %v3166 = vmul.f32 %v3132, %v3155
        %v3167 = vmul.f32 %v3133, %v3165
        %v3168 = vperm.slane %v3122, 0
        %v3169 = vmul.f32 %v3166, %v3168
        %v3170 = vmul.f32 %v3167, %v3168
        %v3171 = vperm.slane %v3123, 0
        %v3172 = vadd.f32 %v3169, %v3171
        %v3173 = vadd.f32 %v3170, %v3171
        %v3174 = vld [vmem:[#allocation2 + $0x288] sm:$0xff]
        %v3175 = vld [vmem:[#allocation2 + $0x290] sm:$0xff]
        %v3176 = vld [vmem:[#allocation2 + $0x298] sm:$0xff]
        %v3177 = vld [vmem:[#allocation2 + $0x2a0] sm:$0xff]
        %v3178 = vld [vmem:[#allocation2 + $0x2a8] sm:$0x1]
        %v3179 = vperm.slane %v3178, 0
        %v3181 = vsel %vm612, %v3172, 0
        %v3184 = vsel %vm612, %v3173, 0
        %3186 = vmatpush.msra.mxu0 0.0
        %3187 = vmatpush.msra.mxu0 0.0
        %3188 = vmatpush.msra.mxu0 0.0
        %3189 = vmatpush.msra.mxu0 0.0
        %3190 = vmatpush.msra.mxu0 0.0
        %3191 = vmatpush.msra.mxu0 0.0
        %3192 = vmatpush.msra.mxu0 0.0
        %3193 = vmatpush.msra.mxu0 0.0
        %3194 = vmatpush.msra.mxu0 0.0
        %3195 = vmatpush.msra.mxu0 0.0
        %3196 = vmatpush.msra.mxu0 0.0
        %3197 = vmatpush.msra.mxu0 0.0
        %3198 = vmatpush.msra.mxu0 %v3177
        %3199 = vmatpush.msra.mxu0 %v3176
        %3200 = vmatpush.msra.mxu0 %v3175
        %3201 = vmatpush.msra.mxu0 %v3174
        %3202 = vmatmul.f32.gmra.mxu0 %v3181
        %v3203 = vpop.f32.mrf.mxu0
        %v3204 = vadd.f32 %v3179, %v3203
        %3205 = vmatmul.f32.gmra.mxu0 %v3184
        %v3206 = vpop.f32.mrf.mxu0
        %v3207 = vadd.f32 %v3179, %v3206
        %3208 = vdwg.mxu0
        %v3209 = vmax.f32 %v3204, 0.0
        %v3210 = vmax.f32 %v3207, 0.0
        %v3211 = vld [vmem:[#allocation2 + $0x2b0] sm:$0xff]
        %v3212 = vld [vmem:[#allocation2 + $0x2b8] sm:$0xff]
        %v3213 = vld [vmem:[#allocation2 + $0x2c0] sm:$0xff]
        %v3214 = vld [vmem:[#allocation2 + $0x2c8] sm:$0xff]
        %v3215 = vld [vmem:[#allocation2 + $0x2d0] sm:$0xff]
        %v3216 = vld [vmem:[#allocation2 + $0x2d8] sm:$0xff]
        %v3217 = vld [vmem:[#allocation2 + $0x2e0] sm:$0xff]
        %v3218 = vld [vmem:[#allocation2 + $0x2e8] sm:$0xff]
        %v3219 = vld [vmem:[#allocation2 + $0x2f0] sm:$0x1]
        %v3220 = vperm.slane %v3219, 0
        %v3222 = vsel %vm1373, %v3209, 0
        %v3225 = vsel %vm1373, %v3210, 0
        %3227 = vmatpush.msra.mxu0 0.0
        %3228 = vmatpush.msra.mxu0 0.0
        %3229 = vmatpush.msra.mxu0 0.0
        %3230 = vmatpush.msra.mxu0 0.0
        %3231 = vmatpush.msra.mxu0 0.0
        %3232 = vmatpush.msra.mxu0 0.0
        %3233 = vmatpush.msra.mxu0 0.0
        %3234 = vmatpush.msra.mxu0 0.0
        %3235 = vmatpush.msra.mxu0 %v3218
        %3236 = vmatpush.msra.mxu0 %v3217
        %3237 = vmatpush.msra.mxu0 %v3216
        %3238 = vmatpush.msra.mxu0 %v3215
        %3239 = vmatpush.msra.mxu0 %v3214
        %3240 = vmatpush.msra.mxu0 %v3213
        %3241 = vmatpush.msra.mxu0 %v3212
        %3242 = vmatpush.msra.mxu0 %v3211
        %3243 = vmatmul.f32.gmra.mxu0 %v3222
        %v3244 = vpop.f32.mrf.mxu0
        %v3245 = vadd.f32 %v3220, %v3244
        %3246 = vmatmul.f32.gmra.mxu0 %v3225
        %v3247 = vpop.f32.mrf.mxu0
        %v3248 = vadd.f32 %v3220, %v3247
        %3249 = vdwg.mxu0
        %v3250 = vadd.f32 %v3172, %v3245
        %v3251 = vadd.f32 %v3173, %v3248
        %v3252 = vld [vmem:[#allocation2 + $0x2f8] sm:$0x1]
        %v3253 = vld [vmem:[#allocation2 + $0x300] sm:$0x1]
        %v3254 = vsel %vm612, %v3250, 0.0
        %3255 = vadd.xlane.f32.xlu0 %v3254
        %v3256 = vpop.xlane.xlu0 %3255
        %v3257 = vsel %vm612, %v3251, 0.0
        %3258 = vadd.xlane.f32.xlu0 %v3257
        %v3259 = vpop.xlane.xlu0 %3258
        %v3260 = vmul.f32 %v3256, %v1281
        %v3261 = vmul.f32 %v3259, %v1281
        %v3262 = vsub.f32 %v3250, %v3260
        %v3263 = vsub.f32 %v3251, %v3261
        %v3264 = vmul.f32 %v3262, %v3262
        %v3265 = vmul.f32 %v3263, %v3263
        %v3266 = vsel %vm612, %v3264, 0.0
        %3267 = vadd.xlane.f32.xlu0 %v3266
        %v3268 = vpop.xlane.xlu0 %3267
        %v3269 = vsel %vm612, %v3265, 0.0
        %3270 = vadd.xlane.f32.xlu0 %v3269
        %v3271 = vpop.xlane.xlu0 %3270
        %v3272 = vmul.f32 %v3268, %v1281
        %v3273 = vmul.f32 %v3271, %v1281
        %v3274 = vadd.f32 %v3272, 1e-05
        %v3275 = vadd.f32 %v3273, 1e-05
        %v3276 = vrsqrt.pop %v3274
        %v3277 = vmul.f32 %v3276, %v3274
        %v3278 = vmul.f32 %v3277, %v3276
        %v3279 = vmul.f32 0.5, %v3278
        %v3280 = vsub.f32 1.5, %v3279
        %v3281 = vmul.f32 %v3276, %v3280
        %vm3282 = vweird.f32 %v3274
        %vm3283 = vweird.f32 %v3276
        %vm3284 = vmor %vm3282, %vm3283
        %v3285 = vsel %vm3284, %v3276, %v3281
        %v3286 = vrsqrt.pop %v3275
        %v3287 = vmul.f32 %v3286, %v3275
        %v3288 = vmul.f32 %v3287, %v3286
        %v3289 = vmul.f32 0.5, %v3288
        %v3290 = vsub.f32 1.5, %v3289
        %v3291 = vmul.f32 %v3286, %v3290
        %vm3292 = vweird.f32 %v3275
        %vm3293 = vweird.f32 %v3286
        %vm3294 = vmor %vm3292, %vm3293
        %v3295 = vsel %vm3294, %v3286, %v3291
        %v3296 = vmul.f32 %v3262, %v3285
        %v3297 = vmul.f32 %v3263, %v3295
        %v3298 = vperm.slane %v3252, 0
        %v3299 = vmul.f32 %v3296, %v3298
        %v3300 = vmul.f32 %v3297, %v3298
        %v3301 = vperm.slane %v3253, 0
        %v3302 = vadd.f32 %v3299, %v3301
        %v3303 = vadd.f32 %v3300, %v3301
        %v3304 = vld [vmem:[#allocation2 + $0x308] sm:$0x1]
        %v3305 = vld [vmem:[#allocation2 + $0x310] sm:$0x1]
        %v3306 = vsel %vm612, %v3302, 0.0
        %3307 = vadd.xlane.f32.xlu0 %v3306
        %v3308 = vpop.xlane.xlu0 %3307
        %v3309 = vsel %vm612, %v3303, 0.0
        %3310 = vadd.xlane.f32.xlu0 %v3309
        %v3311 = vpop.xlane.xlu0 %3310
        %v3312 = vmul.f32 %v3308, %v1281
        %v3313 = vmul.f32 %v3311, %v1281
        %v3314 = vsub.f32 %v3302, %v3312
        %v3315 = vsub.f32 %v3303, %v3313
        %v3316 = vmul.f32 %v3314, %v3314
        %v3317 = vmul.f32 %v3315, %v3315
        %v3318 = vsel %vm612, %v3316, 0.0
        %3319 = vadd.xlane.f32.xlu0 %v3318
        %v3320 = vpop.xlane.xlu0 %3319
        %v3321 = vsel %vm612, %v3317, 0.0
        %3322 = vadd.xlane.f32.xlu0 %v3321
        %v3323 = vpop.xlane.xlu0 %3322
        %v3324 = vmul.f32 %v3320, %v1281
        %v3325 = vmul.f32 %v3323, %v1281
        %v3326 = vadd.f32 %v3324, 1e-05
        %v3327 = vadd.f32 %v3325, 1e-05
        %v3328 = vrsqrt.pop %v3326
        %v3329 = vmul.f32 %v3328, %v3326
        %v3330 = vmul.f32 %v3329, %v3328
        %v3331 = vmul.f32 0.5, %v3330
        %v3332 = vsub.f32 1.5, %v3331
        %v3333 = vmul.f32 %v3328, %v3332
        %vm3334 = vweird.f32 %v3326
        %vm3335 = vweird.f32 %v3328
        %vm3336 = vmor %vm3334, %vm3335
        %v3337 = vsel %vm3336, %v3328, %v3333
        %v3338 = vrsqrt.pop %v3327
        %v3339 = vmul.f32 %v3338, %v3327
        %v3340 = vmul.f32 %v3339, %v3338
        %v3341 = vmul.f32 0.5, %v3340
        %v3342 = vsub.f32 1.5, %v3341
        %v3343 = vmul.f32 %v3338, %v3342
        %vm3344 = vweird.f32 %v3327
        %vm3345 = vweird.f32 %v3338
        %vm3346 = vmor %vm3344, %vm3345
        %v3347 = vsel %vm3346, %v3338, %v3343
        %v3348 = vmul.f32 %v3314, %v3337
        %v3349 = vmul.f32 %v3315, %v3347
        %v3350 = vperm.slane %v3304, 0
        %v3351 = vmul.f32 %v3348, %v3350
        %v3352 = vmul.f32 %v3349, %v3350
        %v3353 = vperm.slane %v3305, 0
        %v3354 = vadd.f32 %v3351, %v3353
        %v3355 = vadd.f32 %v3352, %v3353
        %v3356 = vld [vmem:[#allocation2 + $0x318] sm:$0xff]
        %v3357 = vld [vmem:[#allocation2 + $0x320] sm:$0xff]
        %v3358 = vld [vmem:[#allocation2 + $0x328] sm:$0xff]
        %v3359 = vld [vmem:[#allocation2 + $0x330] sm:$0xff]
        %v3360 = vld [vmem:[#allocation2 + $0x338] sm:$0x1]
        %v3361 = vperm.slane %v3360, 0
        %v3363 = vsel %vm612, %v3354, 0
        %v3366 = vsel %vm612, %v3355, 0
        %3368 = vmatpush.msra.mxu0 0.0
        %3369 = vmatpush.msra.mxu0 0.0
        %3370 = vmatpush.msra.mxu0 0.0
        %3371 = vmatpush.msra.mxu0 0.0
        %3372 = vmatpush.msra.mxu0 0.0
        %3373 = vmatpush.msra.mxu0 0.0
        %3374 = vmatpush.msra.mxu0 0.0
        %3375 = vmatpush.msra.mxu0 0.0
        %3376 = vmatpush.msra.mxu0 0.0
        %3377 = vmatpush.msra.mxu0 0.0
        %3378 = vmatpush.msra.mxu0 0.0
        %3379 = vmatpush.msra.mxu0 0.0
        %3380 = vmatpush.msra.mxu0 %v3359
        %3381 = vmatpush.msra.mxu0 %v3358
        %3382 = vmatpush.msra.mxu0 %v3357
        %3383 = vmatpush.msra.mxu0 %v3356
        %3384 = vmatmul.f32.gmra.mxu0 %v3363
        %v3385 = vpop.f32.mrf.mxu0
        %3386 = vmatmul.f32.gmra.mxu0 %v3366
        %v3387 = vpop.f32.mrf.mxu0
        %v3388 = vadd.f32 %v3361, %v3387
        %3389 = vdwg.mxu0
        %v3390 = vadd.f32 %v3388, %v386
        %3391 = vst.msk [vmem:[%s299] sm:$0xff] %vm311, %v3390
        %p3392 = scmp.lt.s32.totalorder %s17, 1
        %s3393 = scalar_select %p3392, %s17, 1
        %s3394 = smul.addr %s3393, 8
        %s3395 = scalar_lea.vmem %s5, %s3394
        // Predicated region
        $region45: #{model_forward.1} parent=39 // pred_check
          %p3396 = pneg %p160
        $region46: #{model_forward.1} parent=39 // pred_check_branch
          %3398 = sbr.rel (%p3396) target = $region48
        $region47: #{model_forward.1} parent=39 // pred_region
          _
        $region48: #{model_forward.1} parent=39 // pred_fallthru
          _
      $region40: #{model_forward.1} parent=5 // pred_fallthru
        _
      %p3399 = scmp.le.s32.totalorder 2, %s12
      // Predicated region
      $region49: #{model_forward.1} parent=5 // pred_check
        %p3400 = pneg %p3399
      $region50: #{model_forward.1} parent=5 // pred_check_branch
        %3402 = sbr.rel (%p3400) target = $region52
      $region51: #{model_forward.1} parent=5 // pred_region
        %s3403 = ssub.s32 %s12, 2
        // Predicated region
        $region53: #{model_forward.1} parent=51 // pred_check
          %p3404 = pneg %p166
        $region54: #{model_forward.1} parent=51 // pred_check_branch
          %3406 = sbr.rel (%p3404) target = $region56
        $region55: #{model_forward.1} parent=51 // pred_region
          %p3407 = scmp.lt.s32.totalorder %s18, 1
          %s3408 = scalar_select %p3407, %s18, 1
          %s3409 = smul.addr %s3408, 8
          %s3410 = scalar_lea.vmem %s5, %s3409
        $region56: #{model_forward.1} parent=51 // pred_fallthru
          _
      $region52: #{model_forward.1} parent=5 // pred_fallthru
        _
    $region6: #{model_forward.1} parent=1 // loop_footer
      %s16 = sadd.s32 1, %s12
    $region7: #{model_forward.1} parent=1 // loop_footer_branch
      %11 = sbr.rel target = $region3
    $region8: #{model_forward.1} parent=1 // loop_exit
      _
    %3411 = vsyncpa [#allocation3], 1
    %s3412 = scalar_lea.sflag [#allocation3], 1
    %3413 = vsyncpa %s3412, 1

</llo_original>
